<compile_context>
chip_gen: v5e
topology: v5e:2x2
jax: 0.10.0
libtpu: 0.0.40
codegen_flags: <defaults>
</compile_context>

<pallas_src>
import functools

import jax
import jax.numpy as jnp
from jax.experimental import pallas as pl
from jax.experimental.pallas import tpu as pltpu

EPS = 1e-5
LANES = 128      # Cout padded to a multiple of this (lane-dense stores)
TM_TARGET = 512  # target M tile (fits comfortably in 32 MiB scoped VMEM, bf16)


def _round_up(x, m):
    return (x + m - 1) // m * m


def _choose_tile(m):
    """Return (padded M, M tile) — tile is (8,*)-aligned and divides padded M."""
    mp = _round_up(max(m, 8), 8)
    if mp <= TM_TARGET:
        return mp, mp
    tm = TM_TARGET
    mp = _round_up(mp, tm)
    return mp, tm


# ----------------------------- Pallas kernels -----------------------------
def _gemm_stats_kernel(x_ref, w_ref, y_ref, s_ref):
    # x: (tm, K) bf16, w: (K, Cp) bf16 -> y: (tm, Cp) f32, s: (1, 8, Cp) partial stats
    y = jnp.dot(x_ref[...], w_ref[...], preferred_element_type=jnp.float32)
    y_ref[...] = y
    cp = y.shape[-1]
    s1 = jnp.sum(y, axis=0, keepdims=True)          # per-channel sum (this tile)
    s2 = jnp.sum(y * y, axis=0, keepdims=True)      # per-channel sum of squares
    pad = jnp.zeros((6, cp), jnp.float32)
    s_ref[...] = jnp.concatenate([s1, s2, pad], axis=0)[None, :, :]


def _gemm_bias_act_kernel(x_ref, w_ref, b_ref, y_ref, *, act):
    y = jnp.dot(x_ref[...], w_ref[...], preferred_element_type=jnp.float32)
    y = y + b_ref[...]
    if act == "relu":
        y = jnp.maximum(y, 0.0)
    elif act == "tanh":
        y = jnp.tanh(y)
    y_ref[...] = y.astype(y_ref.dtype)


def _scale_shift_act_kernel(y_ref, sc_ref, sh_ref, o_ref, *, act):
    o = y_ref[...] * sc_ref[...] + sh_ref[...]      # folded BN: one FMA / element
    if act == "relu":
        o = jnp.maximum(o, 0.0)
    elif act == "tanh":
        o = jnp.tanh(o)
    o_ref[...] = o.astype(o_ref.dtype)


_PARALLEL = pltpu.CompilerParams(dimension_semantics=("parallel",))


# ----------------------------- pallas_call wrappers -----------------------------
def gemm_with_stats(patches, w_pad, tm):
    mp, k = patches.shape
    cp = w_pad.shape[1]
    nmt = mp // tm
    return pl.pallas_call(
        _gemm_stats_kernel,
        out_shape=(jax.ShapeDtypeStruct((mp, cp), jnp.float32),
                   jax.ShapeDtypeStruct((nmt, 8, cp), jnp.float32)),
        grid=(nmt,),
        in_specs=[pl.BlockSpec((tm, k), lambda i: (i, 0)),
                  pl.BlockSpec((k, cp), lambda i: (0, 0))],
        out_specs=(pl.BlockSpec((tm, cp), lambda i: (i, 0)),
                   pl.BlockSpec((1, 8, cp), lambda i: (i, 0, 0))),
        compiler_params=_PARALLEL,
    )(patches, w_pad)


def gemm_bias_act(patches, w_pad, bias_pad, tm, act):
    mp, k = patches.shape
    cp = w_pad.shape[1]
    nmt = mp // tm
    kernel = functools.partial(_gemm_bias_act_kernel, act=act)
    return pl.pallas_call(
        kernel,
        out_shape=jax.ShapeDtypeStruct((mp, cp), jnp.float32),
        grid=(nmt,),
        in_specs=[pl.BlockSpec((tm, k), lambda i: (i, 0)),
                  pl.BlockSpec((k, cp), lambda i: (0, 0)),
                  pl.BlockSpec((1, cp), lambda i: (0, 0))],
        out_specs=pl.BlockSpec((tm, cp), lambda i: (i, 0)),
        compiler_params=_PARALLEL,
    )(patches, w_pad, bias_pad)


def apply_scale_shift_act(y, scale, shift, tm, act):
    mp, cp = y.shape
    nmt = mp // tm
    kernel = functools.partial(_scale_shift_act_kernel, act=act)
    return pl.pallas_call(
        kernel,
        out_shape=jax.ShapeDtypeStruct((mp, cp), jnp.float32),
        grid=(nmt,),
        in_specs=[pl.BlockSpec((tm, cp), lambda i: (i, 0)),
                  pl.BlockSpec((1, cp), lambda i: (0, 0)),
                  pl.BlockSpec((1, cp), lambda i: (0, 0))],
        out_specs=pl.BlockSpec((tm, cp), lambda i: (i, 0)),
        compiler_params=_PARALLEL,
    )(y, scale, shift)


# ----------------------------- JAX glue (im2col etc.) -----------------------------
def _im2col(x, k, stride, pad):
    # x: (N, C, H, W) -> (N*Ho*Wo, C*k*k), K ordered as (C, kh, kw)
    n, c, h, w = x.shape
    xp = jnp.pad(x, ((0, 0), (0, 0), (pad, pad), (pad, pad)))
    ho = (h + 2 * pad - k) // stride + 1
    wo = (w + 2 * pad - k) // stride + 1
    cols = []
    for kh in range(k):
        for kw in range(k):
            cols.append(xp[:, :, kh:kh + stride * ho:stride, kw:kw + stride * wo:stride])
    p = jnp.stack(cols, axis=-1)               # (N, C, Ho, Wo, k*k)
    p = jnp.transpose(p, (0, 2, 3, 1, 4))      # (N, Ho, Wo, C, k*k)
    return p.reshape(n * ho * wo, c * k * k), (n, ho, wo)


def conv2d_layer(x, w, b, gamma, beta, *, stride, pad, use_bn, act):
    # w: (Cout, Cin, k, k) -- PyTorch Conv2d layout
    cout, cin, k, _ = w.shape
    cp = _round_up(cout, LANES)
    patches, (n, ho, wo) = _im2col(x, k, stride, pad)
    m, kk = patches.shape
    mp, tm = _choose_tile(m)

    # bf16 MXU inputs (f32 accumulation inside the kernel); zero-pad M rows and
    # Cout columns (padded rows/cols contribute exact zeros to the BN stats).
    patches_p = jnp.pad(patches, ((0, mp - m), (0, 0))).astype(jnp.bfloat16)
    wm = jnp.pad(w.reshape(cout, kk).T, ((0, 0), (0, cp - cout))).astype(jnp.bfloat16)

    if use_bn:
        # conv bias intentionally dropped: exactly cancelled by BN mean subtraction
        y, partial = gemm_with_stats(patches_p, wm, tm)
        s = jnp.sum(partial, axis=0)                         # (8, Cp)
        mean = s[0] / m
        var = jnp.maximum(s[1] / m - mean * mean, 0.0)       # biased var (PyTorch train BN)
        gp = jnp.pad(gamma, (0, cp - cout))
        bp = jnp.pad(beta, (0, cp - cout))
        scale = (gp * jax.lax.rsqrt(var + EPS)).reshape(1, cp).astype(jnp.float32)
        shift = (bp - mean * scale[0]).reshape(1, cp).astype(jnp.float32)
        out = apply_scale_shift_act(y, scale, shift, tm, act)
    else:
        bias_p = jnp.pad(b, (0, cp - cout)).reshape(1, cp).astype(jnp.float32)
        out = gemm_bias_act(patches_p, wm, bias_p, tm, act)

    out = out[:m, :cout]
    return out.reshape(n, ho, wo, cout).transpose(0, 3, 1, 2)


def convtranspose2d_layer(x, w, b, gamma, beta, *, stride, pad, use_bn, act):
    # w: (Cin, Cout, k, k) -- PyTorch ConvTranspose2d layout.
    # ConvT(stride s, pad p) == Conv(stride 1, pad k-1-p) on an s-dilated input
    # with spatially flipped / transposed weights.
    cin, cout, k, _ = w.shape
    n, c, h, wd_ = x.shape
    hd = (h - 1) * stride + 1
    wdl = (wd_ - 1) * stride + 1
    xd = jnp.zeros((n, c, hd, wdl), x.dtype).at[:, :, ::stride, ::stride].set(x)
    p_eff = k - 1 - pad
    w_conv = jnp.transpose(w[:, :, ::-1, ::-1], (1, 0, 2, 3))  # (Cout, Cin, k, k)
    return conv2d_layer(xd, w_conv, b, gamma, beta,
                        stride=1, pad=p_eff, use_bn=use_bn, act=act)


# ----------------------------- parameters -----------------------------
def _uniform(key, shape, scale):
    return jax.random.uniform(key, shape, jnp.float32, -scale, scale)


def init_params(key):
    enc_cfg = [(3, 16), (16, 32), (32, 64), (64, 128)]
    dec_cfg = [(128, 64), (64, 32), (32, 16), (16, 3)]
    k = 4
    params = {"enc": [], "dec": []}
    for cin, cout in enc_cfg:
        key, k1, k2 = jax.random.split(key, 3)
        s = 1.0 / float(jnp.sqrt(cin * k * k))
        params["enc"].append({
            "w": _uniform(k1, (cout, cin, k, k), s),      # Conv2d weight layout
            "b": _uniform(k2, (cout,), s),                # unused in fwd (BN cancels it)
            "gamma": jnp.ones((cout,), jnp.float32),
            "beta": jnp.zeros((cout,), jnp.float32),
        })
    for cin, cout in dec_cfg:
        key, k1, k2 = jax.random.split(key, 3)
        s = 1.0 / float(jnp.sqrt(cin * k * k))
        params["dec"].append({
            "w": _uniform(k1, (cin, cout, k, k), s),      # ConvTranspose2d weight layout
            "b": _uniform(k2, (cout,), s),
            "gamma": jnp.ones((cout,), jnp.float32),
            "beta": jnp.zeros((cout,), jnp.float32),
        })
    return params


# ----------------------------- full forward -----------------------------
def autoencoder_forward(x, params):
    h = x
    # encoder: 4 x [Conv(4, s2, p1) + BN(train batch stats) + ReLU]
    for p in params["enc"]:
        h = conv2d_layer(h, p["w"], p["b"], p["gamma"], p["beta"],
                         stride=2, pad=1, use_bn=True, act="relu")
    # decoder: 3 x [ConvT(4, s2, p1) + BN + ReLU], then ConvT + Tanh
    for i, p in enumerate(params["dec"]):
        last = (i == len(params["dec"]) - 1)
        h = convtranspose2d_layer(h, p["w"], p["b"], p["gamma"], p["beta"],
                                  stride=2, pad=1,
                                  use_bn=not last,
                                  act="tanh" if last else "relu")
    return h


if __name__ == "__main__":
    key = jax.random.PRNGKey(0)
    kx, kp = jax.random.split(key)
    x = jax.random.normal(kx, (2, 3, 16, 16), jnp.float32)   # NCHW, like PyTorch
    params = init_params(kp)

    fwd = jax.jit(autoencoder_forward)
    out = fwd(x, params)
    out = jax.block_until_ready(out)

    assert out.shape == (2, 3, 16, 16), out.shape
    assert out.dtype == jnp.float32
    assert bool(jnp.all(jnp.isfinite(out)))
    assert bool(jnp.all(jnp.abs(out) <= 1.0 + 1e-6))  # tanh range
    print("KERNEL_OK")
</pallas_src>

<mosaic_0001>
module attributes {stable_mosaic.version = 11 : i64} {
  func.func @_gemm_stats_kernel(%arg0: i32, %arg1: memref<128x48xbf16, #tpu.memory_space<vmem>>, %arg2: memref<48x128xbf16, #tpu.memory_space<vmem>>, %arg3: memref<128x128xf32, #tpu.memory_space<vmem>>, %arg4: memref<1x8x128xf32, #tpu.memory_space<vmem>>) attributes {dimension_semantics = [#tpu.dimension_semantics<parallel>], iteration_bounds = array<i64: 1>, scalar_prefetch = 0 : i64, scratch_operands = 0 : i64, tpu.core_type = #tpu.core_type<tc>, window_params = [{transform_indices = @transform_0, window_bounds = array<i64: 128, 48>}, {pipeline_mode = #tpu.pipeline_mode<synchronous>, transform_indices = @transform_1, window_bounds = array<i64: 48, 128>}, {transform_indices = @transform_2, window_bounds = array<i64: 128, 128>}, {transform_indices = @transform_3, window_bounds = array<i64: 1, 8, 128>}]} {
    %c0 = arith.constant 0 : index
    %c0_0 = arith.constant 0 : index
    %0 = vector.load %arg1[%c0, %c0_0] : memref<128x48xbf16, #tpu.memory_space<vmem>>, vector<128x48xbf16>
    %c0_1 = arith.constant 0 : index
    %c0_2 = arith.constant 0 : index
    %1 = vector.load %arg2[%c0_1, %c0_2] : memref<48x128xbf16, #tpu.memory_space<vmem>>, vector<48x128xbf16>
    %cst = arith.constant dense<0.000000e+00> : vector<128x128xf32>
    %2 = tpu.matmul %0, %1, %cst {dimension_numbers = #tpu.dot_dimension_numbers<[1], [0], [0], [1], [0, 0, 1, 1], [], []>} : vector<128x48xbf16>, vector<48x128xbf16>, vector<128x128xf32> -> vector<128x128xf32>
    %c0_3 = arith.constant 0 : index
    %c0_4 = arith.constant 0 : index
    %3 = vector.load %arg3[%c0_3, %c0_4] : memref<128x128xf32, #tpu.memory_space<vmem>>, vector<128x128xf32>
    tpu.vector_store %arg3[%c0_3, %c0_4], %2 {strides = array<i32>} : memref<128x128xf32, #tpu.memory_space<vmem>>, vector<128x128xf32>,
    %cst_5 = arith.constant dense<0.000000e+00> : vector<128xf32>
    %4 = vector.multi_reduction <add>, %2, %cst_5 [0] : vector<128x128xf32> to vector<128xf32>
    %5 = vector.shape_cast %4 : vector<128xf32> to vector<1x128xf32>
    %6 = arith.mulf %2, %2 : vector<128x128xf32>
    %cst_6 = arith.constant dense<0.000000e+00> : vector<128xf32>
    %7 = vector.multi_reduction <add>, %6, %cst_6 [0] : vector<128x128xf32> to vector<128xf32>
    %8 = vector.shape_cast %7 : vector<128xf32> to vector<1x128xf32>
    %cst_7 = arith.constant 0.000000e+00 : f32
    %9 = vector.broadcast %cst_7 : f32 to vector<6x128xf32>
    %10 = tpu.concatenate %5, %8, %9 in 0 : vector<1x128xf32>, vector<1x128xf32>, vector<6x128xf32> -> vector<8x128xf32>
    %11 = vector.shape_cast %10 : vector<8x128xf32> to vector<1x8x128xf32>
    %c0_8 = arith.constant 0 : index
    %c0_9 = arith.constant 0 : index
    %c0_10 = arith.constant 0 : index
    %12 = vector.load %arg4[%c0_8, %c0_9, %c0_10] : memref<1x8x128xf32, #tpu.memory_space<vmem>>, vector<1x8x128xf32>
    tpu.vector_store %arg4[%c0_8, %c0_9, %c0_10], %11 {strides = array<i32>} : memref<1x8x128xf32, #tpu.memory_space<vmem>>, vector<1x8x128xf32>,
    return
  }
  func.func @transform_0(%arg0: i32) -> (i32, i32) {
    %c0_i32 = arith.constant 0 : i32
    %c0_i32_0 = arith.constant 0 : i32
    return %arg0, %c0_i32 : i32, i32
  }
  func.func @transform_1(%arg0: i32) -> (i32, i32) {
    %c0_i32 = arith.constant 0 : i32
    %c0_i32_0 = arith.constant 0 : i32
    %c0_i32_1 = arith.constant 0 : i32
    return %c0_i32, %c0_i32_0 : i32, i32
  }
  func.func @transform_2(%arg0: i32) -> (i32, i32) {
    %c0_i32 = arith.constant 0 : i32
    %c0_i32_0 = arith.constant 0 : i32
    return %arg0, %c0_i32 : i32, i32
  }
  func.func @transform_3(%arg0: i32) -> (i32, i32, i32) {
    %c0_i32 = arith.constant 0 : i32
    %c0_i32_0 = arith.constant 0 : i32
    %c0_i32_1 = arith.constant 0 : i32
    return %arg0, %c0_i32, %c0_i32_0 : i32, i32, i32
  }
}

module attributes {stable_mosaic.version = 11 : i64} {
  func.func @_scale_shift_act_kernel(%arg0: i32, %arg1: memref<128x128xf32, #tpu.memory_space<vmem>>, %arg2: memref<1x128xf32, #tpu.memory_space<vmem>>, %arg3: memref<1x128xf32, #tpu.memory_space<vmem>>, %arg4: memref<128x128xf32, #tpu.memory_space<vmem>>) attributes {dimension_semantics = [#tpu.dimension_semantics<parallel>], iteration_bounds = array<i64: 1>, scalar_prefetch = 0 : i64, scratch_operands = 0 : i64, tpu.core_type = #tpu.core_type<tc>, window_params = [{transform_indices = @transform_0, window_bounds = array<i64: 128, 128>}, {pipeline_mode = #tpu.pipeline_mode<synchronous>, transform_indices = @transform_1, window_bounds = array<i64: 1, 128>}, {pipeline_mode = #tpu.pipeline_mode<synchronous>, transform_indices = @transform_2, window_bounds = array<i64: 1, 128>}, {transform_indices = @transform_3, window_bounds = array<i64: 128, 128>}]} {
    %c0 = arith.constant 0 : index
    %c0_0 = arith.constant 0 : index
    %0 = vector.load %arg1[%c0, %c0_0] : memref<128x128xf32, #tpu.memory_space<vmem>>, vector<128x128xf32>
    %c0_1 = arith.constant 0 : index
    %c0_2 = arith.constant 0 : index
    %1 = vector.load %arg2[%c0_1, %c0_2] : memref<1x128xf32, #tpu.memory_space<vmem>>, vector<1x128xf32>
    %2 = vector.broadcast %1 : vector<1x128xf32> to vector<128x128xf32>
    %3 = arith.mulf %0, %2 : vector<128x128xf32>
    %c0_3 = arith.constant 0 : index
    %c0_4 = arith.constant 0 : index
    %4 = vector.load %arg3[%c0_3, %c0_4] : memref<1x128xf32, #tpu.memory_space<vmem>>, vector<1x128xf32>
    %5 = vector.broadcast %4 : vector<1x128xf32> to vector<128x128xf32>
    %6 = arith.addf %3, %5 : vector<128x128xf32>
    %cst = arith.constant 0.000000e+00 : f32
    %7 = vector.broadcast %cst : f32 to vector<128x128xf32>
    %8 = arith.maximumf %6, %7 : vector<128x128xf32>
    %c0_5 = arith.constant 0 : index
    %c0_6 = arith.constant 0 : index
    %9 = vector.load %arg4[%c0_5, %c0_6] : memref<128x128xf32, #tpu.memory_space<vmem>>, vector<128x128xf32>
    tpu.vector_store %arg4[%c0_5, %c0_6], %8 {strides = array<i32>} : memref<128x128xf32, #tpu.memory_space<vmem>>, vector<128x128xf32>,
    return
  }
  func.func @transform_0(%arg0: i32) -> (i32, i32) {
    %c0_i32 = arith.constant 0 : i32
    %c0_i32_0 = arith.constant 0 : i32
    return %arg0, %c0_i32 : i32, i32
  }
  func.func @transform_1(%arg0: i32) -> (i32, i32) {
    %c0_i32 = arith.constant 0 : i32
    %c0_i32_0 = arith.constant 0 : i32
    %c0_i32_1 = arith.constant 0 : i32
    return %c0_i32, %c0_i32_0 : i32, i32
  }
  func.func @transform_2(%arg0: i32) -> (i32, i32) {
    %c0_i32 = arith.constant 0 : i32
    %c0_i32_0 = arith.constant 0 : i32
    %c0_i32_1 = arith.constant 0 : i32
    return %c0_i32, %c0_i32_0 : i32, i32
  }
  func.func @transform_3(%arg0: i32) -> (i32, i32) {
    %c0_i32 = arith.constant 0 : i32
    %c0_i32_0 = arith.constant 0 : i32
    return %arg0, %c0_i32 : i32, i32
  }
}

module attributes {stable_mosaic.version = 11 : i64} {
  func.func @_gemm_stats_kernel(%arg0: i32, %arg1: memref<32x256xbf16, #tpu.memory_space<vmem>>, %arg2: memref<256x128xbf16, #tpu.memory_space<vmem>>, %arg3: memref<32x128xf32, #tpu.memory_space<vmem>>, %arg4: memref<1x8x128xf32, #tpu.memory_space<vmem>>) attributes {dimension_semantics = [#tpu.dimension_semantics<parallel>], iteration_bounds = array<i64: 1>, scalar_prefetch = 0 : i64, scratch_operands = 0 : i64, tpu.core_type = #tpu.core_type<tc>, window_params = [{transform_indices = @transform_0, window_bounds = array<i64: 32, 256>}, {pipeline_mode = #tpu.pipeline_mode<synchronous>, transform_indices = @transform_1, window_bounds = array<i64: 256, 128>}, {transform_indices = @transform_2, window_bounds = array<i64: 32, 128>}, {transform_indices = @transform_3, window_bounds = array<i64: 1, 8, 128>}]} {
    %c0 = arith.constant 0 : index
    %c0_0 = arith.constant 0 : index
    %0 = vector.load %arg1[%c0, %c0_0] : memref<32x256xbf16, #tpu.memory_space<vmem>>, vector<32x256xbf16>
    %c0_1 = arith.constant 0 : index
    %c0_2 = arith.constant 0 : index
    %1 = vector.load %arg2[%c0_1, %c0_2] : memref<256x128xbf16, #tpu.memory_space<vmem>>, vector<256x128xbf16>
    %cst = arith.constant dense<0.000000e+00> : vector<32x128xf32>
    %2 = tpu.matmul %0, %1, %cst {dimension_numbers = #tpu.dot_dimension_numbers<[1], [0], [0], [1], [0, 0, 1, 1], [], []>} : vector<32x256xbf16>, vector<256x128xbf16>, vector<32x128xf32> -> vector<32x128xf32>
    %c0_3 = arith.constant 0 : index
    %c0_4 = arith.constant 0 : index
    %3 = vector.load %arg3[%c0_3, %c0_4] : memref<32x128xf32, #tpu.memory_space<vmem>>, vector<32x128xf32>
    tpu.vector_store %arg3[%c0_3, %c0_4], %2 {strides = array<i32>} : memref<32x128xf32, #tpu.memory_space<vmem>>, vector<32x128xf32>,
    %cst_5 = arith.constant dense<0.000000e+00> : vector<128xf32>
    %4 = vector.multi_reduction <add>, %2, %cst_5 [0] : vector<32x128xf32> to vector<128xf32>
    %5 = vector.shape_cast %4 : vector<128xf32> to vector<1x128xf32>
    %6 = arith.mulf %2, %2 : vector<32x128xf32>
    %cst_6 = arith.constant dense<0.000000e+00> : vector<128xf32>
    %7 = vector.multi_reduction <add>, %6, %cst_6 [0] : vector<32x128xf32> to vector<128xf32>
    %8 = vector.shape_cast %7 : vector<128xf32> to vector<1x128xf32>
    %cst_7 = arith.constant 0.000000e+00 : f32
    %9 = vector.broadcast %cst_7 : f32 to vector<6x128xf32>
    %10 = tpu.concatenate %5, %8, %9 in 0 : vector<1x128xf32>, vector<1x128xf32>, vector<6x128xf32> -> vector<8x128xf32>
    %11 = vector.shape_cast %10 : vector<8x128xf32> to vector<1x8x128xf32>
    %c0_8 = arith.constant 0 : index
    %c0_9 = arith.constant 0 : index
    %c0_10 = arith.constant 0 : index
    %12 = vector.load %arg4[%c0_8, %c0_9, %c0_10] : memref<1x8x128xf32, #tpu.memory_space<vmem>>, vector<1x8x128xf32>
    tpu.vector_store %arg4[%c0_8, %c0_9, %c0_10], %11 {strides = array<i32>} : memref<1x8x128xf32, #tpu.memory_space<vmem>>, vector<1x8x128xf32>,
    return
  }
  func.func @transform_0(%arg0: i32) -> (i32, i32) {
    %c0_i32 = arith.constant 0 : i32
    %c0_i32_0 = arith.constant 0 : i32
    return %arg0, %c0_i32 : i32, i32
  }
  func.func @transform_1(%arg0: i32) -> (i32, i32) {
    %c0_i32 = arith.constant 0 : i32
    %c0_i32_0 = arith.constant 0 : i32
    %c0_i32_1 = arith.constant 0 : i32
    return %c0_i32, %c0_i32_0 : i32, i32
  }
  func.func @transform_2(%arg0: i32) -> (i32, i32) {
    %c0_i32 = arith.constant 0 : i32
    %c0_i32_0 = arith.constant 0 : i32
    return %arg0, %c0_i32 : i32, i32
  }
  func.func @transform_3(%arg0: i32) -> (i32, i32, i32) {
    %c0_i32 = arith.constant 0 : i32
    %c0_i32_0 = arith.constant 0 : i32
    %c0_i32_1 = arith.constant 0 : i32
    return %arg0, %c0_i32, %c0_i32_0 : i32, i32, i32
  }
}

module attributes {stable_mosaic.version = 11 : i64} {
  func.func @_scale_shift_act_kernel(%arg0: i32, %arg1: memref<32x128xf32, #tpu.memory_space<vmem>>, %arg2: memref<1x128xf32, #tpu.memory_space<vmem>>, %arg3: memref<1x128xf32, #tpu.memory_space<vmem>>, %arg4: memref<32x128xf32, #tpu.memory_space<vmem>>) attributes {dimension_semantics = [#tpu.dimension_semantics<parallel>], iteration_bounds = array<i64: 1>, scalar_prefetch = 0 : i64, scratch_operands = 0 : i64, tpu.core_type = #tpu.core_type<tc>, window_params = [{transform_indices = @transform_0, window_bounds = array<i64: 32, 128>}, {pipeline_mode = #tpu.pipeline_mode<synchronous>, transform_indices = @transform_1, window_bounds = array<i64: 1, 128>}, {pipeline_mode = #tpu.pipeline_mode<synchronous>, transform_indices = @transform_2, window_bounds = array<i64: 1, 128>}, {transform_indices = @transform_3, window_bounds = array<i64: 32, 128>}]} {
    %c0 = arith.constant 0 : index
    %c0_0 = arith.constant 0 : index
    %0 = vector.load %arg1[%c0, %c0_0] : memref<32x128xf32, #tpu.memory_space<vmem>>, vector<32x128xf32>
    %c0_1 = arith.constant 0 : index
    %c0_2 = arith.constant 0 : index
    %1 = vector.load %arg2[%c0_1, %c0_2] : memref<1x128xf32, #tpu.memory_space<vmem>>, vector<1x128xf32>
    %2 = vector.broadcast %1 : vector<1x128xf32> to vector<32x128xf32>
    %3 = arith.mulf %0, %2 : vector<32x128xf32>
    %c0_3 = arith.constant 0 : index
    %c0_4 = arith.constant 0 : index
    %4 = vector.load %arg3[%c0_3, %c0_4] : memref<1x128xf32, #tpu.memory_space<vmem>>, vector<1x128xf32>
    %5 = vector.broadcast %4 : vector<1x128xf32> to vector<32x128xf32>
    %6 = arith.addf %3, %5 : vector<32x128xf32>
    %cst = arith.constant 0.000000e+00 : f32
    %7 = vector.broadcast %cst : f32 to vector<32x128xf32>
    %8 = arith.maximumf %6, %7 : vector<32x128xf32>
    %c0_5 = arith.constant 0 : index
    %c0_6 = arith.constant 0 : index
    %9 = vector.load %arg4[%c0_5, %c0_6] : memref<32x128xf32, #tpu.memory_space<vmem>>, vector<32x128xf32>
    tpu.vector_store %arg4[%c0_5, %c0_6], %8 {strides = array<i32>} : memref<32x128xf32, #tpu.memory_space<vmem>>, vector<32x128xf32>,
    return
  }
  func.func @transform_0(%arg0: i32) -> (i32, i32) {
    %c0_i32 = arith.constant 0 : i32
    %c0_i32_0 = arith.constant 0 : i32
    return %arg0, %c0_i32 : i32, i32
  }
  func.func @transform_1(%arg0: i32) -> (i32, i32) {
    %c0_i32 = arith.constant 0 : i32
    %c0_i32_0 = arith.constant 0 : i32
    %c0_i32_1 = arith.constant 0 : i32
    return %c0_i32, %c0_i32_0 : i32, i32
  }
  func.func @transform_2(%arg0: i32) -> (i32, i32) {
    %c0_i32 = arith.constant 0 : i32
    %c0_i32_0 = arith.constant 0 : i32
    %c0_i32_1 = arith.constant 0 : i32
    return %c0_i32, %c0_i32_0 : i32, i32
  }
  func.func @transform_3(%arg0: i32) -> (i32, i32) {
    %c0_i32 = arith.constant 0 : i32
    %c0_i32_0 = arith.constant 0 : i32
    return %arg0, %c0_i32 : i32, i32
  }
}

module attributes {stable_mosaic.version = 11 : i64} {
  func.func @_gemm_stats_kernel(%arg0: i32, %arg1: memref<8x512xbf16, #tpu.memory_space<vmem>>, %arg2: memref<512x128xbf16, #tpu.memory_space<vmem>>, %arg3: memref<8x128xf32, #tpu.memory_space<vmem>>, %arg4: memref<1x8x128xf32, #tpu.memory_space<vmem>>) attributes {dimension_semantics = [#tpu.dimension_semantics<parallel>], iteration_bounds = array<i64: 1>, scalar_prefetch = 0 : i64, scratch_operands = 0 : i64, tpu.core_type = #tpu.core_type<tc>, window_params = [{transform_indices = @transform_0, window_bounds = array<i64: 8, 512>}, {pipeline_mode = #tpu.pipeline_mode<synchronous>, transform_indices = @transform_1, window_bounds = array<i64: 512, 128>}, {transform_indices = @transform_2, window_bounds = array<i64: 8, 128>}, {transform_indices = @transform_3, window_bounds = array<i64: 1, 8, 128>}]} {
    %c0 = arith.constant 0 : index
    %c0_0 = arith.constant 0 : index
    %0 = vector.load %arg1[%c0, %c0_0] : memref<8x512xbf16, #tpu.memory_space<vmem>>, vector<8x512xbf16>
    %c0_1 = arith.constant 0 : index
    %c0_2 = arith.constant 0 : index
    %1 = vector.load %arg2[%c0_1, %c0_2] : memref<512x128xbf16, #tpu.memory_space<vmem>>, vector<512x128xbf16>
    %cst = arith.constant dense<0.000000e+00> : vector<8x128xf32>
    %2 = tpu.matmul %0, %1, %cst {dimension_numbers = #tpu.dot_dimension_numbers<[1], [0], [0], [1], [0, 0, 1, 1], [], []>} : vector<8x512xbf16>, vector<512x128xbf16>, vector<8x128xf32> -> vector<8x128xf32>
    %c0_3 = arith.constant 0 : index
    %c0_4 = arith.constant 0 : index
    %3 = vector.load %arg3[%c0_3, %c0_4] : memref<8x128xf32, #tpu.memory_space<vmem>>, vector<8x128xf32>
    tpu.vector_store %arg3[%c0_3, %c0_4], %2 {strides = array<i32>} : memref<8x128xf32, #tpu.memory_space<vmem>>, vector<8x128xf32>,
    %cst_5 = arith.constant dense<0.000000e+00> : vector<128xf32>
    %4 = vector.multi_reduction <add>, %2, %cst_5 [0] : vector<8x128xf32> to vector<128xf32>
    %5 = vector.shape_cast %4 : vector<128xf32> to vector<1x128xf32>
    %6 = arith.mulf %2, %2 : vector<8x128xf32>
    %cst_6 = arith.constant dense<0.000000e+00> : vector<128xf32>
    %7 = vector.multi_reduction <add>, %6, %cst_6 [0] : vector<8x128xf32> to vector<128xf32>
    %8 = vector.shape_cast %7 : vector<128xf32> to vector<1x128xf32>
    %cst_7 = arith.constant 0.000000e+00 : f32
    %9 = vector.broadcast %cst_7 : f32 to vector<6x128xf32>
    %10 = tpu.concatenate %5, %8, %9 in 0 : vector<1x128xf32>, vector<1x128xf32>, vector<6x128xf32> -> vector<8x128xf32>
    %11 = vector.shape_cast %10 : vector<8x128xf32> to vector<1x8x128xf32>
    %c0_8 = arith.constant 0 : index
    %c0_9 = arith.constant 0 : index
    %c0_10 = arith.constant 0 : index
    %12 = vector.load %arg4[%c0_8, %c0_9, %c0_10] : memref<1x8x128xf32, #tpu.memory_space<vmem>>, vector<1x8x128xf32>
    tpu.vector_store %arg4[%c0_8, %c0_9, %c0_10], %11 {strides = array<i32>} : memref<1x8x128xf32, #tpu.memory_space<vmem>>, vector<1x8x128xf32>,
    return
  }
  func.func @transform_0(%arg0: i32) -> (i32, i32) {
    %c0_i32 = arith.constant 0 : i32
    %c0_i32_0 = arith.constant 0 : i32
    return %arg0, %c0_i32 : i32, i32
  }
  func.func @transform_1(%arg0: i32) -> (i32, i32) {
    %c0_i32 = arith.constant 0 : i32
    %c0_i32_0 = arith.constant 0 : i32
    %c0_i32_1 = arith.constant 0 : i32
    return %c0_i32, %c0_i32_0 : i32, i32
  }
  func.func @transform_2(%arg0: i32) -> (i32, i32) {
    %c0_i32 = arith.constant 0 : i32
    %c0_i32_0 = arith.constant 0 : i32
    return %arg0, %c0_i32 : i32, i32
  }
  func.func @transform_3(%arg0: i32) -> (i32, i32, i32) {
    %c0_i32 = arith.constant 0 : i32
    %c0_i32_0 = arith.constant 0 : i32
    %c0_i32_1 = arith.constant 0 : i32
    return %arg0, %c0_i32, %c0_i32_0 : i32, i32, i32
  }
}

module attributes {stable_mosaic.version = 11 : i64} {
  func.func @_scale_shift_act_kernel(%arg0: i32, %arg1: memref<8x128xf32, #tpu.memory_space<vmem>>, %arg2: memref<1x128xf32, #tpu.memory_space<vmem>>, %arg3: memref<1x128xf32, #tpu.memory_space<vmem>>, %arg4: memref<8x128xf32, #tpu.memory_space<vmem>>) attributes {dimension_semantics = [#tpu.dimension_semantics<parallel>], iteration_bounds = array<i64: 1>, scalar_prefetch = 0 : i64, scratch_operands = 0 : i64, tpu.core_type = #tpu.core_type<tc>, window_params = [{transform_indices = @transform_0, window_bounds = array<i64: 8, 128>}, {pipeline_mode = #tpu.pipeline_mode<synchronous>, transform_indices = @transform_1, window_bounds = array<i64: 1, 128>}, {pipeline_mode = #tpu.pipeline_mode<synchronous>, transform_indices = @transform_2, window_bounds = array<i64: 1, 128>}, {transform_indices = @transform_3, window_bounds = array<i64: 8, 128>}]} {
    %c0 = arith.constant 0 : index
    %c0_0 = arith.constant 0 : index
    %0 = vector.load %arg1[%c0, %c0_0] : memref<8x128xf32, #tpu.memory_space<vmem>>, vector<8x128xf32>
    %c0_1 = arith.constant 0 : index
    %c0_2 = arith.constant 0 : index
    %1 = vector.load %arg2[%c0_1, %c0_2] : memref<1x128xf32, #tpu.memory_space<vmem>>, vector<1x128xf32>
    %2 = vector.broadcast %1 : vector<1x128xf32> to vector<8x128xf32>
    %3 = arith.mulf %0, %2 : vector<8x128xf32>
    %c0_3 = arith.constant 0 : index
    %c0_4 = arith.constant 0 : index
    %4 = vector.load %arg3[%c0_3, %c0_4] : memref<1x128xf32, #tpu.memory_space<vmem>>, vector<1x128xf32>
    %5 = vector.broadcast %4 : vector<1x128xf32> to vector<8x128xf32>
    %6 = arith.addf %3, %5 : vector<8x128xf32>
    %cst = arith.constant 0.000000e+00 : f32
    %7 = vector.broadcast %cst : f32 to vector<8x128xf32>
    %8 = arith.maximumf %6, %7 : vector<8x128xf32>
    %c0_5 = arith.constant 0 : index
    %c0_6 = arith.constant 0 : index
    %9 = vector.load %arg4[%c0_5, %c0_6] : memref<8x128xf32, #tpu.memory_space<vmem>>, vector<8x128xf32>
    tpu.vector_store %arg4[%c0_5, %c0_6], %8 {strides = array<i32>} : memref<8x128xf32, #tpu.memory_space<vmem>>, vector<8x128xf32>,
    return
  }
  func.func @transform_0(%arg0: i32) -> (i32, i32) {
    %c0_i32 = arith.constant 0 : i32
    %c0_i32_0 = arith.constant 0 : i32
    return %arg0, %c0_i32 : i32, i32
  }
  func.func @transform_1(%arg0: i32) -> (i32, i32) {
    %c0_i32 = arith.constant 0 : i32
    %c0_i32_0 = arith.constant 0 : i32
    %c0_i32_1 = arith.constant 0 : i32
    return %c0_i32, %c0_i32_0 : i32, i32
  }
  func.func @transform_2(%arg0: i32) -> (i32, i32) {
    %c0_i32 = arith.constant 0 : i32
    %c0_i32_0 = arith.constant 0 : i32
    %c0_i32_1 = arith.constant 0 : i32
    return %c0_i32, %c0_i32_0 : i32, i32
  }
  func.func @transform_3(%arg0: i32) -> (i32, i32) {
    %c0_i32 = arith.constant 0 : i32
    %c0_i32_0 = arith.constant 0 : i32
    return %arg0, %c0_i32 : i32, i32
  }
}

module attributes {stable_mosaic.version = 11 : i64} {
  func.func @_gemm_stats_kernel(%arg0: i32, %arg1: memref<8x1024xbf16, #tpu.memory_space<vmem>>, %arg2: memref<1024x128xbf16, #tpu.memory_space<vmem>>, %arg3: memref<8x128xf32, #tpu.memory_space<vmem>>, %arg4: memref<1x8x128xf32, #tpu.memory_space<vmem>>) attributes {dimension_semantics = [#tpu.dimension_semantics<parallel>], iteration_bounds = array<i64: 1>, scalar_prefetch = 0 : i64, scratch_operands = 0 : i64, tpu.core_type = #tpu.core_type<tc>, window_params = [{transform_indices = @transform_0, window_bounds = array<i64: 8, 1024>}, {pipeline_mode = #tpu.pipeline_mode<synchronous>, transform_indices = @transform_1, window_bounds = array<i64: 1024, 128>}, {transform_indices = @transform_2, window_bounds = array<i64: 8, 128>}, {transform_indices = @transform_3, window_bounds = array<i64: 1, 8, 128>}]} {
    %c0 = arith.constant 0 : index
    %c0_0 = arith.constant 0 : index
    %0 = vector.load %arg1[%c0, %c0_0] : memref<8x1024xbf16, #tpu.memory_space<vmem>>, vector<8x1024xbf16>
    %c0_1 = arith.constant 0 : index
    %c0_2 = arith.constant 0 : index
    %1 = vector.load %arg2[%c0_1, %c0_2] : memref<1024x128xbf16, #tpu.memory_space<vmem>>, vector<1024x128xbf16>
    %cst = arith.constant dense<0.000000e+00> : vector<8x128xf32>
    %2 = tpu.matmul %0, %1, %cst {dimension_numbers = #tpu.dot_dimension_numbers<[1], [0], [0], [1], [0, 0, 1, 1], [], []>} : vector<8x1024xbf16>, vector<1024x128xbf16>, vector<8x128xf32> -> vector<8x128xf32>
    %c0_3 = arith.constant 0 : index
    %c0_4 = arith.constant 0 : index
    %3 = vector.load %arg3[%c0_3, %c0_4] : memref<8x128xf32, #tpu.memory_space<vmem>>, vector<8x128xf32>
    tpu.vector_store %arg3[%c0_3, %c0_4], %2 {strides = array<i32>} : memref<8x128xf32, #tpu.memory_space<vmem>>, vector<8x128xf32>,
    %cst_5 = arith.constant dense<0.000000e+00> : vector<128xf32>
    %4 = vector.multi_reduction <add>, %2, %cst_5 [0] : vector<8x128xf32> to vector<128xf32>
    %5 = vector.shape_cast %4 : vector<128xf32> to vector<1x128xf32>
    %6 = arith.mulf %2, %2 : vector<8x128xf32>
    %cst_6 = arith.constant dense<0.000000e+00> : vector<128xf32>
    %7 = vector.multi_reduction <add>, %6, %cst_6 [0] : vector<8x128xf32> to vector<128xf32>
    %8 = vector.shape_cast %7 : vector<128xf32> to vector<1x128xf32>
    %cst_7 = arith.constant 0.000000e+00 : f32
    %9 = vector.broadcast %cst_7 : f32 to vector<6x128xf32>
    %10 = tpu.concatenate %5, %8, %9 in 0 : vector<1x128xf32>, vector<1x128xf32>, vector<6x128xf32> -> vector<8x128xf32>
    %11 = vector.shape_cast %10 : vector<8x128xf32> to vector<1x8x128xf32>
    %c0_8 = arith.constant 0 : index
    %c0_9 = arith.constant 0 : index
    %c0_10 = arith.constant 0 : index
    %12 = vector.load %arg4[%c0_8, %c0_9, %c0_10] : memref<1x8x128xf32, #tpu.memory_space<vmem>>, vector<1x8x128xf32>
    tpu.vector_store %arg4[%c0_8, %c0_9, %c0_10], %11 {strides = array<i32>} : memref<1x8x128xf32, #tpu.memory_space<vmem>>, vector<1x8x128xf32>,
    return
  }
  func.func @transform_0(%arg0: i32) -> (i32, i32) {
    %c0_i32 = arith.constant 0 : i32
    %c0_i32_0 = arith.constant 0 : i32
    return %arg0, %c0_i32 : i32, i32
  }
  func.func @transform_1(%arg0: i32) -> (i32, i32) {
    %c0_i32 = arith.constant 0 : i32
    %c0_i32_0 = arith.constant 0 : i32
    %c0_i32_1 = arith.constant 0 : i32
    return %c0_i32, %c0_i32_0 : i32, i32
  }
  func.func @transform_2(%arg0: i32) -> (i32, i32) {
    %c0_i32 = arith.constant 0 : i32
    %c0_i32_0 = arith.constant 0 : i32
    return %arg0, %c0_i32 : i32, i32
  }
  func.func @transform_3(%arg0: i32) -> (i32, i32, i32) {
    %c0_i32 = arith.constant 0 : i32
    %c0_i32_0 = arith.constant 0 : i32
    %c0_i32_1 = arith.constant 0 : i32
    return %arg0, %c0_i32, %c0_i32_0 : i32, i32, i32
  }
}

module attributes {stable_mosaic.version = 11 : i64} {
  func.func @_gemm_stats_kernel(%arg0: i32, %arg1: memref<8x2048xbf16, #tpu.memory_space<vmem>>, %arg2: memref<2048x128xbf16, #tpu.memory_space<vmem>>, %arg3: memref<8x128xf32, #tpu.memory_space<vmem>>, %arg4: memref<1x8x128xf32, #tpu.memory_space<vmem>>) attributes {dimension_semantics = [#tpu.dimension_semantics<parallel>], iteration_bounds = array<i64: 1>, scalar_prefetch = 0 : i64, scratch_operands = 0 : i64, tpu.core_type = #tpu.core_type<tc>, window_params = [{transform_indices = @transform_0, window_bounds = array<i64: 8, 2048>}, {pipeline_mode = #tpu.pipeline_mode<synchronous>, transform_indices = @transform_1, window_bounds = array<i64: 2048, 128>}, {transform_indices = @transform_2, window_bounds = array<i64: 8, 128>}, {transform_indices = @transform_3, window_bounds = array<i64: 1, 8, 128>}]} {
    %c0 = arith.constant 0 : index
    %c0_0 = arith.constant 0 : index
    %0 = vector.load %arg1[%c0, %c0_0] : memref<8x2048xbf16, #tpu.memory_space<vmem>>, vector<8x2048xbf16>
    %c0_1 = arith.constant 0 : index
    %c0_2 = arith.constant 0 : index
    %1 = vector.load %arg2[%c0_1, %c0_2] : memref<2048x128xbf16, #tpu.memory_space<vmem>>, vector<2048x128xbf16>
    %cst = arith.constant dense<0.000000e+00> : vector<8x128xf32>
    %2 = tpu.matmul %0, %1, %cst {dimension_numbers = #tpu.dot_dimension_numbers<[1], [0], [0], [1], [0, 0, 1, 1], [], []>} : vector<8x2048xbf16>, vector<2048x128xbf16>, vector<8x128xf32> -> vector<8x128xf32>
    %c0_3 = arith.constant 0 : index
    %c0_4 = arith.constant 0 : index
    %3 = vector.load %arg3[%c0_3, %c0_4] : memref<8x128xf32, #tpu.memory_space<vmem>>, vector<8x128xf32>
    tpu.vector_store %arg3[%c0_3, %c0_4], %2 {strides = array<i32>} : memref<8x128xf32, #tpu.memory_space<vmem>>, vector<8x128xf32>,
    %cst_5 = arith.constant dense<0.000000e+00> : vector<128xf32>
    %4 = vector.multi_reduction <add>, %2, %cst_5 [0] : vector<8x128xf32> to vector<128xf32>
    %5 = vector.shape_cast %4 : vector<128xf32> to vector<1x128xf32>
    %6 = arith.mulf %2, %2 : vector<8x128xf32>
    %cst_6 = arith.constant dense<0.000000e+00> : vector<128xf32>
    %7 = vector.multi_reduction <add>, %6, %cst_6 [0] : vector<8x128xf32> to vector<128xf32>
    %8 = vector.shape_cast %7 : vector<128xf32> to vector<1x128xf32>
    %cst_7 = arith.constant 0.000000e+00 : f32
    %9 = vector.broadcast %cst_7 : f32 to vector<6x128xf32>
    %10 = tpu.concatenate %5, %8, %9 in 0 : vector<1x128xf32>, vector<1x128xf32>, vector<6x128xf32> -> vector<8x128xf32>
    %11 = vector.shape_cast %10 : vector<8x128xf32> to vector<1x8x128xf32>
    %c0_8 = arith.constant 0 : index
    %c0_9 = arith.constant 0 : index
    %c0_10 = arith.constant 0 : index
    %12 = vector.load %arg4[%c0_8, %c0_9, %c0_10] : memref<1x8x128xf32, #tpu.memory_space<vmem>>, vector<1x8x128xf32>
    tpu.vector_store %arg4[%c0_8, %c0_9, %c0_10], %11 {strides = array<i32>} : memref<1x8x128xf32, #tpu.memory_space<vmem>>, vector<1x8x128xf32>,
    return
  }
  func.func @transform_0(%arg0: i32) -> (i32, i32) {
    %c0_i32 = arith.constant 0 : i32
    %c0_i32_0 = arith.constant 0 : i32
    return %arg0, %c0_i32 : i32, i32
  }
  func.func @transform_1(%arg0: i32) -> (i32, i32) {
    %c0_i32 = arith.constant 0 : i32
    %c0_i32_0 = arith.constant 0 : i32
    %c0_i32_1 = arith.constant 0 : i32
    return %c0_i32, %c0_i32_0 : i32, i32
  }
  func.func @transform_2(%arg0: i32) -> (i32, i32) {
    %c0_i32 = arith.constant 0 : i32
    %c0_i32_0 = arith.constant 0 : i32
    return %arg0, %c0_i32 : i32, i32
  }
  func.func @transform_3(%arg0: i32) -> (i32, i32, i32) {
    %c0_i32 = arith.constant 0 : i32
    %c0_i32_0 = arith.constant 0 : i32
    %c0_i32_1 = arith.constant 0 : i32
    return %arg0, %c0_i32, %c0_i32_0 : i32, i32, i32
  }
}

module attributes {stable_mosaic.version = 11 : i64} {
  func.func @_gemm_stats_kernel(%arg0: i32, %arg1: memref<32x1024xbf16, #tpu.memory_space<vmem>>, %arg2: memref<1024x128xbf16, #tpu.memory_space<vmem>>, %arg3: memref<32x128xf32, #tpu.memory_space<vmem>>, %arg4: memref<1x8x128xf32, #tpu.memory_space<vmem>>) attributes {dimension_semantics = [#tpu.dimension_semantics<parallel>], iteration_bounds = array<i64: 1>, scalar_prefetch = 0 : i64, scratch_operands = 0 : i64, tpu.core_type = #tpu.core_type<tc>, window_params = [{transform_indices = @transform_0, window_bounds = array<i64: 32, 1024>}, {pipeline_mode = #tpu.pipeline_mode<synchronous>, transform_indices = @transform_1, window_bounds = array<i64: 1024, 128>}, {transform_indices = @transform_2, window_bounds = array<i64: 32, 128>}, {transform_indices = @transform_3, window_bounds = array<i64: 1, 8, 128>}]} {
    %c0 = arith.constant 0 : index
    %c0_0 = arith.constant 0 : index
    %0 = vector.load %arg1[%c0, %c0_0] : memref<32x1024xbf16, #tpu.memory_space<vmem>>, vector<32x1024xbf16>
    %c0_1 = arith.constant 0 : index
    %c0_2 = arith.constant 0 : index
    %1 = vector.load %arg2[%c0_1, %c0_2] : memref<1024x128xbf16, #tpu.memory_space<vmem>>, vector<1024x128xbf16>
    %cst = arith.constant dense<0.000000e+00> : vector<32x128xf32>
    %2 = tpu.matmul %0, %1, %cst {dimension_numbers = #tpu.dot_dimension_numbers<[1], [0], [0], [1], [0, 0, 1, 1], [], []>} : vector<32x1024xbf16>, vector<1024x128xbf16>, vector<32x128xf32> -> vector<32x128xf32>
    %c0_3 = arith.constant 0 : index
    %c0_4 = arith.constant 0 : index
    %3 = vector.load %arg3[%c0_3, %c0_4] : memref<32x128xf32, #tpu.memory_space<vmem>>, vector<32x128xf32>
    tpu.vector_store %arg3[%c0_3, %c0_4], %2 {strides = array<i32>} : memref<32x128xf32, #tpu.memory_space<vmem>>, vector<32x128xf32>,
    %cst_5 = arith.constant dense<0.000000e+00> : vector<128xf32>
    %4 = vector.multi_reduction <add>, %2, %cst_5 [0] : vector<32x128xf32> to vector<128xf32>
    %5 = vector.shape_cast %4 : vector<128xf32> to vector<1x128xf32>
    %6 = arith.mulf %2, %2 : vector<32x128xf32>
    %cst_6 = arith.constant dense<0.000000e+00> : vector<128xf32>
    %7 = vector.multi_reduction <add>, %6, %cst_6 [0] : vector<32x128xf32> to vector<128xf32>
    %8 = vector.shape_cast %7 : vector<128xf32> to vector<1x128xf32>
    %cst_7 = arith.constant 0.000000e+00 : f32
    %9 = vector.broadcast %cst_7 : f32 to vector<6x128xf32>
    %10 = tpu.concatenate %5, %8, %9 in 0 : vector<1x128xf32>, vector<1x128xf32>, vector<6x128xf32> -> vector<8x128xf32>
    %11 = vector.shape_cast %10 : vector<8x128xf32> to vector<1x8x128xf32>
    %c0_8 = arith.constant 0 : index
    %c0_9 = arith.constant 0 : index
    %c0_10 = arith.constant 0 : index
    %12 = vector.load %arg4[%c0_8, %c0_9, %c0_10] : memref<1x8x128xf32, #tpu.memory_space<vmem>>, vector<1x8x128xf32>
    tpu.vector_store %arg4[%c0_8, %c0_9, %c0_10], %11 {strides = array<i32>} : memref<1x8x128xf32, #tpu.memory_space<vmem>>, vector<1x8x128xf32>,
    return
  }
  func.func @transform_0(%arg0: i32) -> (i32, i32) {
    %c0_i32 = arith.constant 0 : i32
    %c0_i32_0 = arith.constant 0 : i32
    return %arg0, %c0_i32 : i32, i32
  }
  func.func @transform_1(%arg0: i32) -> (i32, i32) {
    %c0_i32 = arith.constant 0 : i32
    %c0_i32_0 = arith.constant 0 : i32
    %c0_i32_1 = arith.constant 0 : i32
    return %c0_i32, %c0_i32_0 : i32, i32
  }
  func.func @transform_2(%arg0: i32) -> (i32, i32) {
    %c0_i32 = arith.constant 0 : i32
    %c0_i32_0 = arith.constant 0 : i32
    return %arg0, %c0_i32 : i32, i32
  }
  func.func @transform_3(%arg0: i32) -> (i32, i32, i32) {
    %c0_i32 = arith.constant 0 : i32
    %c0_i32_0 = arith.constant 0 : i32
    %c0_i32_1 = arith.constant 0 : i32
    return %arg0, %c0_i32, %c0_i32_0 : i32, i32, i32
  }
}

module attributes {stable_mosaic.version = 11 : i64} {
  func.func @_gemm_stats_kernel(%arg0: i32, %arg1: memref<128x512xbf16, #tpu.memory_space<vmem>>, %arg2: memref<512x128xbf16, #tpu.memory_space<vmem>>, %arg3: memref<128x128xf32, #tpu.memory_space<vmem>>, %arg4: memref<1x8x128xf32, #tpu.memory_space<vmem>>) attributes {dimension_semantics = [#tpu.dimension_semantics<parallel>], iteration_bounds = array<i64: 1>, scalar_prefetch = 0 : i64, scratch_operands = 0 : i64, tpu.core_type = #tpu.core_type<tc>, window_params = [{transform_indices = @transform_0, window_bounds = array<i64: 128, 512>}, {pipeline_mode = #tpu.pipeline_mode<synchronous>, transform_indices = @transform_1, window_bounds = array<i64: 512, 128>}, {transform_indices = @transform_2, window_bounds = array<i64: 128, 128>}, {transform_indices = @transform_3, window_bounds = array<i64: 1, 8, 128>}]} {
    %c0 = arith.constant 0 : index
    %c0_0 = arith.constant 0 : index
    %0 = vector.load %arg1[%c0, %c0_0] : memref<128x512xbf16, #tpu.memory_space<vmem>>, vector<128x512xbf16>
    %c0_1 = arith.constant 0 : index
    %c0_2 = arith.constant 0 : index
    %1 = vector.load %arg2[%c0_1, %c0_2] : memref<512x128xbf16, #tpu.memory_space<vmem>>, vector<512x128xbf16>
    %cst = arith.constant dense<0.000000e+00> : vector<128x128xf32>
    %2 = tpu.matmul %0, %1, %cst {dimension_numbers = #tpu.dot_dimension_numbers<[1], [0], [0], [1], [0, 0, 1, 1], [], []>} : vector<128x512xbf16>, vector<512x128xbf16>, vector<128x128xf32> -> vector<128x128xf32>
    %c0_3 = arith.constant 0 : index
    %c0_4 = arith.constant 0 : index
    %3 = vector.load %arg3[%c0_3, %c0_4] : memref<128x128xf32, #tpu.memory_space<vmem>>, vector<128x128xf32>
    tpu.vector_store %arg3[%c0_3, %c0_4], %2 {strides = array<i32>} : memref<128x128xf32, #tpu.memory_space<vmem>>, vector<128x128xf32>,
    %cst_5 = arith.constant dense<0.000000e+00> : vector<128xf32>
    %4 = vector.multi_reduction <add>, %2, %cst_5 [0] : vector<128x128xf32> to vector<128xf32>
    %5 = vector.shape_cast %4 : vector<128xf32> to vector<1x128xf32>
    %6 = arith.mulf %2, %2 : vector<128x128xf32>
    %cst_6 = arith.constant dense<0.000000e+00> : vector<128xf32>
    %7 = vector.multi_reduction <add>, %6, %cst_6 [0] : vector<128x128xf32> to vector<128xf32>
    %8 = vector.shape_cast %7 : vector<128xf32> to vector<1x128xf32>
    %cst_7 = arith.constant 0.000000e+00 : f32
    %9 = vector.broadcast %cst_7 : f32 to vector<6x128xf32>
    %10 = tpu.concatenate %5, %8, %9 in 0 : vector<1x128xf32>, vector<1x128xf32>, vector<6x128xf32> -> vector<8x128xf32>
    %11 = vector.shape_cast %10 : vector<8x128xf32> to vector<1x8x128xf32>
    %c0_8 = arith.constant 0 : index
    %c0_9 = arith.constant 0 : index
    %c0_10 = arith.constant 0 : index
    %12 = vector.load %arg4[%c0_8, %c0_9, %c0_10] : memref<1x8x128xf32, #tpu.memory_space<vmem>>, vector<1x8x128xf32>
    tpu.vector_store %arg4[%c0_8, %c0_9, %c0_10], %11 {strides = array<i32>} : memref<1x8x128xf32, #tpu.memory_space<vmem>>, vector<1x8x128xf32>,
    return
  }
  func.func @transform_0(%arg0: i32) -> (i32, i32) {
    %c0_i32 = arith.constant 0 : i32
    %c0_i32_0 = arith.constant 0 : i32
    return %arg0, %c0_i32 : i32, i32
  }
  func.func @transform_1(%arg0: i32) -> (i32, i32) {
    %c0_i32 = arith.constant 0 : i32
    %c0_i32_0 = arith.constant 0 : i32
    %c0_i32_1 = arith.constant 0 : i32
    return %c0_i32, %c0_i32_0 : i32, i32
  }
  func.func @transform_2(%arg0: i32) -> (i32, i32) {
    %c0_i32 = arith.constant 0 : i32
    %c0_i32_0 = arith.constant 0 : i32
    return %arg0, %c0_i32 : i32, i32
  }
  func.func @transform_3(%arg0: i32) -> (i32, i32, i32) {
    %c0_i32 = arith.constant 0 : i32
    %c0_i32_0 = arith.constant 0 : i32
    %c0_i32_1 = arith.constant 0 : i32
    return %arg0, %c0_i32, %c0_i32_0 : i32, i32, i32
  }
}

module attributes {stable_mosaic.version = 11 : i64} {
  func.func @_gemm_bias_act_kernel(%arg0: i32, %arg1: memref<512x256xbf16, #tpu.memory_space<vmem>>, %arg2: memref<256x128xbf16, #tpu.memory_space<vmem>>, %arg3: memref<1x128xf32, #tpu.memory_space<vmem>>, %arg4: memref<512x128xf32, #tpu.memory_space<vmem>>) attributes {dimension_semantics = [#tpu.dimension_semantics<parallel>], iteration_bounds = array<i64: 1>, scalar_prefetch = 0 : i64, scratch_operands = 0 : i64, tpu.core_type = #tpu.core_type<tc>, window_params = [{transform_indices = @transform_0, window_bounds = array<i64: 512, 256>}, {pipeline_mode = #tpu.pipeline_mode<synchronous>, transform_indices = @transform_1, window_bounds = array<i64: 256, 128>}, {pipeline_mode = #tpu.pipeline_mode<synchronous>, transform_indices = @transform_2, window_bounds = array<i64: 1, 128>}, {transform_indices = @transform_3, window_bounds = array<i64: 512, 128>}]} {
    %c0 = arith.constant 0 : index
    %c0_0 = arith.constant 0 : index
    %0 = vector.load %arg1[%c0, %c0_0] : memref<512x256xbf16, #tpu.memory_space<vmem>>, vector<512x256xbf16>
    %c0_1 = arith.constant 0 : index
    %c0_2 = arith.constant 0 : index
    %1 = vector.load %arg2[%c0_1, %c0_2] : memref<256x128xbf16, #tpu.memory_space<vmem>>, vector<256x128xbf16>
    %cst = arith.constant dense<0.000000e+00> : vector<512x128xf32>
    %2 = tpu.matmul %0, %1, %cst {dimension_numbers = #tpu.dot_dimension_numbers<[1], [0], [0], [1], [0, 0, 1, 1], [], []>} : vector<512x256xbf16>, vector<256x128xbf16>, vector<512x128xf32> -> vector<512x128xf32>
    %c0_3 = arith.constant 0 : index
    %c0_4 = arith.constant 0 : index
    %3 = vector.load %arg3[%c0_3, %c0_4] : memref<1x128xf32, #tpu.memory_space<vmem>>, vector<1x128xf32>
    %4 = vector.broadcast %3 : vector<1x128xf32> to vector<512x128xf32>
    %5 = arith.addf %2, %4 : vector<512x128xf32>
    %6 = math.tanh %5 : vector<512x128xf32>
    %c0_5 = arith.constant 0 : index
    %c0_6 = arith.constant 0 : index
    %7 = vector.load %arg4[%c0_5, %c0_6] : memref<512x128xf32, #tpu.memory_space<vmem>>, vector<512x128xf32>
    tpu.vector_store %arg4[%c0_5, %c0_6], %6 {strides = array<i32>} : memref<512x128xf32, #tpu.memory_space<vmem>>, vector<512x128xf32>,
    return
  }
  func.func @transform_0(%arg0: i32) -> (i32, i32) {
    %c0_i32 = arith.constant 0 : i32
    %c0_i32_0 = arith.constant 0 : i32
    return %arg0, %c0_i32 : i32, i32
  }
  func.func @transform_1(%arg0: i32) -> (i32, i32) {
    %c0_i32 = arith.constant 0 : i32
    %c0_i32_0 = arith.constant 0 : i32
    %c0_i32_1 = arith.constant 0 : i32
    return %c0_i32, %c0_i32_0 : i32, i32
  }
  func.func @transform_2(%arg0: i32) -> (i32, i32) {
    %c0_i32 = arith.constant 0 : i32
    %c0_i32_0 = arith.constant 0 : i32
    %c0_i32_1 = arith.constant 0 : i32
    return %c0_i32, %c0_i32_0 : i32, i32
  }
  func.func @transform_3(%arg0: i32) -> (i32, i32) {
    %c0_i32 = arith.constant 0 : i32
    %c0_i32_0 = arith.constant 0 : i32
    return %arg0, %c0_i32 : i32, i32
  }
}

</mosaic_0001>

<llo_original>
// kernel: autoencoder_forward.16
$region0: #{autoencoder_forward.16}
  #allocation0 [shape = 'u32[]', space=smem, size = 0x4, offset = 0x4, fixed_abs, tag = 'smem constant byte address 0x4 - core index']
  #allocation1 [shape = 'u32[72,128]{1,0:T(1,128)}', space=vmem, size = 0x9000, scoped, tag = 'internal scratch']
  %s0 = inlined_call_operand.vmem [shape: f32[128,128], index: 0, kind: input, shape index: {}]
  %s1 = inlined_call_operand.vmem [shape: f32[1,128], index: 1, kind: input, shape index: {}]
  %s2 = inlined_call_operand.vmem [shape: f32[1,128], index: 2, kind: input, shape index: {}]
  %s3 = inlined_call_operand.vmem [shape: f32[128,128], index: 3, kind: output, shape index: {}]
  %s4 = sld [smem:[#allocation0]]
  $region22: #{autoencoder_forward.16} parent=0
    _
  %s6 = ssub.s32 1, %s4
  %s7 = scalar_select 0, %s6, %s4
  // Predicated region
  $region2: #{autoencoder_forward.16} parent=0 // pred_check
    _
  $region3: #{autoencoder_forward.16} parent=0 // pred_check_branch
    %9 = sbr.rel (0) target = $region5
  $region4: #{autoencoder_forward.16} parent=0 // pred_region
    _
  $region5: #{autoencoder_forward.16} parent=0 // pred_fallthru
    _
  // Predicated region
  $region6: #{autoencoder_forward.16} parent=0 // pred_check
    _
  $region7: #{autoencoder_forward.16} parent=0 // pred_check_branch
    %11 = sbr.rel (0) target = $region9
  $region8: #{autoencoder_forward.16} parent=0 // pred_region
    _
  $region9: #{autoencoder_forward.16} parent=0 // pred_fallthru
    _
  // Predicated region
  $region10: #{autoencoder_forward.16} parent=0 // pred_check
    _
  $region11: #{autoencoder_forward.16} parent=0 // pred_check_branch
    %13 = sbr.rel (0) target = $region13
  $region12: #{autoencoder_forward.16} parent=0 // pred_region
    _
  $region13: #{autoencoder_forward.16} parent=0 // pred_fallthru
    _
  %v14 = vld [vmem:[%s0] sm:$0xff]
  %v15 = vld [vmem:[%s0 + $0x8] sm:$0xff]
  %v16 = vld [vmem:[%s0 + $0x10] sm:$0xff]
  %v17 = vld [vmem:[%s0 + $0x18] sm:$0xff]
  %v18 = vld [vmem:[%s0 + $0x20] sm:$0xff]
  %v19 = vld [vmem:[%s0 + $0x28] sm:$0xff]
  %v20 = vld [vmem:[%s0 + $0x30] sm:$0xff]
  %v21 = vld [vmem:[%s0 + $0x38] sm:$0xff]
  %v22 = vld [vmem:[%s0 + $0x40] sm:$0xff]
  %v23 = vld [vmem:[%s0 + $0x48] sm:$0xff]
  %v24 = vld [vmem:[%s0 + $0x50] sm:$0xff]
  %v25 = vld [vmem:[%s0 + $0x58] sm:$0xff]
  %v26 = vld [vmem:[%s0 + $0x60] sm:$0xff]
  %v27 = vld [vmem:[%s0 + $0x68] sm:$0xff]
  %v28 = vld [vmem:[%s0 + $0x70] sm:$0xff]
  %v29 = vld [vmem:[%s0 + $0x78] sm:$0xff]
  %v30 = vld [vmem:[%s1] sm:$0x1]
  %v32 = vperm.slane %v30, 0
  %v34 = vmul.f32 %v14, %v32
  %v35 = vmul.f32 %v15, %v32
  %v36 = vmul.f32 %v16, %v32
  %v37 = vmul.f32 %v17, %v32
  %v38 = vmul.f32 %v18, %v32
  %v39 = vmul.f32 %v19, %v32
  %v40 = vmul.f32 %v20, %v32
  %v41 = vmul.f32 %v21, %v32
  %v42 = vmul.f32 %v22, %v32
  %v43 = vmul.f32 %v23, %v32
  %v44 = vmul.f32 %v24, %v32
  %v45 = vmul.f32 %v25, %v32
  %v46 = vmul.f32 %v26, %v32
  %v47 = vmul.f32 %v27, %v32
  %v48 = vmul.f32 %v28, %v32
  %v49 = vmul.f32 %v29, %v32
  %v50 = vld [vmem:[%s2] sm:$0x1]
  %v52 = vperm.slane %v50, 0
  %v54 = vadd.f32 %v34, %v52
  %v55 = vadd.f32 %v35, %v52
  %v56 = vadd.f32 %v36, %v52
  %v57 = vadd.f32 %v37, %v52
  %v58 = vadd.f32 %v38, %v52
  %v59 = vadd.f32 %v39, %v52
  %v60 = vadd.f32 %v40, %v52
  %v61 = vadd.f32 %v41, %v52
  %v62 = vadd.f32 %v42, %v52
  %v63 = vadd.f32 %v43, %v52
  %v64 = vadd.f32 %v44, %v52
  %v65 = vadd.f32 %v45, %v52
  %v66 = vadd.f32 %v46, %v52
  %v67 = vadd.f32 %v47, %v52
  %v68 = vadd.f32 %v48, %v52
  %v69 = vadd.f32 %v49, %v52
  %v70 = vmax.f32 %v54, 0.0
  %v71 = vmax.f32 %v55, 0.0
  %v72 = vmax.f32 %v56, 0.0
  %v73 = vmax.f32 %v57, 0.0
  %v74 = vmax.f32 %v58, 0.0
  %v75 = vmax.f32 %v59, 0.0
  %v76 = vmax.f32 %v60, 0.0
  %v77 = vmax.f32 %v61, 0.0
  %v78 = vmax.f32 %v62, 0.0
  %v79 = vmax.f32 %v63, 0.0
  %v80 = vmax.f32 %v64, 0.0
  %v81 = vmax.f32 %v65, 0.0
  %v82 = vmax.f32 %v66, 0.0
  %v83 = vmax.f32 %v67, 0.0
  %v84 = vmax.f32 %v68, 0.0
  %v85 = vmax.f32 %v69, 0.0
  %86 = vst [vmem:[%s3] sm:$0xff] %v70
  %87 = vst [vmem:[%s3 + $0x8] sm:$0xff] %v71
  %88 = vst [vmem:[%s3 + $0x10] sm:$0xff] %v72
  %89 = vst [vmem:[%s3 + $0x18] sm:$0xff] %v73
  %90 = vst [vmem:[%s3 + $0x20] sm:$0xff] %v74
  %91 = vst [vmem:[%s3 + $0x28] sm:$0xff] %v75
  %92 = vst [vmem:[%s3 + $0x30] sm:$0xff] %v76
  %93 = vst [vmem:[%s3 + $0x38] sm:$0xff] %v77
  %94 = vst [vmem:[%s3 + $0x40] sm:$0xff] %v78
  %95 = vst [vmem:[%s3 + $0x48] sm:$0xff] %v79
  %96 = vst [vmem:[%s3 + $0x50] sm:$0xff] %v80
  %97 = vst [vmem:[%s3 + $0x58] sm:$0xff] %v81
  %98 = vst [vmem:[%s3 + $0x60] sm:$0xff] %v82
  %99 = vst [vmem:[%s3 + $0x68] sm:$0xff] %v83
  %100 = vst [vmem:[%s3 + $0x70] sm:$0xff] %v84
  %101 = vst [vmem:[%s3 + $0x78] sm:$0xff] %v85
  // Predicated region
  $region14: #{autoencoder_forward.16} parent=0 // pred_check
    _
  $region15: #{autoencoder_forward.16} parent=0 // pred_check_branch
    %103 = sbr.rel (0) target = $region17
  $region16: #{autoencoder_forward.16} parent=0 // pred_region
    _
  $region17: #{autoencoder_forward.16} parent=0 // pred_fallthru
    _
  // Predicated region
  $region18: #{autoencoder_forward.16} parent=0 // pred_check
    _
  $region19: #{autoencoder_forward.16} parent=0 // pred_check_branch
    %105 = sbr.rel (0) target = $region21
  $region20: #{autoencoder_forward.16} parent=0 // pred_region
    _
  $region21: #{autoencoder_forward.16} parent=0 // pred_fallthru
    _

// kernel: autoencoder_forward.15
$region0: #{autoencoder_forward.15}
  #allocation0 [shape = 'u32[]', space=smem, size = 0x4, offset = 0x4, fixed_abs, tag = 'smem constant byte address 0x4 - core index']
  #allocation1 [shape = 'u32[72,128]{1,0:T(1,128)}', space=vmem, size = 0x9000, scoped, tag = 'internal scratch']
  %s0 = inlined_call_operand.vmem [shape: bf16[128,48], index: 0, kind: input, shape index: {}]
  %s1 = inlined_call_operand.vmem [shape: bf16[48,128], index: 1, kind: input, shape index: {}]
  %s2 = inlined_call_operand.vmem [shape: f32[128,128], index: 2, kind: output, shape index: {0}]
  %s3 = inlined_call_operand.vmem [shape: f32[1,8,128], index: 3, kind: output, shape index: {1}]
  %4 = xla_tuple %s2, %s3
  %s5 = sld [smem:[#allocation0]]
  $region26: #{autoencoder_forward.15} parent=0
    _
  %s7 = ssub.s32 1, %s5
  %s8 = scalar_select 0, %s7, %s5
  // Predicated region
  $region2: #{autoencoder_forward.15} parent=0 // pred_check
    _
  $region3: #{autoencoder_forward.15} parent=0 // pred_check_branch
    %10 = sbr.rel (0) target = $region5
  $region4: #{autoencoder_forward.15} parent=0 // pred_region
    _
  $region5: #{autoencoder_forward.15} parent=0 // pred_fallthru
    _
  // Predicated region
  $region6: #{autoencoder_forward.15} parent=0 // pred_check
    _
  $region7: #{autoencoder_forward.15} parent=0 // pred_check_branch
    %12 = sbr.rel (0) target = $region9
  $region8: #{autoencoder_forward.15} parent=0 // pred_region
    _
  $region9: #{autoencoder_forward.15} parent=0 // pred_fallthru
    _
  %v14 = vld [vmem:[%s0] sm:$0xf]
  %v15 = vld [vmem:[%s0 + $0x4] sm:$0xf]
  %v16 = vld [vmem:[%s0 + $0x8] sm:$0xf]
  %v17 = vld [vmem:[%s0 + $0xc] sm:$0xf]
  %v18 = vld [vmem:[%s0 + $0x10] sm:$0xf]
  %v19 = vld [vmem:[%s0 + $0x14] sm:$0xf]
  %v20 = vld [vmem:[%s0 + $0x18] sm:$0xf]
  %v21 = vld [vmem:[%s0 + $0x1c] sm:$0xf]
  %v22 = vld [vmem:[%s0 + $0x20] sm:$0xf]
  %v23 = vld [vmem:[%s0 + $0x24] sm:$0xf]
  %v24 = vld [vmem:[%s0 + $0x28] sm:$0xf]
  %v25 = vld [vmem:[%s0 + $0x2c] sm:$0xf]
  %v26 = vld [vmem:[%s0 + $0x30] sm:$0xf]
  %v27 = vld [vmem:[%s0 + $0x34] sm:$0xf]
  %v28 = vld [vmem:[%s0 + $0x38] sm:$0xf]
  %v29 = vld [vmem:[%s0 + $0x3c] sm:$0xf]
  %v30 = vld [vmem:[%s1] sm:$0xf]
  %v31 = vld [vmem:[%s1 + $0x4] sm:$0xf]
  %v32 = vld [vmem:[%s1 + $0x8] sm:$0xf]
  %v33 = vld [vmem:[%s1 + $0xc] sm:$0xf]
  %v34 = vld [vmem:[%s1 + $0x10] sm:$0xf]
  %v35 = vld [vmem:[%s1 + $0x14] sm:$0xf]
  %v52 = vunpack.c.l.b16 %v14
  %v53 = vunpack.c.l.b16 %v15
  %v54 = vunpack.c.l.b16 %v16
  %v55 = vunpack.c.l.b16 %v17
  %v56 = vunpack.c.l.b16 %v18
  %v57 = vunpack.c.l.b16 %v19
  %v58 = vunpack.c.l.b16 %v20
  %v59 = vunpack.c.l.b16 %v21
  %v60 = vunpack.c.l.b16 %v22
  %v61 = vunpack.c.l.b16 %v23
  %v62 = vunpack.c.l.b16 %v24
  %v63 = vunpack.c.l.b16 %v25
  %v64 = vunpack.c.l.b16 %v26
  %v65 = vunpack.c.l.b16 %v27
  %v66 = vunpack.c.l.b16 %v28
  %v67 = vunpack.c.l.b16 %v29
  %v68 = vpack.c.b16 %v53, %v52
  %v69 = vpack.c.b16 %v55, %v54
  %v70 = vpack.c.b16 %v57, %v56
  %v71 = vpack.c.b16 %v59, %v58
  %v72 = vpack.c.b16 %v61, %v60
  %v73 = vpack.c.b16 %v63, %v62
  %v74 = vpack.c.b16 %v65, %v64
  %v75 = vpack.c.b16 %v67, %v66
  %v82 = vunpack.c.l.b16 %v30
  %v83 = vunpack.c.l.b16 %v31
  %v84 = vunpack.c.l.b16 %v32
  %v85 = vunpack.c.l.b16 %v33
  %v86 = vunpack.c.l.b16 %v34
  %v87 = vunpack.c.l.b16 %v35
  %v88 = vpack.c.b16 %v83, %v82
  %v89 = vpack.c.b16 %v85, %v84
  %v90 = vpack.c.b16 %v87, %v86
  %vm94 = vcmask 392192
  %v96 = vsel %vm94, %v68, 0
  %v99 = vsel %vm94, %v69, 0
  %v102 = vsel %vm94, %v70, 0
  %v105 = vsel %vm94, %v71, 0
  %v108 = vsel %vm94, %v72, 0
  %v111 = vsel %vm94, %v73, 0
  %v114 = vsel %vm94, %v74, 0
  %v117 = vsel %vm94, %v75, 0
  %119 = vmatpush.bf16.msra.mxu0 0
  %120 = vmatpush.bf16.msra.mxu0 0
  %121 = vmatpush.bf16.msra.mxu0 0
  %122 = vmatpush.bf16.msra.mxu0 0
  %123 = vmatpush.bf16.msra.mxu0 0
  %124 = vmatpush.bf16.msra.mxu0 %v90
  %125 = vmatpush.bf16.msra.mxu0 %v89
  %126 = vmatpush.bf16.msra.mxu0 %v88
  %127 = vmatmul.bf16.gmra.mxu0 %v96
  %v128 = vpop.f32.mrf.mxu0
  %v129 = vadd.f32 0.0, %v128
  %v130 = vpop.f32.mrf.mxu0
  %v131 = vadd.f32 0.0, %v130
  %132 = vmatmul.bf16.gmra.mxu0 %v99
  %v133 = vpop.f32.mrf.mxu0
  %v134 = vadd.f32 0.0, %v133
  %v135 = vpop.f32.mrf.mxu0
  %v136 = vadd.f32 0.0, %v135
  %137 = vmatmul.bf16.gmra.mxu0 %v102
  %v138 = vpop.f32.mrf.mxu0
  %v139 = vadd.f32 0.0, %v138
  %v140 = vpop.f32.mrf.mxu0
  %v141 = vadd.f32 0.0, %v140
  %142 = vmatmul.bf16.gmra.mxu0 %v105
  %v143 = vpop.f32.mrf.mxu0
  %v144 = vadd.f32 0.0, %v143
  %v145 = vpop.f32.mrf.mxu0
  %v146 = vadd.f32 0.0, %v145
  %147 = vmatmul.bf16.gmra.mxu0 %v108
  %v148 = vpop.f32.mrf.mxu0
  %v149 = vadd.f32 0.0, %v148
  %v150 = vpop.f32.mrf.mxu0
  %v151 = vadd.f32 0.0, %v150
  %152 = vmatmul.bf16.gmra.mxu0 %v111
  %v153 = vpop.f32.mrf.mxu0
  %v154 = vadd.f32 0.0, %v153
  %v155 = vpop.f32.mrf.mxu0
  %v156 = vadd.f32 0.0, %v155
  %157 = vmatmul.bf16.gmra.mxu0 %v114
  %v158 = vpop.f32.mrf.mxu0
  %v159 = vadd.f32 0.0, %v158
  %v160 = vpop.f32.mrf.mxu0
  %v161 = vadd.f32 0.0, %v160
  %162 = vmatmul.bf16.gmra.mxu0 %v117
  %v163 = vpop.f32.mrf.mxu0
  %v164 = vadd.f32 0.0, %v163
  %v165 = vpop.f32.mrf.mxu0
  %v166 = vadd.f32 0.0, %v165
  %167 = vdwg.mxu0
  %168 = vst [vmem:[%s2] sm:$0xff] %v129
  %169 = vst [vmem:[%s2 + $0x8] sm:$0xff] %v131
  %170 = vst [vmem:[%s2 + $0x10] sm:$0xff] %v134
  %171 = vst [vmem:[%s2 + $0x18] sm:$0xff] %v136
  %172 = vst [vmem:[%s2 + $0x20] sm:$0xff] %v139
  %173 = vst [vmem:[%s2 + $0x28] sm:$0xff] %v141
  %174 = vst [vmem:[%s2 + $0x30] sm:$0xff] %v144
  %175 = vst [vmem:[%s2 + $0x38] sm:$0xff] %v146
  %176 = vst [vmem:[%s2 + $0x40] sm:$0xff] %v149
  %177 = vst [vmem:[%s2 + $0x48] sm:$0xff] %v151
  %178 = vst [vmem:[%s2 + $0x50] sm:$0xff] %v154
  %179 = vst [vmem:[%s2 + $0x58] sm:$0xff] %v156
  %180 = vst [vmem:[%s2 + $0x60] sm:$0xff] %v159
  %181 = vst [vmem:[%s2 + $0x68] sm:$0xff] %v161
  %182 = vst [vmem:[%s2 + $0x70] sm:$0xff] %v164
  %183 = vst [vmem:[%s2 + $0x78] sm:$0xff] %v166
  %v184 = vadd.f32 %v129, %v131
  %v185 = vadd.f32 %v184, %v134
  %v186 = vadd.f32 %v185, %v136
  %v187 = vadd.f32 %v186, %v139
  %v188 = vadd.f32 %v187, %v141
  %v189 = vadd.f32 %v188, %v144
  %v190 = vadd.f32 %v189, %v146
  %v191 = vadd.f32 %v190, %v149
  %v192 = vadd.f32 %v191, %v151
  %v193 = vadd.f32 %v192, %v154
  %v194 = vadd.f32 %v193, %v156
  %v195 = vadd.f32 %v194, %v159
  %v196 = vadd.f32 %v195, %v161
  %v197 = vadd.f32 %v196, %v164
  %v198 = vadd.f32 %v197, %v166
  %v199 = vrot.slane %v198, 4
  %v200 = vadd.f32 %v198, %v199
  %v201 = vrot.slane %v200, 2
  %v202 = vadd.f32 %v200, %v201
  %v203 = vrot.slane %v202, 1
  %v204 = vadd.f32 %v202, %v203
  %v205 = vmul.f32 %v129, %v129
  %v206 = vmul.f32 %v131, %v131
  %v207 = vmul.f32 %v134, %v134
  %v208 = vmul.f32 %v136, %v136
  %v209 = vmul.f32 %v139, %v139
  %v210 = vmul.f32 %v141, %v141
  %v211 = vmul.f32 %v144, %v144
  %v212 = vmul.f32 %v146, %v146
  %v213 = vmul.f32 %v149, %v149
  %v214 = vmul.f32 %v151, %v151
  %v215 = vmul.f32 %v154, %v154
  %v216 = vmul.f32 %v156, %v156
  %v217 = vmul.f32 %v159, %v159
  %v218 = vmul.f32 %v161, %v161
  %v219 = vmul.f32 %v164, %v164
  %v220 = vmul.f32 %v166, %v166
  %v221 = vadd.f32 %v205, %v206
  %v222 = vadd.f32 %v221, %v207
  %v223 = vadd.f32 %v222, %v208
  %v224 = vadd.f32 %v223, %v209
  %v225 = vadd.f32 %v224, %v210
  %v226 = vadd.f32 %v225, %v211
  %v227 = vadd.f32 %v226, %v212
  %v228 = vadd.f32 %v227, %v213
  %v229 = vadd.f32 %v228, %v214
  %v230 = vadd.f32 %v229, %v215
  %v231 = vadd.f32 %v230, %v216
  %v232 = vadd.f32 %v231, %v217
  %v233 = vadd.f32 %v232, %v218
  %v234 = vadd.f32 %v233, %v219
  %v235 = vadd.f32 %v234, %v220
  %v236 = vrot.slane %v235, 4
  %v237 = vadd.f32 %v235, %v236
  %v238 = vrot.slane %v237, 2
  %v239 = vadd.f32 %v237, %v238
  %v240 = vrot.slane %v239, 1
  %v241 = vadd.f32 %v239, %v240
  %vm242 = vcmask 1040384
  %v243 = vsel %vm242, %v204, %v241
  %vm244 = vcmask 1041408
  %v245 = vsel %vm244, %v243, 0.0
  %246 = vst [vmem:[%s3] sm:$0xff] %v245
  // Predicated region
  $region10: #{autoencoder_forward.15} parent=0 // pred_check
    _
  $region11: #{autoencoder_forward.15} parent=0 // pred_check_branch
    %248 = sbr.rel (0) target = $region13
  $region12: #{autoencoder_forward.15} parent=0 // pred_region
    _
  $region13: #{autoencoder_forward.15} parent=0 // pred_fallthru
    _
  // Predicated region
  $region14: #{autoencoder_forward.15} parent=0 // pred_check
    _
  $region15: #{autoencoder_forward.15} parent=0 // pred_check_branch
    %250 = sbr.rel (0) target = $region17
  $region16: #{autoencoder_forward.15} parent=0 // pred_region
    _
  $region17: #{autoencoder_forward.15} parent=0 // pred_fallthru
    _
  // Predicated region
  $region18: #{autoencoder_forward.15} parent=0 // pred_check
    _
  $region19: #{autoencoder_forward.15} parent=0 // pred_check_branch
    %252 = sbr.rel (0) target = $region21
  $region20: #{autoencoder_forward.15} parent=0 // pred_region
    _
  $region21: #{autoencoder_forward.15} parent=0 // pred_fallthru
    _
  // Predicated region
  $region22: #{autoencoder_forward.15} parent=0 // pred_check
    _
  $region23: #{autoencoder_forward.15} parent=0 // pred_check_branch
    %254 = sbr.rel (0) target = $region25
  $region24: #{autoencoder_forward.15} parent=0 // pred_region
    _
  $region25: #{autoencoder_forward.15} parent=0 // pred_fallthru
    _

// kernel: autoencoder_forward.17
$region0: #{autoencoder_forward.17}
  #allocation0 [shape = 'u32[]', space=smem, size = 0x4, offset = 0x4, fixed_abs, tag = 'smem constant byte address 0x4 - core index']
  #allocation1 [shape = 'u32[72,128]{1,0:T(1,128)}', space=vmem, size = 0x9000, scoped, tag = 'internal scratch']
  %s0 = inlined_call_operand.vmem [shape: bf16[32,256], index: 0, kind: input, shape index: {}]
  %s1 = inlined_call_operand.vmem [shape: bf16[256,128], index: 1, kind: input, shape index: {}]
  %s2 = inlined_call_operand.vmem [shape: f32[32,128], index: 2, kind: output, shape index: {0}]
  %s3 = inlined_call_operand.vmem [shape: f32[1,8,128], index: 3, kind: output, shape index: {1}]
  %4 = xla_tuple %s2, %s3
  %s5 = sld [smem:[#allocation0]]
  $region26: #{autoencoder_forward.17} parent=0
    _
  %s7 = ssub.s32 1, %s5
  %s8 = scalar_select 0, %s7, %s5
  // Predicated region
  $region2: #{autoencoder_forward.17} parent=0 // pred_check
    _
  $region3: #{autoencoder_forward.17} parent=0 // pred_check_branch
    %10 = sbr.rel (0) target = $region5
  $region4: #{autoencoder_forward.17} parent=0 // pred_region
    _
  $region5: #{autoencoder_forward.17} parent=0 // pred_fallthru
    _
  // Predicated region
  $region6: #{autoencoder_forward.17} parent=0 // pred_check
    _
  $region7: #{autoencoder_forward.17} parent=0 // pred_check_branch
    %12 = sbr.rel (0) target = $region9
  $region8: #{autoencoder_forward.17} parent=0 // pred_region
    _
  $region9: #{autoencoder_forward.17} parent=0 // pred_fallthru
    _
  %v13 = vld [vmem:[%s0] sm:$0xff]
  %v14 = vld [vmem:[%s0 + $0x8] sm:$0xff]
  %v15 = vld [vmem:[%s0 + $0x10] sm:$0xff]
  %v16 = vld [vmem:[%s0 + $0x18] sm:$0xff]
  %v17 = vld [vmem:[%s1] sm:$0xf]
  %v18 = vld [vmem:[%s1 + $0x4] sm:$0xf]
  %v19 = vld [vmem:[%s1 + $0x8] sm:$0xf]
  %v20 = vld [vmem:[%s1 + $0xc] sm:$0xf]
  %v21 = vld [vmem:[%s1 + $0x10] sm:$0xf]
  %v22 = vld [vmem:[%s1 + $0x14] sm:$0xf]
  %v23 = vld [vmem:[%s1 + $0x18] sm:$0xf]
  %v24 = vld [vmem:[%s1 + $0x1c] sm:$0xf]
  %v25 = vld [vmem:[%s1 + $0x20] sm:$0xf]
  %v26 = vld [vmem:[%s1 + $0x24] sm:$0xf]
  %v27 = vld [vmem:[%s1 + $0x28] sm:$0xf]
  %v28 = vld [vmem:[%s1 + $0x2c] sm:$0xf]
  %v29 = vld [vmem:[%s1 + $0x30] sm:$0xf]
  %v30 = vld [vmem:[%s1 + $0x34] sm:$0xf]
  %v31 = vld [vmem:[%s1 + $0x38] sm:$0xf]
  %v32 = vld [vmem:[%s1 + $0x3c] sm:$0xf]
  %v33 = vld [vmem:[%s1 + $0x40] sm:$0xf]
  %v34 = vld [vmem:[%s1 + $0x44] sm:$0xf]
  %v35 = vld [vmem:[%s1 + $0x48] sm:$0xf]
  %v36 = vld [vmem:[%s1 + $0x4c] sm:$0xf]
  %v37 = vld [vmem:[%s1 + $0x50] sm:$0xf]
  %v38 = vld [vmem:[%s1 + $0x54] sm:$0xf]
  %v39 = vld [vmem:[%s1 + $0x58] sm:$0xf]
  %v40 = vld [vmem:[%s1 + $0x5c] sm:$0xf]
  %v41 = vld [vmem:[%s1 + $0x60] sm:$0xf]
  %v42 = vld [vmem:[%s1 + $0x64] sm:$0xf]
  %v43 = vld [vmem:[%s1 + $0x68] sm:$0xf]
  %v44 = vld [vmem:[%s1 + $0x6c] sm:$0xf]
  %v45 = vld [vmem:[%s1 + $0x70] sm:$0xf]
  %v46 = vld [vmem:[%s1 + $0x74] sm:$0xf]
  %v47 = vld [vmem:[%s1 + $0x78] sm:$0xf]
  %v48 = vld [vmem:[%s1 + $0x7c] sm:$0xf]
  %v53 = vunpack.c.l.b16 %v13
  %v54 = vunpack.c.h.b16 %v13
  %v55 = vunpack.c.l.b16 %v14
  %v56 = vunpack.c.h.b16 %v14
  %v57 = vunpack.c.l.b16 %v15
  %v58 = vunpack.c.h.b16 %v15
  %v59 = vunpack.c.l.b16 %v16
  %v60 = vunpack.c.h.b16 %v16
  %v61 = vpack.c.b16 %v55, %v53
  %v62 = vpack.c.b16 %v56, %v54
  %v63 = vpack.c.b16 %v59, %v57
  %v64 = vpack.c.b16 %v60, %v58
  %v101 = vunpack.c.l.b16 %v17
  %v102 = vunpack.c.l.b16 %v18
  %v103 = vunpack.c.l.b16 %v19
  %v104 = vunpack.c.l.b16 %v20
  %v105 = vunpack.c.l.b16 %v21
  %v106 = vunpack.c.l.b16 %v22
  %v107 = vunpack.c.l.b16 %v23
  %v108 = vunpack.c.l.b16 %v24
  %v109 = vunpack.c.l.b16 %v25
  %v110 = vunpack.c.l.b16 %v26
  %v111 = vunpack.c.l.b16 %v27
  %v112 = vunpack.c.l.b16 %v28
  %v113 = vunpack.c.l.b16 %v29
  %v114 = vunpack.c.l.b16 %v30
  %v115 = vunpack.c.l.b16 %v31
  %v116 = vunpack.c.l.b16 %v32
  %v117 = vunpack.c.l.b16 %v33
  %v118 = vunpack.c.l.b16 %v34
  %v119 = vunpack.c.l.b16 %v35
  %v120 = vunpack.c.l.b16 %v36
  %v121 = vunpack.c.l.b16 %v37
  %v122 = vunpack.c.l.b16 %v38
  %v123 = vunpack.c.l.b16 %v39
  %v124 = vunpack.c.l.b16 %v40
  %v125 = vunpack.c.l.b16 %v41
  %v126 = vunpack.c.l.b16 %v42
  %v127 = vunpack.c.l.b16 %v43
  %v128 = vunpack.c.l.b16 %v44
  %v129 = vunpack.c.l.b16 %v45
  %v130 = vunpack.c.l.b16 %v46
  %v131 = vunpack.c.l.b16 %v47
  %v132 = vunpack.c.l.b16 %v48
  %v133 = vpack.c.b16 %v102, %v101
  %v134 = vpack.c.b16 %v104, %v103
  %v135 = vpack.c.b16 %v106, %v105
  %v136 = vpack.c.b16 %v108, %v107
  %v137 = vpack.c.b16 %v110, %v109
  %v138 = vpack.c.b16 %v112, %v111
  %v139 = vpack.c.b16 %v114, %v113
  %v140 = vpack.c.b16 %v116, %v115
  %v141 = vpack.c.b16 %v118, %v117
  %v142 = vpack.c.b16 %v120, %v119
  %v143 = vpack.c.b16 %v122, %v121
  %v144 = vpack.c.b16 %v124, %v123
  %v145 = vpack.c.b16 %v126, %v125
  %v146 = vpack.c.b16 %v128, %v127
  %v147 = vpack.c.b16 %v130, %v129
  %v148 = vpack.c.b16 %v132, %v131
  %165 = vmatpush.bf16.msra.mxu0 %v140
  %166 = vmatpush.bf16.msra.mxu0 %v139
  %167 = vmatpush.bf16.msra.mxu0 %v138
  %168 = vmatpush.bf16.msra.mxu0 %v137
  %169 = vmatpush.bf16.msra.mxu0 %v136
  %170 = vmatpush.bf16.msra.mxu0 %v135
  %171 = vmatpush.bf16.msra.mxu0 %v134
  %172 = vmatpush.bf16.msra.mxu0 %v133
  %173 = vmatmul.bf16.gmra.mxu0 %v61
  %v174 = vpop.f32.mrf.mxu0
  %v175 = vadd.f32 0.0, %v174
  %v176 = vpop.f32.mrf.mxu0
  %v177 = vadd.f32 0.0, %v176
  %178 = vmatmul.bf16.gmra.mxu0 %v63
  %v179 = vpop.f32.mrf.mxu0
  %v180 = vadd.f32 0.0, %v179
  %v181 = vpop.f32.mrf.mxu0
  %v182 = vadd.f32 0.0, %v181
  %183 = vdwg.mxu0
  %184 = vmatpush.bf16.msra.mxu0 %v148
  %185 = vmatpush.bf16.msra.mxu0 %v147
  %186 = vmatpush.bf16.msra.mxu0 %v146
  %187 = vmatpush.bf16.msra.mxu0 %v145
  %188 = vmatpush.bf16.msra.mxu0 %v144
  %189 = vmatpush.bf16.msra.mxu0 %v143
  %190 = vmatpush.bf16.msra.mxu0 %v142
  %191 = vmatpush.bf16.msra.mxu0 %v141
  %192 = vmatmul.bf16.gmra.mxu0 %v62
  %v193 = vpop.f32.mrf.mxu0
  %v194 = vadd.f32 %v175, %v193
  %v195 = vpop.f32.mrf.mxu0
  %v196 = vadd.f32 %v177, %v195
  %197 = vmatmul.bf16.gmra.mxu0 %v64
  %v198 = vpop.f32.mrf.mxu0
  %v199 = vadd.f32 %v180, %v198
  %v200 = vpop.f32.mrf.mxu0
  %v201 = vadd.f32 %v182, %v200
  %202 = vdwg.mxu0
  %203 = vst [vmem:[%s2] sm:$0xff] %v194
  %204 = vst [vmem:[%s2 + $0x8] sm:$0xff] %v196
  %205 = vst [vmem:[%s2 + $0x10] sm:$0xff] %v199
  %206 = vst [vmem:[%s2 + $0x18] sm:$0xff] %v201
  %v207 = vadd.f32 %v194, %v196
  %v208 = vadd.f32 %v207, %v199
  %v209 = vadd.f32 %v208, %v201
  %v210 = vrot.slane %v209, 4
  %v211 = vadd.f32 %v209, %v210
  %v212 = vrot.slane %v211, 2
  %v213 = vadd.f32 %v211, %v212
  %v214 = vrot.slane %v213, 1
  %v215 = vadd.f32 %v213, %v214
  %v216 = vmul.f32 %v194, %v194
  %v217 = vmul.f32 %v196, %v196
  %v218 = vmul.f32 %v199, %v199
  %v219 = vmul.f32 %v201, %v201
  %v220 = vadd.f32 %v216, %v217
  %v221 = vadd.f32 %v220, %v218
  %v222 = vadd.f32 %v221, %v219
  %v223 = vrot.slane %v222, 4
  %v224 = vadd.f32 %v222, %v223
  %v225 = vrot.slane %v224, 2
  %v226 = vadd.f32 %v224, %v225
  %v227 = vrot.slane %v226, 1
  %v228 = vadd.f32 %v226, %v227
  %vm229 = vcmask 1040384
  %v230 = vsel %vm229, %v215, %v228
  %vm231 = vcmask 1041408
  %v232 = vsel %vm231, %v230, 0.0
  %233 = vst [vmem:[%s3] sm:$0xff] %v232
  // Predicated region
  $region10: #{autoencoder_forward.17} parent=0 // pred_check
    _
  $region11: #{autoencoder_forward.17} parent=0 // pred_check_branch
    %235 = sbr.rel (0) target = $region13
  $region12: #{autoencoder_forward.17} parent=0 // pred_region
    _
  $region13: #{autoencoder_forward.17} parent=0 // pred_fallthru
    _
  // Predicated region
  $region14: #{autoencoder_forward.17} parent=0 // pred_check
    _
  $region15: #{autoencoder_forward.17} parent=0 // pred_check_branch
    %237 = sbr.rel (0) target = $region17
  $region16: #{autoencoder_forward.17} parent=0 // pred_region
    _
  $region17: #{autoencoder_forward.17} parent=0 // pred_fallthru
    _
  // Predicated region
  $region18: #{autoencoder_forward.17} parent=0 // pred_check
    _
  $region19: #{autoencoder_forward.17} parent=0 // pred_check_branch
    %239 = sbr.rel (0) target = $region21
  $region20: #{autoencoder_forward.17} parent=0 // pred_region
    _
  $region21: #{autoencoder_forward.17} parent=0 // pred_fallthru
    _
  // Predicated region
  $region22: #{autoencoder_forward.17} parent=0 // pred_check
    _
  $region23: #{autoencoder_forward.17} parent=0 // pred_check_branch
    %241 = sbr.rel (0) target = $region25
  $region24: #{autoencoder_forward.17} parent=0 // pred_region
    _
  $region25: #{autoencoder_forward.17} parent=0 // pred_fallthru
    _

// kernel: autoencoder_forward.18
$region0: #{autoencoder_forward.18}
  #allocation0 [shape = 'u32[]', space=smem, size = 0x4, offset = 0x4, fixed_abs, tag = 'smem constant byte address 0x4 - core index']
  #allocation1 [shape = 'u32[72,128]{1,0:T(1,128)}', space=vmem, size = 0x9000, scoped, tag = 'internal scratch']
  %s0 = inlined_call_operand.vmem [shape: f32[32,128], index: 0, kind: input, shape index: {}]
  %s1 = inlined_call_operand.vmem [shape: f32[1,128], index: 1, kind: input, shape index: {}]
  %s2 = inlined_call_operand.vmem [shape: f32[1,128], index: 2, kind: input, shape index: {}]
  %s3 = inlined_call_operand.vmem [shape: f32[32,128], index: 3, kind: output, shape index: {}]
  %s4 = sld [smem:[#allocation0]]
  $region22: #{autoencoder_forward.18} parent=0
    _
  %s6 = ssub.s32 1, %s4
  %s7 = scalar_select 0, %s6, %s4
  // Predicated region
  $region2: #{autoencoder_forward.18} parent=0 // pred_check
    _
  $region3: #{autoencoder_forward.18} parent=0 // pred_check_branch
    %9 = sbr.rel (0) target = $region5
  $region4: #{autoencoder_forward.18} parent=0 // pred_region
    _
  $region5: #{autoencoder_forward.18} parent=0 // pred_fallthru
    _
  // Predicated region
  $region6: #{autoencoder_forward.18} parent=0 // pred_check
    _
  $region7: #{autoencoder_forward.18} parent=0 // pred_check_branch
    %11 = sbr.rel (0) target = $region9
  $region8: #{autoencoder_forward.18} parent=0 // pred_region
    _
  $region9: #{autoencoder_forward.18} parent=0 // pred_fallthru
    _
  // Predicated region
  $region10: #{autoencoder_forward.18} parent=0 // pred_check
    _
  $region11: #{autoencoder_forward.18} parent=0 // pred_check_branch
    %13 = sbr.rel (0) target = $region13
  $region12: #{autoencoder_forward.18} parent=0 // pred_region
    _
  $region13: #{autoencoder_forward.18} parent=0 // pred_fallthru
    _
  %v14 = vld [vmem:[%s0] sm:$0xff]
  %v15 = vld [vmem:[%s0 + $0x8] sm:$0xff]
  %v16 = vld [vmem:[%s0 + $0x10] sm:$0xff]
  %v17 = vld [vmem:[%s0 + $0x18] sm:$0xff]
  %v18 = vld [vmem:[%s1] sm:$0x1]
  %v20 = vperm.slane %v18, 0
  %v22 = vmul.f32 %v14, %v20
  %v23 = vmul.f32 %v15, %v20
  %v24 = vmul.f32 %v16, %v20
  %v25 = vmul.f32 %v17, %v20
  %v26 = vld [vmem:[%s2] sm:$0x1]
  %v28 = vperm.slane %v26, 0
  %v30 = vadd.f32 %v22, %v28
  %v31 = vadd.f32 %v23, %v28
  %v32 = vadd.f32 %v24, %v28
  %v33 = vadd.f32 %v25, %v28
  %v34 = vmax.f32 %v30, 0.0
  %v35 = vmax.f32 %v31, 0.0
  %v36 = vmax.f32 %v32, 0.0
  %v37 = vmax.f32 %v33, 0.0
  %38 = vst [vmem:[%s3] sm:$0xff] %v34
  %39 = vst [vmem:[%s3 + $0x8] sm:$0xff] %v35
  %40 = vst [vmem:[%s3 + $0x10] sm:$0xff] %v36
  %41 = vst [vmem:[%s3 + $0x18] sm:$0xff] %v37
  // Predicated region
  $region14: #{autoencoder_forward.18} parent=0 // pred_check
    _
  $region15: #{autoencoder_forward.18} parent=0 // pred_check_branch
    %43 = sbr.rel (0) target = $region17
  $region16: #{autoencoder_forward.18} parent=0 // pred_region
    _
  $region17: #{autoencoder_forward.18} parent=0 // pred_fallthru
    _
  // Predicated region
  $region18: #{autoencoder_forward.18} parent=0 // pred_check
    _
  $region19: #{autoencoder_forward.18} parent=0 // pred_check_branch
    %45 = sbr.rel (0) target = $region21
  $region20: #{autoencoder_forward.18} parent=0 // pred_region
    _
  $region21: #{autoencoder_forward.18} parent=0 // pred_fallthru
    _

// kernel: autoencoder_forward.20
$region0: #{autoencoder_forward.20}
  #allocation0 [shape = 'u32[]', space=smem, size = 0x4, offset = 0x4, fixed_abs, tag = 'smem constant byte address 0x4 - core index']
  #allocation1 [shape = 'u32[72,128]{1,0:T(1,128)}', space=vmem, size = 0x9000, scoped, tag = 'internal scratch']
  %s0 = inlined_call_operand.vmem [shape: f32[8,128], index: 0, kind: input, shape index: {}]
  %s1 = inlined_call_operand.vmem [shape: f32[1,128], index: 1, kind: input, shape index: {}]
  %s2 = inlined_call_operand.vmem [shape: f32[1,128], index: 2, kind: input, shape index: {}]
  %s3 = inlined_call_operand.vmem [shape: f32[8,128], index: 3, kind: output, shape index: {}]
  %s4 = sld [smem:[#allocation0]]
  $region22: #{autoencoder_forward.20} parent=0
    _
  %s6 = ssub.s32 1, %s4
  %s7 = scalar_select 0, %s6, %s4
  // Predicated region
  $region2: #{autoencoder_forward.20} parent=0 // pred_check
    _
  $region3: #{autoencoder_forward.20} parent=0 // pred_check_branch
    %9 = sbr.rel (0) target = $region5
  $region4: #{autoencoder_forward.20} parent=0 // pred_region
    _
  $region5: #{autoencoder_forward.20} parent=0 // pred_fallthru
    _
  // Predicated region
  $region6: #{autoencoder_forward.20} parent=0 // pred_check
    _
  $region7: #{autoencoder_forward.20} parent=0 // pred_check_branch
    %11 = sbr.rel (0) target = $region9
  $region8: #{autoencoder_forward.20} parent=0 // pred_region
    _
  $region9: #{autoencoder_forward.20} parent=0 // pred_fallthru
    _
  // Predicated region
  $region10: #{autoencoder_forward.20} parent=0 // pred_check
    _
  $region11: #{autoencoder_forward.20} parent=0 // pred_check_branch
    %13 = sbr.rel (0) target = $region13
  $region12: #{autoencoder_forward.20} parent=0 // pred_region
    _
  $region13: #{autoencoder_forward.20} parent=0 // pred_fallthru
    _
  %v14 = vld [vmem:[%s0] sm:$0xff]
  %v15 = vld [vmem:[%s1] sm:$0x1]
  %v17 = vperm.slane %v15, 0
  %v19 = vmul.f32 %v14, %v17
  %v20 = vld [vmem:[%s2] sm:$0x1]
  %v22 = vperm.slane %v20, 0
  %v24 = vadd.f32 %v19, %v22
  %v25 = vmax.f32 %v24, 0.0
  %26 = vst [vmem:[%s3] sm:$0xff] %v25
  // Predicated region
  $region14: #{autoencoder_forward.20} parent=0 // pred_check
    _
  $region15: #{autoencoder_forward.20} parent=0 // pred_check_branch
    %28 = sbr.rel (0) target = $region17
  $region16: #{autoencoder_forward.20} parent=0 // pred_region
    _
  $region17: #{autoencoder_forward.20} parent=0 // pred_fallthru
    _
  // Predicated region
  $region18: #{autoencoder_forward.20} parent=0 // pred_check
    _
  $region19: #{autoencoder_forward.20} parent=0 // pred_check_branch
    %30 = sbr.rel (0) target = $region21
  $region20: #{autoencoder_forward.20} parent=0 // pred_region
    _
  $region21: #{autoencoder_forward.20} parent=0 // pred_fallthru
    _

// kernel: autoencoder_forward.19
$region0: #{autoencoder_forward.19}
  #allocation0 [shape = 'u32[]', space=smem, size = 0x4, offset = 0x4, fixed_abs, tag = 'smem constant byte address 0x4 - core index']
  #allocation1 [shape = 'u32[72,128]{1,0:T(1,128)}', space=vmem, size = 0x9000, scoped, tag = 'internal scratch']
  %s0 = inlined_call_operand.vmem [shape: bf16[8,512], index: 0, kind: input, shape index: {}]
  %s1 = inlined_call_operand.vmem [shape: bf16[512,128], index: 1, kind: input, shape index: {}]
  %s2 = inlined_call_operand.vmem [shape: f32[8,128], index: 2, kind: output, shape index: {0}]
  %s3 = inlined_call_operand.vmem [shape: f32[1,8,128], index: 3, kind: output, shape index: {1}]
  %4 = xla_tuple %s2, %s3
  %s5 = sld [smem:[#allocation0]]
  $region26: #{autoencoder_forward.19} parent=0
    _
  %s7 = ssub.s32 1, %s5
  %s8 = scalar_select 0, %s7, %s5
  // Predicated region
  $region2: #{autoencoder_forward.19} parent=0 // pred_check
    _
  $region3: #{autoencoder_forward.19} parent=0 // pred_check_branch
    %10 = sbr.rel (0) target = $region5
  $region4: #{autoencoder_forward.19} parent=0 // pred_region
    _
  $region5: #{autoencoder_forward.19} parent=0 // pred_fallthru
    _
  // Predicated region
  $region6: #{autoencoder_forward.19} parent=0 // pred_check
    _
  $region7: #{autoencoder_forward.19} parent=0 // pred_check_branch
    %12 = sbr.rel (0) target = $region9
  $region8: #{autoencoder_forward.19} parent=0 // pred_region
    _
  $region9: #{autoencoder_forward.19} parent=0 // pred_fallthru
    _
  %v13 = vld [vmem:[%s0] sm:$0xff]
  %v14 = vld [vmem:[%s0 + $0x8] sm:$0xff]
  %v15 = vld [vmem:[%s1] sm:$0xf]
  %v16 = vld [vmem:[%s1 + $0x4] sm:$0xf]
  %v17 = vld [vmem:[%s1 + $0x8] sm:$0xf]
  %v18 = vld [vmem:[%s1 + $0xc] sm:$0xf]
  %v19 = vld [vmem:[%s1 + $0x10] sm:$0xf]
  %v20 = vld [vmem:[%s1 + $0x14] sm:$0xf]
  %v21 = vld [vmem:[%s1 + $0x18] sm:$0xf]
  %v22 = vld [vmem:[%s1 + $0x1c] sm:$0xf]
  %v23 = vld [vmem:[%s1 + $0x20] sm:$0xf]
  %v24 = vld [vmem:[%s1 + $0x24] sm:$0xf]
  %v25 = vld [vmem:[%s1 + $0x28] sm:$0xf]
  %v26 = vld [vmem:[%s1 + $0x2c] sm:$0xf]
  %v27 = vld [vmem:[%s1 + $0x30] sm:$0xf]
  %v28 = vld [vmem:[%s1 + $0x34] sm:$0xf]
  %v29 = vld [vmem:[%s1 + $0x38] sm:$0xf]
  %v30 = vld [vmem:[%s1 + $0x3c] sm:$0xf]
  %v31 = vld [vmem:[%s1 + $0x40] sm:$0xf]
  %v32 = vld [vmem:[%s1 + $0x44] sm:$0xf]
  %v33 = vld [vmem:[%s1 + $0x48] sm:$0xf]
  %v34 = vld [vmem:[%s1 + $0x4c] sm:$0xf]
  %v35 = vld [vmem:[%s1 + $0x50] sm:$0xf]
  %v36 = vld [vmem:[%s1 + $0x54] sm:$0xf]
  %v37 = vld [vmem:[%s1 + $0x58] sm:$0xf]
  %v38 = vld [vmem:[%s1 + $0x5c] sm:$0xf]
  %v39 = vld [vmem:[%s1 + $0x60] sm:$0xf]
  %v40 = vld [vmem:[%s1 + $0x64] sm:$0xf]
  %v41 = vld [vmem:[%s1 + $0x68] sm:$0xf]
  %v42 = vld [vmem:[%s1 + $0x6c] sm:$0xf]
  %v43 = vld [vmem:[%s1 + $0x70] sm:$0xf]
  %v44 = vld [vmem:[%s1 + $0x74] sm:$0xf]
  %v45 = vld [vmem:[%s1 + $0x78] sm:$0xf]
  %v46 = vld [vmem:[%s1 + $0x7c] sm:$0xf]
  %v47 = vld [vmem:[%s1 + $0x80] sm:$0xf]
  %v48 = vld [vmem:[%s1 + $0x84] sm:$0xf]
  %v49 = vld [vmem:[%s1 + $0x88] sm:$0xf]
  %v50 = vld [vmem:[%s1 + $0x8c] sm:$0xf]
  %v51 = vld [vmem:[%s1 + $0x90] sm:$0xf]
  %v52 = vld [vmem:[%s1 + $0x94] sm:$0xf]
  %v53 = vld [vmem:[%s1 + $0x98] sm:$0xf]
  %v54 = vld [vmem:[%s1 + $0x9c] sm:$0xf]
  %v55 = vld [vmem:[%s1 + $0xa0] sm:$0xf]
  %v56 = vld [vmem:[%s1 + $0xa4] sm:$0xf]
  %v57 = vld [vmem:[%s1 + $0xa8] sm:$0xf]
  %v58 = vld [vmem:[%s1 + $0xac] sm:$0xf]
  %v59 = vld [vmem:[%s1 + $0xb0] sm:$0xf]
  %v60 = vld [vmem:[%s1 + $0xb4] sm:$0xf]
  %v61 = vld [vmem:[%s1 + $0xb8] sm:$0xf]
  %v62 = vld [vmem:[%s1 + $0xbc] sm:$0xf]
  %v63 = vld [vmem:[%s1 + $0xc0] sm:$0xf]
  %v64 = vld [vmem:[%s1 + $0xc4] sm:$0xf]
  %v65 = vld [vmem:[%s1 + $0xc8] sm:$0xf]
  %v66 = vld [vmem:[%s1 + $0xcc] sm:$0xf]
  %v67 = vld [vmem:[%s1 + $0xd0] sm:$0xf]
  %v68 = vld [vmem:[%s1 + $0xd4] sm:$0xf]
  %v69 = vld [vmem:[%s1 + $0xd8] sm:$0xf]
  %v70 = vld [vmem:[%s1 + $0xdc] sm:$0xf]
  %v71 = vld [vmem:[%s1 + $0xe0] sm:$0xf]
  %v72 = vld [vmem:[%s1 + $0xe4] sm:$0xf]
  %v73 = vld [vmem:[%s1 + $0xe8] sm:$0xf]
  %v74 = vld [vmem:[%s1 + $0xec] sm:$0xf]
  %v75 = vld [vmem:[%s1 + $0xf0] sm:$0xf]
  %v76 = vld [vmem:[%s1 + $0xf4] sm:$0xf]
  %v77 = vld [vmem:[%s1 + $0xf8] sm:$0xf]
  %v78 = vld [vmem:[%s1 + $0xfc] sm:$0xf]
  %v81 = vunpack.c.l.b16 %v13
  %v82 = vunpack.c.h.b16 %v13
  %v83 = vunpack.c.l.b16 %v14
  %v84 = vunpack.c.h.b16 %v14
  %v85 = vpack.c.b16 %v81, %v81
  %v86 = vpack.c.b16 %v82, %v82
  %v87 = vpack.c.b16 %v83, %v83
  %v88 = vpack.c.b16 %v84, %v84
  %v157 = vunpack.c.l.b16 %v15
  %v158 = vunpack.c.l.b16 %v16
  %v159 = vunpack.c.l.b16 %v17
  %v160 = vunpack.c.l.b16 %v18
  %v161 = vunpack.c.l.b16 %v19
  %v162 = vunpack.c.l.b16 %v20
  %v163 = vunpack.c.l.b16 %v21
  %v164 = vunpack.c.l.b16 %v22
  %v165 = vunpack.c.l.b16 %v23
  %v166 = vunpack.c.l.b16 %v24
  %v167 = vunpack.c.l.b16 %v25
  %v168 = vunpack.c.l.b16 %v26
  %v169 = vunpack.c.l.b16 %v27
  %v170 = vunpack.c.l.b16 %v28
  %v171 = vunpack.c.l.b16 %v29
  %v172 = vunpack.c.l.b16 %v30
  %v173 = vunpack.c.l.b16 %v31
  %v174 = vunpack.c.l.b16 %v32
  %v175 = vunpack.c.l.b16 %v33
  %v176 = vunpack.c.l.b16 %v34
  %v177 = vunpack.c.l.b16 %v35
  %v178 = vunpack.c.l.b16 %v36
  %v179 = vunpack.c.l.b16 %v37
  %v180 = vunpack.c.l.b16 %v38
  %v181 = vunpack.c.l.b16 %v39
  %v182 = vunpack.c.l.b16 %v40
  %v183 = vunpack.c.l.b16 %v41
  %v184 = vunpack.c.l.b16 %v42
  %v185 = vunpack.c.l.b16 %v43
  %v186 = vunpack.c.l.b16 %v44
  %v187 = vunpack.c.l.b16 %v45
  %v188 = vunpack.c.l.b16 %v46
  %v189 = vunpack.c.l.b16 %v47
  %v190 = vunpack.c.l.b16 %v48
  %v191 = vunpack.c.l.b16 %v49
  %v192 = vunpack.c.l.b16 %v50
  %v193 = vunpack.c.l.b16 %v51
  %v194 = vunpack.c.l.b16 %v52
  %v195 = vunpack.c.l.b16 %v53
  %v196 = vunpack.c.l.b16 %v54
  %v197 = vunpack.c.l.b16 %v55
  %v198 = vunpack.c.l.b16 %v56
  %v199 = vunpack.c.l.b16 %v57
  %v200 = vunpack.c.l.b16 %v58
  %v201 = vunpack.c.l.b16 %v59
  %v202 = vunpack.c.l.b16 %v60
  %v203 = vunpack.c.l.b16 %v61
  %v204 = vunpack.c.l.b16 %v62
  %v205 = vunpack.c.l.b16 %v63
  %v206 = vunpack.c.l.b16 %v64
  %v207 = vunpack.c.l.b16 %v65
  %v208 = vunpack.c.l.b16 %v66
  %v209 = vunpack.c.l.b16 %v67
  %v210 = vunpack.c.l.b16 %v68
  %v211 = vunpack.c.l.b16 %v69
  %v212 = vunpack.c.l.b16 %v70
  %v213 = vunpack.c.l.b16 %v71
  %v214 = vunpack.c.l.b16 %v72
  %v215 = vunpack.c.l.b16 %v73
  %v216 = vunpack.c.l.b16 %v74
  %v217 = vunpack.c.l.b16 %v75
  %v218 = vunpack.c.l.b16 %v76
  %v219 = vunpack.c.l.b16 %v77
  %v220 = vunpack.c.l.b16 %v78
  %v221 = vpack.c.b16 %v158, %v157
  %v222 = vpack.c.b16 %v160, %v159
  %v223 = vpack.c.b16 %v162, %v161
  %v224 = vpack.c.b16 %v164, %v163
  %v225 = vpack.c.b16 %v166, %v165
  %v226 = vpack.c.b16 %v168, %v167
  %v227 = vpack.c.b16 %v170, %v169
  %v228 = vpack.c.b16 %v172, %v171
  %v229 = vpack.c.b16 %v174, %v173
  %v230 = vpack.c.b16 %v176, %v175
  %v231 = vpack.c.b16 %v178, %v177
  %v232 = vpack.c.b16 %v180, %v179
  %v233 = vpack.c.b16 %v182, %v181
  %v234 = vpack.c.b16 %v184, %v183
  %v235 = vpack.c.b16 %v186, %v185
  %v236 = vpack.c.b16 %v188, %v187
  %v237 = vpack.c.b16 %v190, %v189
  %v238 = vpack.c.b16 %v192, %v191
  %v239 = vpack.c.b16 %v194, %v193
  %v240 = vpack.c.b16 %v196, %v195
  %v241 = vpack.c.b16 %v198, %v197
  %v242 = vpack.c.b16 %v200, %v199
  %v243 = vpack.c.b16 %v202, %v201
  %v244 = vpack.c.b16 %v204, %v203
  %v245 = vpack.c.b16 %v206, %v205
  %v246 = vpack.c.b16 %v208, %v207
  %v247 = vpack.c.b16 %v210, %v209
  %v248 = vpack.c.b16 %v212, %v211
  %v249 = vpack.c.b16 %v214, %v213
  %v250 = vpack.c.b16 %v216, %v215
  %v251 = vpack.c.b16 %v218, %v217
  %v252 = vpack.c.b16 %v220, %v219
  %285 = vmatpush.bf16.msra.mxu0 %v228
  %286 = vmatpush.bf16.msra.mxu0 %v227
  %287 = vmatpush.bf16.msra.mxu0 %v226
  %288 = vmatpush.bf16.msra.mxu0 %v225
  %289 = vmatpush.bf16.msra.mxu0 %v224
  %290 = vmatpush.bf16.msra.mxu0 %v223
  %291 = vmatpush.bf16.msra.mxu0 %v222
  %292 = vmatpush.bf16.msra.mxu0 %v221
  %293 = vmatmul.bf16.gmra.mxu0 %v85
  %v294 = vpop.f32.mrf.mxu0
  %v295 = vadd.f32 0.0, %v294
  %v296 = vpop.f32.mrf.mxu0
  %297 = vdwg.mxu0
  %298 = vmatpush.bf16.msra.mxu0 %v236
  %299 = vmatpush.bf16.msra.mxu0 %v235
  %300 = vmatpush.bf16.msra.mxu0 %v234
  %301 = vmatpush.bf16.msra.mxu0 %v233
  %302 = vmatpush.bf16.msra.mxu0 %v232
  %303 = vmatpush.bf16.msra.mxu0 %v231
  %304 = vmatpush.bf16.msra.mxu0 %v230
  %305 = vmatpush.bf16.msra.mxu0 %v229
  %306 = vmatmul.bf16.gmra.mxu0 %v86
  %v307 = vpop.f32.mrf.mxu0
  %v308 = vadd.f32 %v295, %v307
  %v309 = vpop.f32.mrf.mxu0
  %310 = vdwg.mxu0
  %311 = vmatpush.bf16.msra.mxu0 %v244
  %312 = vmatpush.bf16.msra.mxu0 %v243
  %313 = vmatpush.bf16.msra.mxu0 %v242
  %314 = vmatpush.bf16.msra.mxu0 %v241
  %315 = vmatpush.bf16.msra.mxu0 %v240
  %316 = vmatpush.bf16.msra.mxu0 %v239
  %317 = vmatpush.bf16.msra.mxu0 %v238
  %318 = vmatpush.bf16.msra.mxu0 %v237
  %319 = vmatmul.bf16.gmra.mxu0 %v87
  %v320 = vpop.f32.mrf.mxu0
  %v321 = vadd.f32 %v308, %v320
  %v322 = vpop.f32.mrf.mxu0
  %323 = vdwg.mxu0
  %324 = vmatpush.bf16.msra.mxu0 %v252
  %325 = vmatpush.bf16.msra.mxu0 %v251
  %326 = vmatpush.bf16.msra.mxu0 %v250
  %327 = vmatpush.bf16.msra.mxu0 %v249
  %328 = vmatpush.bf16.msra.mxu0 %v248
  %329 = vmatpush.bf16.msra.mxu0 %v247
  %330 = vmatpush.bf16.msra.mxu0 %v246
  %331 = vmatpush.bf16.msra.mxu0 %v245
  %332 = vmatmul.bf16.gmra.mxu0 %v88
  %v333 = vpop.f32.mrf.mxu0
  %v334 = vadd.f32 %v321, %v333
  %v335 = vpop.f32.mrf.mxu0
  %336 = vdwg.mxu0
  %337 = vst [vmem:[%s2] sm:$0xff] %v334
  %v338 = vrot.slane %v334, 4
  %v339 = vadd.f32 %v334, %v338
  %v340 = vrot.slane %v339, 2
  %v341 = vadd.f32 %v339, %v340
  %v342 = vrot.slane %v341, 1
  %v343 = vadd.f32 %v341, %v342
  %v344 = vmul.f32 %v334, %v334
  %v345 = vrot.slane %v344, 4
  %v346 = vadd.f32 %v344, %v345
  %v347 = vrot.slane %v346, 2
  %v348 = vadd.f32 %v346, %v347
  %v349 = vrot.slane %v348, 1
  %v350 = vadd.f32 %v348, %v349
  %vm351 = vcmask 1040384
  %v352 = vsel %vm351, %v343, %v350
  %vm353 = vcmask 1041408
  %v354 = vsel %vm353, %v352, 0.0
  %355 = vst [vmem:[%s3] sm:$0xff] %v354
  // Predicated region
  $region10: #{autoencoder_forward.19} parent=0 // pred_check
    _
  $region11: #{autoencoder_forward.19} parent=0 // pred_check_branch
    %357 = sbr.rel (0) target = $region13
  $region12: #{autoencoder_forward.19} parent=0 // pred_region
    _
  $region13: #{autoencoder_forward.19} parent=0 // pred_fallthru
    _
  // Predicated region
  $region14: #{autoencoder_forward.19} parent=0 // pred_check
    _
  $region15: #{autoencoder_forward.19} parent=0 // pred_check_branch
    %359 = sbr.rel (0) target = $region17
  $region16: #{autoencoder_forward.19} parent=0 // pred_region
    _
  $region17: #{autoencoder_forward.19} parent=0 // pred_fallthru
    _
  // Predicated region
  $region18: #{autoencoder_forward.19} parent=0 // pred_check
    _
  $region19: #{autoencoder_forward.19} parent=0 // pred_check_branch
    %361 = sbr.rel (0) target = $region21
  $region20: #{autoencoder_forward.19} parent=0 // pred_region
    _
  $region21: #{autoencoder_forward.19} parent=0 // pred_fallthru
    _
  // Predicated region
  $region22: #{autoencoder_forward.19} parent=0 // pred_check
    _
  $region23: #{autoencoder_forward.19} parent=0 // pred_check_branch
    %363 = sbr.rel (0) target = $region25
  $region24: #{autoencoder_forward.19} parent=0 // pred_region
    _
  $region25: #{autoencoder_forward.19} parent=0 // pred_fallthru
    _

// kernel: autoencoder_forward.21
$region0: #{autoencoder_forward.21}
  #allocation0 [shape = 'u32[]', space=smem, size = 0x4, offset = 0x4, fixed_abs, tag = 'smem constant byte address 0x4 - core index']
  #allocation1 [shape = 'u32[72,128]{1,0:T(1,128)}', space=vmem, size = 0x9000, scoped, tag = 'internal scratch']
  %s0 = inlined_call_operand.vmem [shape: bf16[8,1024], index: 0, kind: input, shape index: {}]
  %s1 = inlined_call_operand.vmem [shape: bf16[1024,128], index: 1, kind: input, shape index: {}]
  %s2 = inlined_call_operand.vmem [shape: f32[8,128], index: 2, kind: output, shape index: {0}]
  %s3 = inlined_call_operand.vmem [shape: f32[1,8,128], index: 3, kind: output, shape index: {1}]
  %4 = xla_tuple %s2, %s3
  %s5 = sld [smem:[#allocation0]]
  $region26: #{autoencoder_forward.21} parent=0
    _
  %s7 = ssub.s32 1, %s5
  %s8 = scalar_select 0, %s7, %s5
  // Predicated region
  $region2: #{autoencoder_forward.21} parent=0 // pred_check
    _
  $region3: #{autoencoder_forward.21} parent=0 // pred_check_branch
    %10 = sbr.rel (0) target = $region5
  $region4: #{autoencoder_forward.21} parent=0 // pred_region
    _
  $region5: #{autoencoder_forward.21} parent=0 // pred_fallthru
    _
  // Predicated region
  $region6: #{autoencoder_forward.21} parent=0 // pred_check
    _
  $region7: #{autoencoder_forward.21} parent=0 // pred_check_branch
    %12 = sbr.rel (0) target = $region9
  $region8: #{autoencoder_forward.21} parent=0 // pred_region
    _
  $region9: #{autoencoder_forward.21} parent=0 // pred_fallthru
    _
  %v13 = vld [vmem:[%s0] sm:$0xff]
  %v14 = vld [vmem:[%s0 + $0x8] sm:$0xff]
  %v15 = vld [vmem:[%s0 + $0x10] sm:$0xff]
  %v16 = vld [vmem:[%s0 + $0x18] sm:$0xff]
  %v17 = vld [vmem:[%s1] sm:$0xf]
  %v18 = vld [vmem:[%s1 + $0x4] sm:$0xf]
  %v19 = vld [vmem:[%s1 + $0x8] sm:$0xf]
  %v20 = vld [vmem:[%s1 + $0xc] sm:$0xf]
  %v21 = vld [vmem:[%s1 + $0x10] sm:$0xf]
  %v22 = vld [vmem:[%s1 + $0x14] sm:$0xf]
  %v23 = vld [vmem:[%s1 + $0x18] sm:$0xf]
  %v24 = vld [vmem:[%s1 + $0x1c] sm:$0xf]
  %v25 = vld [vmem:[%s1 + $0x20] sm:$0xf]
  %v26 = vld [vmem:[%s1 + $0x24] sm:$0xf]
  %v27 = vld [vmem:[%s1 + $0x28] sm:$0xf]
  %v28 = vld [vmem:[%s1 + $0x2c] sm:$0xf]
  %v29 = vld [vmem:[%s1 + $0x30] sm:$0xf]
  %v30 = vld [vmem:[%s1 + $0x34] sm:$0xf]
  %v31 = vld [vmem:[%s1 + $0x38] sm:$0xf]
  %v32 = vld [vmem:[%s1 + $0x3c] sm:$0xf]
  %v33 = vld [vmem:[%s1 + $0x40] sm:$0xf]
  %v34 = vld [vmem:[%s1 + $0x44] sm:$0xf]
  %v35 = vld [vmem:[%s1 + $0x48] sm:$0xf]
  %v36 = vld [vmem:[%s1 + $0x4c] sm:$0xf]
  %v37 = vld [vmem:[%s1 + $0x50] sm:$0xf]
  %v38 = vld [vmem:[%s1 + $0x54] sm:$0xf]
  %v39 = vld [vmem:[%s1 + $0x58] sm:$0xf]
  %v40 = vld [vmem:[%s1 + $0x5c] sm:$0xf]
  %v41 = vld [vmem:[%s1 + $0x60] sm:$0xf]
  %v42 = vld [vmem:[%s1 + $0x64] sm:$0xf]
  %v43 = vld [vmem:[%s1 + $0x68] sm:$0xf]
  %v44 = vld [vmem:[%s1 + $0x6c] sm:$0xf]
  %v45 = vld [vmem:[%s1 + $0x70] sm:$0xf]
  %v46 = vld [vmem:[%s1 + $0x74] sm:$0xf]
  %v47 = vld [vmem:[%s1 + $0x78] sm:$0xf]
  %v48 = vld [vmem:[%s1 + $0x7c] sm:$0xf]
  %v49 = vld [vmem:[%s1 + $0x80] sm:$0xf]
  %v50 = vld [vmem:[%s1 + $0x84] sm:$0xf]
  %v51 = vld [vmem:[%s1 + $0x88] sm:$0xf]
  %v52 = vld [vmem:[%s1 + $0x8c] sm:$0xf]
  %v53 = vld [vmem:[%s1 + $0x90] sm:$0xf]
  %v54 = vld [vmem:[%s1 + $0x94] sm:$0xf]
  %v55 = vld [vmem:[%s1 + $0x98] sm:$0xf]
  %v56 = vld [vmem:[%s1 + $0x9c] sm:$0xf]
  %v57 = vld [vmem:[%s1 + $0xa0] sm:$0xf]
  %v58 = vld [vmem:[%s1 + $0xa4] sm:$0xf]
  %v59 = vld [vmem:[%s1 + $0xa8] sm:$0xf]
  %v60 = vld [vmem:[%s1 + $0xac] sm:$0xf]
  %v61 = vld [vmem:[%s1 + $0xb0] sm:$0xf]
  %v62 = vld [vmem:[%s1 + $0xb4] sm:$0xf]
  %v63 = vld [vmem:[%s1 + $0xb8] sm:$0xf]
  %v64 = vld [vmem:[%s1 + $0xbc] sm:$0xf]
  %v65 = vld [vmem:[%s1 + $0xc0] sm:$0xf]
  %v66 = vld [vmem:[%s1 + $0xc4] sm:$0xf]
  %v67 = vld [vmem:[%s1 + $0xc8] sm:$0xf]
  %v68 = vld [vmem:[%s1 + $0xcc] sm:$0xf]
  %v69 = vld [vmem:[%s1 + $0xd0] sm:$0xf]
  %v70 = vld [vmem:[%s1 + $0xd4] sm:$0xf]
  %v71 = vld [vmem:[%s1 + $0xd8] sm:$0xf]
  %v72 = vld [vmem:[%s1 + $0xdc] sm:$0xf]
  %v73 = vld [vmem:[%s1 + $0xe0] sm:$0xf]
  %v74 = vld [vmem:[%s1 + $0xe4] sm:$0xf]
  %v75 = vld [vmem:[%s1 + $0xe8] sm:$0xf]
  %v76 = vld [vmem:[%s1 + $0xec] sm:$0xf]
  %v77 = vld [vmem:[%s1 + $0xf0] sm:$0xf]
  %v78 = vld [vmem:[%s1 + $0xf4] sm:$0xf]
  %v79 = vld [vmem:[%s1 + $0xf8] sm:$0xf]
  %v80 = vld [vmem:[%s1 + $0xfc] sm:$0xf]
  %v81 = vld [vmem:[%s1 + $0x100] sm:$0xf]
  %v82 = vld [vmem:[%s1 + $0x104] sm:$0xf]
  %v83 = vld [vmem:[%s1 + $0x108] sm:$0xf]
  %v84 = vld [vmem:[%s1 + $0x10c] sm:$0xf]
  %v85 = vld [vmem:[%s1 + $0x110] sm:$0xf]
  %v86 = vld [vmem:[%s1 + $0x114] sm:$0xf]
  %v87 = vld [vmem:[%s1 + $0x118] sm:$0xf]
  %v88 = vld [vmem:[%s1 + $0x11c] sm:$0xf]
  %v89 = vld [vmem:[%s1 + $0x120] sm:$0xf]
  %v90 = vld [vmem:[%s1 + $0x124] sm:$0xf]
  %v91 = vld [vmem:[%s1 + $0x128] sm:$0xf]
  %v92 = vld [vmem:[%s1 + $0x12c] sm:$0xf]
  %v93 = vld [vmem:[%s1 + $0x130] sm:$0xf]
  %v94 = vld [vmem:[%s1 + $0x134] sm:$0xf]
  %v95 = vld [vmem:[%s1 + $0x138] sm:$0xf]
  %v96 = vld [vmem:[%s1 + $0x13c] sm:$0xf]
  %v97 = vld [vmem:[%s1 + $0x140] sm:$0xf]
  %v98 = vld [vmem:[%s1 + $0x144] sm:$0xf]
  %v99 = vld [vmem:[%s1 + $0x148] sm:$0xf]
  %v100 = vld [vmem:[%s1 + $0x14c] sm:$0xf]
  %v101 = vld [vmem:[%s1 + $0x150] sm:$0xf]
  %v102 = vld [vmem:[%s1 + $0x154] sm:$0xf]
  %v103 = vld [vmem:[%s1 + $0x158] sm:$0xf]
  %v104 = vld [vmem:[%s1 + $0x15c] sm:$0xf]
  %v105 = vld [vmem:[%s1 + $0x160] sm:$0xf]
  %v106 = vld [vmem:[%s1 + $0x164] sm:$0xf]
  %v107 = vld [vmem:[%s1 + $0x168] sm:$0xf]
  %v108 = vld [vmem:[%s1 + $0x16c] sm:$0xf]
  %v109 = vld [vmem:[%s1 + $0x170] sm:$0xf]
  %v110 = vld [vmem:[%s1 + $0x174] sm:$0xf]
  %v111 = vld [vmem:[%s1 + $0x178] sm:$0xf]
  %v112 = vld [vmem:[%s1 + $0x17c] sm:$0xf]
  %v113 = vld [vmem:[%s1 + $0x180] sm:$0xf]
  %v114 = vld [vmem:[%s1 + $0x184] sm:$0xf]
  %v115 = vld [vmem:[%s1 + $0x188] sm:$0xf]
  %v116 = vld [vmem:[%s1 + $0x18c] sm:$0xf]
  %v117 = vld [vmem:[%s1 + $0x190] sm:$0xf]
  %v118 = vld [vmem:[%s1 + $0x194] sm:$0xf]
  %v119 = vld [vmem:[%s1 + $0x198] sm:$0xf]
  %v120 = vld [vmem:[%s1 + $0x19c] sm:$0xf]
  %v121 = vld [vmem:[%s1 + $0x1a0] sm:$0xf]
  %v122 = vld [vmem:[%s1 + $0x1a4] sm:$0xf]
  %v123 = vld [vmem:[%s1 + $0x1a8] sm:$0xf]
  %v124 = vld [vmem:[%s1 + $0x1ac] sm:$0xf]
  %v125 = vld [vmem:[%s1 + $0x1b0] sm:$0xf]
  %v126 = vld [vmem:[%s1 + $0x1b4] sm:$0xf]
  %v127 = vld [vmem:[%s1 + $0x1b8] sm:$0xf]
  %v128 = vld [vmem:[%s1 + $0x1bc] sm:$0xf]
  %v129 = vld [vmem:[%s1 + $0x1c0] sm:$0xf]
  %v130 = vld [vmem:[%s1 + $0x1c4] sm:$0xf]
  %v131 = vld [vmem:[%s1 + $0x1c8] sm:$0xf]
  %v132 = vld [vmem:[%s1 + $0x1cc] sm:$0xf]
  %v133 = vld [vmem:[%s1 + $0x1d0] sm:$0xf]
  %v134 = vld [vmem:[%s1 + $0x1d4] sm:$0xf]
  %v135 = vld [vmem:[%s1 + $0x1d8] sm:$0xf]
  %v136 = vld [vmem:[%s1 + $0x1dc] sm:$0xf]
  %v137 = vld [vmem:[%s1 + $0x1e0] sm:$0xf]
  %v138 = vld [vmem:[%s1 + $0x1e4] sm:$0xf]
  %v139 = vld [vmem:[%s1 + $0x1e8] sm:$0xf]
  %v140 = vld [vmem:[%s1 + $0x1ec] sm:$0xf]
  %v141 = vld [vmem:[%s1 + $0x1f0] sm:$0xf]
  %v142 = vld [vmem:[%s1 + $0x1f4] sm:$0xf]
  %v143 = vld [vmem:[%s1 + $0x1f8] sm:$0xf]
  %v144 = vld [vmem:[%s1 + $0x1fc] sm:$0xf]
  %v149 = vunpack.c.l.b16 %v13
  %v150 = vunpack.c.h.b16 %v13
  %v151 = vunpack.c.l.b16 %v14
  %v152 = vunpack.c.h.b16 %v14
  %v153 = vunpack.c.l.b16 %v15
  %v154 = vunpack.c.h.b16 %v15
  %v155 = vunpack.c.l.b16 %v16
  %v156 = vunpack.c.h.b16 %v16
  %v157 = vpack.c.b16 %v149, %v149
  %v158 = vpack.c.b16 %v150, %v150
  %v159 = vpack.c.b16 %v151, %v151
  %v160 = vpack.c.b16 %v152, %v152
  %v161 = vpack.c.b16 %v153, %v153
  %v162 = vpack.c.b16 %v154, %v154
  %v163 = vpack.c.b16 %v155, %v155
  %v164 = vpack.c.b16 %v156, %v156
  %v301 = vunpack.c.l.b16 %v17
  %v302 = vunpack.c.l.b16 %v18
  %v303 = vunpack.c.l.b16 %v19
  %v304 = vunpack.c.l.b16 %v20
  %v305 = vunpack.c.l.b16 %v21
  %v306 = vunpack.c.l.b16 %v22
  %v307 = vunpack.c.l.b16 %v23
  %v308 = vunpack.c.l.b16 %v24
  %v309 = vunpack.c.l.b16 %v25
  %v310 = vunpack.c.l.b16 %v26
  %v311 = vunpack.c.l.b16 %v27
  %v312 = vunpack.c.l.b16 %v28
  %v313 = vunpack.c.l.b16 %v29
  %v314 = vunpack.c.l.b16 %v30
  %v315 = vunpack.c.l.b16 %v31
  %v316 = vunpack.c.l.b16 %v32
  %v317 = vunpack.c.l.b16 %v33
  %v318 = vunpack.c.l.b16 %v34
  %v319 = vunpack.c.l.b16 %v35
  %v320 = vunpack.c.l.b16 %v36
  %v321 = vunpack.c.l.b16 %v37
  %v322 = vunpack.c.l.b16 %v38
  %v323 = vunpack.c.l.b16 %v39
  %v324 = vunpack.c.l.b16 %v40
  %v325 = vunpack.c.l.b16 %v41
  %v326 = vunpack.c.l.b16 %v42
  %v327 = vunpack.c.l.b16 %v43
  %v328 = vunpack.c.l.b16 %v44
  %v329 = vunpack.c.l.b16 %v45
  %v330 = vunpack.c.l.b16 %v46
  %v331 = vunpack.c.l.b16 %v47
  %v332 = vunpack.c.l.b16 %v48
  %v333 = vunpack.c.l.b16 %v49
  %v334 = vunpack.c.l.b16 %v50
  %v335 = vunpack.c.l.b16 %v51
  %v336 = vunpack.c.l.b16 %v52
  %v337 = vunpack.c.l.b16 %v53
  %v338 = vunpack.c.l.b16 %v54
  %v339 = vunpack.c.l.b16 %v55
  %v340 = vunpack.c.l.b16 %v56
  %v341 = vunpack.c.l.b16 %v57
  %v342 = vunpack.c.l.b16 %v58
  %v343 = vunpack.c.l.b16 %v59
  %v344 = vunpack.c.l.b16 %v60
  %v345 = vunpack.c.l.b16 %v61
  %v346 = vunpack.c.l.b16 %v62
  %v347 = vunpack.c.l.b16 %v63
  %v348 = vunpack.c.l.b16 %v64
  %v349 = vunpack.c.l.b16 %v65
  %v350 = vunpack.c.l.b16 %v66
  %v351 = vunpack.c.l.b16 %v67
  %v352 = vunpack.c.l.b16 %v68
  %v353 = vunpack.c.l.b16 %v69
  %v354 = vunpack.c.l.b16 %v70
  %v355 = vunpack.c.l.b16 %v71
  %v356 = vunpack.c.l.b16 %v72
  %v357 = vunpack.c.l.b16 %v73
  %v358 = vunpack.c.l.b16 %v74
  %v359 = vunpack.c.l.b16 %v75
  %v360 = vunpack.c.l.b16 %v76
  %v361 = vunpack.c.l.b16 %v77
  %v362 = vunpack.c.l.b16 %v78
  %v363 = vunpack.c.l.b16 %v79
  %v364 = vunpack.c.l.b16 %v80
  %v365 = vunpack.c.l.b16 %v81
  %v366 = vunpack.c.l.b16 %v82
  %v367 = vunpack.c.l.b16 %v83
  %v368 = vunpack.c.l.b16 %v84
  %v369 = vunpack.c.l.b16 %v85
  %v370 = vunpack.c.l.b16 %v86
  %v371 = vunpack.c.l.b16 %v87
  %v372 = vunpack.c.l.b16 %v88
  %v373 = vunpack.c.l.b16 %v89
  %v374 = vunpack.c.l.b16 %v90
  %v375 = vunpack.c.l.b16 %v91
  %v376 = vunpack.c.l.b16 %v92
  %v377 = vunpack.c.l.b16 %v93
  %v378 = vunpack.c.l.b16 %v94
  %v379 = vunpack.c.l.b16 %v95
  %v380 = vunpack.c.l.b16 %v96
  %v381 = vunpack.c.l.b16 %v97
  %v382 = vunpack.c.l.b16 %v98
  %v383 = vunpack.c.l.b16 %v99
  %v384 = vunpack.c.l.b16 %v100
  %v385 = vunpack.c.l.b16 %v101
  %v386 = vunpack.c.l.b16 %v102
  %v387 = vunpack.c.l.b16 %v103
  %v388 = vunpack.c.l.b16 %v104
  %v389 = vunpack.c.l.b16 %v105
  %v390 = vunpack.c.l.b16 %v106
  %v391 = vunpack.c.l.b16 %v107
  %v392 = vunpack.c.l.b16 %v108
  %v393 = vunpack.c.l.b16 %v109
  %v394 = vunpack.c.l.b16 %v110
  %v395 = vunpack.c.l.b16 %v111
  %v396 = vunpack.c.l.b16 %v112
  %v397 = vunpack.c.l.b16 %v113
  %v398 = vunpack.c.l.b16 %v114
  %v399 = vunpack.c.l.b16 %v115
  %v400 = vunpack.c.l.b16 %v116
  %v401 = vunpack.c.l.b16 %v117
  %v402 = vunpack.c.l.b16 %v118
  %v403 = vunpack.c.l.b16 %v119
  %v404 = vunpack.c.l.b16 %v120
  %v405 = vunpack.c.l.b16 %v121
  %v406 = vunpack.c.l.b16 %v122
  %v407 = vunpack.c.l.b16 %v123
  %v408 = vunpack.c.l.b16 %v124
  %v409 = vunpack.c.l.b16 %v125
  %v410 = vunpack.c.l.b16 %v126
  %v411 = vunpack.c.l.b16 %v127
  %v412 = vunpack.c.l.b16 %v128
  %v413 = vunpack.c.l.b16 %v129
  %v414 = vunpack.c.l.b16 %v130
  %v415 = vunpack.c.l.b16 %v131
  %v416 = vunpack.c.l.b16 %v132
  %v417 = vunpack.c.l.b16 %v133
  %v418 = vunpack.c.l.b16 %v134
  %v419 = vunpack.c.l.b16 %v135
  %v420 = vunpack.c.l.b16 %v136
  %v421 = vunpack.c.l.b16 %v137
  %v422 = vunpack.c.l.b16 %v138
  %v423 = vunpack.c.l.b16 %v139
  %v424 = vunpack.c.l.b16 %v140
  %v425 = vunpack.c.l.b16 %v141
  %v426 = vunpack.c.l.b16 %v142
  %v427 = vunpack.c.l.b16 %v143
  %v428 = vunpack.c.l.b16 %v144
  %v429 = vpack.c.b16 %v302, %v301
  %v430 = vpack.c.b16 %v304, %v303
  %v431 = vpack.c.b16 %v306, %v305
  %v432 = vpack.c.b16 %v308, %v307
  %v433 = vpack.c.b16 %v310, %v309
  %v434 = vpack.c.b16 %v312, %v311
  %v435 = vpack.c.b16 %v314, %v313
  %v436 = vpack.c.b16 %v316, %v315
  %v437 = vpack.c.b16 %v318, %v317
  %v438 = vpack.c.b16 %v320, %v319
  %v439 = vpack.c.b16 %v322, %v321
  %v440 = vpack.c.b16 %v324, %v323
  %v441 = vpack.c.b16 %v326, %v325
  %v442 = vpack.c.b16 %v328, %v327
  %v443 = vpack.c.b16 %v330, %v329
  %v444 = vpack.c.b16 %v332, %v331
  %v445 = vpack.c.b16 %v334, %v333
  %v446 = vpack.c.b16 %v336, %v335
  %v447 = vpack.c.b16 %v338, %v337
  %v448 = vpack.c.b16 %v340, %v339
  %v449 = vpack.c.b16 %v342, %v341
  %v450 = vpack.c.b16 %v344, %v343
  %v451 = vpack.c.b16 %v346, %v345
  %v452 = vpack.c.b16 %v348, %v347
  %v453 = vpack.c.b16 %v350, %v349
  %v454 = vpack.c.b16 %v352, %v351
  %v455 = vpack.c.b16 %v354, %v353
  %v456 = vpack.c.b16 %v356, %v355
  %v457 = vpack.c.b16 %v358, %v357
  %v458 = vpack.c.b16 %v360, %v359
  %v459 = vpack.c.b16 %v362, %v361
  %v460 = vpack.c.b16 %v364, %v363
  %v461 = vpack.c.b16 %v366, %v365
  %v462 = vpack.c.b16 %v368, %v367
  %v463 = vpack.c.b16 %v370, %v369
  %v464 = vpack.c.b16 %v372, %v371
  %v465 = vpack.c.b16 %v374, %v373
  %v466 = vpack.c.b16 %v376, %v375
  %v467 = vpack.c.b16 %v378, %v377
  %v468 = vpack.c.b16 %v380, %v379
  %v469 = vpack.c.b16 %v382, %v381
  %v470 = vpack.c.b16 %v384, %v383
  %v471 = vpack.c.b16 %v386, %v385
  %v472 = vpack.c.b16 %v388, %v387
  %v473 = vpack.c.b16 %v390, %v389
  %v474 = vpack.c.b16 %v392, %v391
  %v475 = vpack.c.b16 %v394, %v393
  %v476 = vpack.c.b16 %v396, %v395
  %v477 = vpack.c.b16 %v398, %v397
  %v478 = vpack.c.b16 %v400, %v399
  %v479 = vpack.c.b16 %v402, %v401
  %v480 = vpack.c.b16 %v404, %v403
  %v481 = vpack.c.b16 %v406, %v405
  %v482 = vpack.c.b16 %v408, %v407
  %v483 = vpack.c.b16 %v410, %v409
  %v484 = vpack.c.b16 %v412, %v411
  %v485 = vpack.c.b16 %v414, %v413
  %v486 = vpack.c.b16 %v416, %v415
  %v487 = vpack.c.b16 %v418, %v417
  %v488 = vpack.c.b16 %v420, %v419
  %v489 = vpack.c.b16 %v422, %v421
  %v490 = vpack.c.b16 %v424, %v423
  %v491 = vpack.c.b16 %v426, %v425
  %v492 = vpack.c.b16 %v428, %v427
  %557 = vmatpush.bf16.msra.mxu0 %v436
  %558 = vmatpush.bf16.msra.mxu0 %v435
  %559 = vmatpush.bf16.msra.mxu0 %v434
  %560 = vmatpush.bf16.msra.mxu0 %v433
  %561 = vmatpush.bf16.msra.mxu0 %v432
  %562 = vmatpush.bf16.msra.mxu0 %v431
  %563 = vmatpush.bf16.msra.mxu0 %v430
  %564 = vmatpush.bf16.msra.mxu0 %v429
  %565 = vmatmul.bf16.gmra.mxu0 %v157
  %v566 = vpop.f32.mrf.mxu0
  %v567 = vadd.f32 0.0, %v566
  %v568 = vpop.f32.mrf.mxu0
  %569 = vdwg.mxu0
  %570 = vmatpush.bf16.msra.mxu0 %v444
  %571 = vmatpush.bf16.msra.mxu0 %v443
  %572 = vmatpush.bf16.msra.mxu0 %v442
  %573 = vmatpush.bf16.msra.mxu0 %v441
  %574 = vmatpush.bf16.msra.mxu0 %v440
  %575 = vmatpush.bf16.msra.mxu0 %v439
  %576 = vmatpush.bf16.msra.mxu0 %v438
  %577 = vmatpush.bf16.msra.mxu0 %v437
  %578 = vmatmul.bf16.gmra.mxu0 %v158
  %v579 = vpop.f32.mrf.mxu0
  %v580 = vadd.f32 %v567, %v579
  %v581 = vpop.f32.mrf.mxu0
  %582 = vdwg.mxu0
  %583 = vmatpush.bf16.msra.mxu0 %v452
  %584 = vmatpush.bf16.msra.mxu0 %v451
  %585 = vmatpush.bf16.msra.mxu0 %v450
  %586 = vmatpush.bf16.msra.mxu0 %v449
  %587 = vmatpush.bf16.msra.mxu0 %v448
  %588 = vmatpush.bf16.msra.mxu0 %v447
  %589 = vmatpush.bf16.msra.mxu0 %v446
  %590 = vmatpush.bf16.msra.mxu0 %v445
  %591 = vmatmul.bf16.gmra.mxu0 %v159
  %v592 = vpop.f32.mrf.mxu0
  %v593 = vadd.f32 %v580, %v592
  %v594 = vpop.f32.mrf.mxu0
  %595 = vdwg.mxu0
  %596 = vmatpush.bf16.msra.mxu0 %v460
  %597 = vmatpush.bf16.msra.mxu0 %v459
  %598 = vmatpush.bf16.msra.mxu0 %v458
  %599 = vmatpush.bf16.msra.mxu0 %v457
  %600 = vmatpush.bf16.msra.mxu0 %v456
  %601 = vmatpush.bf16.msra.mxu0 %v455
  %602 = vmatpush.bf16.msra.mxu0 %v454
  %603 = vmatpush.bf16.msra.mxu0 %v453
  %604 = vmatmul.bf16.gmra.mxu0 %v160
  %v605 = vpop.f32.mrf.mxu0
  %v606 = vadd.f32 %v593, %v605
  %v607 = vpop.f32.mrf.mxu0
  %608 = vdwg.mxu0
  %609 = vmatpush.bf16.msra.mxu0 %v468
  %610 = vmatpush.bf16.msra.mxu0 %v467
  %611 = vmatpush.bf16.msra.mxu0 %v466
  %612 = vmatpush.bf16.msra.mxu0 %v465
  %613 = vmatpush.bf16.msra.mxu0 %v464
  %614 = vmatpush.bf16.msra.mxu0 %v463
  %615 = vmatpush.bf16.msra.mxu0 %v462
  %616 = vmatpush.bf16.msra.mxu0 %v461
  %617 = vmatmul.bf16.gmra.mxu0 %v161
  %v618 = vpop.f32.mrf.mxu0
  %v619 = vadd.f32 %v606, %v618
  %v620 = vpop.f32.mrf.mxu0
  %621 = vdwg.mxu0
  %622 = vmatpush.bf16.msra.mxu0 %v476
  %623 = vmatpush.bf16.msra.mxu0 %v475
  %624 = vmatpush.bf16.msra.mxu0 %v474
  %625 = vmatpush.bf16.msra.mxu0 %v473
  %626 = vmatpush.bf16.msra.mxu0 %v472
  %627 = vmatpush.bf16.msra.mxu0 %v471
  %628 = vmatpush.bf16.msra.mxu0 %v470
  %629 = vmatpush.bf16.msra.mxu0 %v469
  %630 = vmatmul.bf16.gmra.mxu0 %v162
  %v631 = vpop.f32.mrf.mxu0
  %v632 = vadd.f32 %v619, %v631
  %v633 = vpop.f32.mrf.mxu0
  %634 = vdwg.mxu0
  %635 = vmatpush.bf16.msra.mxu0 %v484
  %636 = vmatpush.bf16.msra.mxu0 %v483
  %637 = vmatpush.bf16.msra.mxu0 %v482
  %638 = vmatpush.bf16.msra.mxu0 %v481
  %639 = vmatpush.bf16.msra.mxu0 %v480
  %640 = vmatpush.bf16.msra.mxu0 %v479
  %641 = vmatpush.bf16.msra.mxu0 %v478
  %642 = vmatpush.bf16.msra.mxu0 %v477
  %643 = vmatmul.bf16.gmra.mxu0 %v163
  %v644 = vpop.f32.mrf.mxu0
  %v645 = vadd.f32 %v632, %v644
  %v646 = vpop.f32.mrf.mxu0
  %647 = vdwg.mxu0
  %648 = vmatpush.bf16.msra.mxu0 %v492
  %649 = vmatpush.bf16.msra.mxu0 %v491
  %650 = vmatpush.bf16.msra.mxu0 %v490
  %651 = vmatpush.bf16.msra.mxu0 %v489
  %652 = vmatpush.bf16.msra.mxu0 %v488
  %653 = vmatpush.bf16.msra.mxu0 %v487
  %654 = vmatpush.bf16.msra.mxu0 %v486
  %655 = vmatpush.bf16.msra.mxu0 %v485
  %656 = vmatmul.bf16.gmra.mxu0 %v164
  %v657 = vpop.f32.mrf.mxu0
  %v658 = vadd.f32 %v645, %v657
  %v659 = vpop.f32.mrf.mxu0
  %660 = vdwg.mxu0
  %661 = vst [vmem:[%s2] sm:$0xff] %v658
  %v662 = vrot.slane %v658, 4
  %v663 = vadd.f32 %v658, %v662
  %v664 = vrot.slane %v663, 2
  %v665 = vadd.f32 %v663, %v664
  %v666 = vrot.slane %v665, 1
  %v667 = vadd.f32 %v665, %v666
  %v668 = vmul.f32 %v658, %v658
  %v669 = vrot.slane %v668, 4
  %v670 = vadd.f32 %v668, %v669
  %v671 = vrot.slane %v670, 2
  %v672 = vadd.f32 %v670, %v671
  %v673 = vrot.slane %v672, 1
  %v674 = vadd.f32 %v672, %v673
  %vm675 = vcmask 1040384
  %v676 = vsel %vm675, %v667, %v674
  %vm677 = vcmask 1041408
  %v678 = vsel %vm677, %v676, 0.0
  %679 = vst [vmem:[%s3] sm:$0xff] %v678
  // Predicated region
  $region10: #{autoencoder_forward.21} parent=0 // pred_check
    _
  $region11: #{autoencoder_forward.21} parent=0 // pred_check_branch
    %681 = sbr.rel (0) target = $region13
  $region12: #{autoencoder_forward.21} parent=0 // pred_region
    _
  $region13: #{autoencoder_forward.21} parent=0 // pred_fallthru
    _
  // Predicated region
  $region14: #{autoencoder_forward.21} parent=0 // pred_check
    _
  $region15: #{autoencoder_forward.21} parent=0 // pred_check_branch
    %683 = sbr.rel (0) target = $region17
  $region16: #{autoencoder_forward.21} parent=0 // pred_region
    _
  $region17: #{autoencoder_forward.21} parent=0 // pred_fallthru
    _
  // Predicated region
  $region18: #{autoencoder_forward.21} parent=0 // pred_check
    _
  $region19: #{autoencoder_forward.21} parent=0 // pred_check_branch
    %685 = sbr.rel (0) target = $region21
  $region20: #{autoencoder_forward.21} parent=0 // pred_region
    _
  $region21: #{autoencoder_forward.21} parent=0 // pred_fallthru
    _
  // Predicated region
  $region22: #{autoencoder_forward.21} parent=0 // pred_check
    _
  $region23: #{autoencoder_forward.21} parent=0 // pred_check_branch
    %687 = sbr.rel (0) target = $region25
  $region24: #{autoencoder_forward.21} parent=0 // pred_region
    _
  $region25: #{autoencoder_forward.21} parent=0 // pred_fallthru
    _

// kernel: autoencoder_forward.23
$region0: #{autoencoder_forward.23}
  #allocation0 [shape = 'u32[]', space=smem, size = 0x4, offset = 0x4, fixed_abs, tag = 'smem constant byte address 0x4 - core index']
  #allocation1 [shape = 'u32[72,128]{1,0:T(1,128)}', space=vmem, size = 0x9000, scoped, tag = 'internal scratch']
  %s0 = inlined_call_operand.vmem [shape: bf16[8,2048], index: 0, kind: input, shape index: {}]
  %s1 = inlined_call_operand.vmem [shape: bf16[2048,128], index: 1, kind: input, shape index: {}]
  %s2 = inlined_call_operand.vmem [shape: f32[8,128], index: 2, kind: output, shape index: {0}]
  %s3 = inlined_call_operand.vmem [shape: f32[1,8,128], index: 3, kind: output, shape index: {1}]
  %4 = xla_tuple %s2, %s3
  %s5 = sld [smem:[#allocation0]]
  $region26: #{autoencoder_forward.23} parent=0
    _
  %s7 = ssub.s32 1, %s5
  %s8 = scalar_select 0, %s7, %s5
  // Predicated region
  $region2: #{autoencoder_forward.23} parent=0 // pred_check
    _
  $region3: #{autoencoder_forward.23} parent=0 // pred_check_branch
    %10 = sbr.rel (0) target = $region5
  $region4: #{autoencoder_forward.23} parent=0 // pred_region
    _
  $region5: #{autoencoder_forward.23} parent=0 // pred_fallthru
    _
  // Predicated region
  $region6: #{autoencoder_forward.23} parent=0 // pred_check
    _
  $region7: #{autoencoder_forward.23} parent=0 // pred_check_branch
    %12 = sbr.rel (0) target = $region9
  $region8: #{autoencoder_forward.23} parent=0 // pred_region
    _
  $region9: #{autoencoder_forward.23} parent=0 // pred_fallthru
    _
  %v13 = vld [vmem:[%s0] sm:$0xff]
  %v14 = vld [vmem:[%s0 + $0x8] sm:$0xff]
  %v15 = vld [vmem:[%s0 + $0x10] sm:$0xff]
  %v16 = vld [vmem:[%s0 + $0x18] sm:$0xff]
  %v17 = vld [vmem:[%s0 + $0x20] sm:$0xff]
  %v18 = vld [vmem:[%s0 + $0x28] sm:$0xff]
  %v19 = vld [vmem:[%s0 + $0x30] sm:$0xff]
  %v20 = vld [vmem:[%s0 + $0x38] sm:$0xff]
  %v21 = vld [vmem:[%s1] sm:$0xf]
  %v22 = vld [vmem:[%s1 + $0x4] sm:$0xf]
  %v23 = vld [vmem:[%s1 + $0x8] sm:$0xf]
  %v24 = vld [vmem:[%s1 + $0xc] sm:$0xf]
  %v25 = vld [vmem:[%s1 + $0x10] sm:$0xf]
  %v26 = vld [vmem:[%s1 + $0x14] sm:$0xf]
  %v27 = vld [vmem:[%s1 + $0x18] sm:$0xf]
  %v28 = vld [vmem:[%s1 + $0x1c] sm:$0xf]
  %v29 = vld [vmem:[%s1 + $0x20] sm:$0xf]
  %v30 = vld [vmem:[%s1 + $0x24] sm:$0xf]
  %v31 = vld [vmem:[%s1 + $0x28] sm:$0xf]
  %v32 = vld [vmem:[%s1 + $0x2c] sm:$0xf]
  %v33 = vld [vmem:[%s1 + $0x30] sm:$0xf]
  %v34 = vld [vmem:[%s1 + $0x34] sm:$0xf]
  %v35 = vld [vmem:[%s1 + $0x38] sm:$0xf]
  %v36 = vld [vmem:[%s1 + $0x3c] sm:$0xf]
  %v37 = vld [vmem:[%s1 + $0x40] sm:$0xf]
  %v38 = vld [vmem:[%s1 + $0x44] sm:$0xf]
  %v39 = vld [vmem:[%s1 + $0x48] sm:$0xf]
  %v40 = vld [vmem:[%s1 + $0x4c] sm:$0xf]
  %v41 = vld [vmem:[%s1 + $0x50] sm:$0xf]
  %v42 = vld [vmem:[%s1 + $0x54] sm:$0xf]
  %v43 = vld [vmem:[%s1 + $0x58] sm:$0xf]
  %v44 = vld [vmem:[%s1 + $0x5c] sm:$0xf]
  %v45 = vld [vmem:[%s1 + $0x60] sm:$0xf]
  %v46 = vld [vmem:[%s1 + $0x64] sm:$0xf]
  %v47 = vld [vmem:[%s1 + $0x68] sm:$0xf]
  %v48 = vld [vmem:[%s1 + $0x6c] sm:$0xf]
  %v49 = vld [vmem:[%s1 + $0x70] sm:$0xf]
  %v50 = vld [vmem:[%s1 + $0x74] sm:$0xf]
  %v51 = vld [vmem:[%s1 + $0x78] sm:$0xf]
  %v52 = vld [vmem:[%s1 + $0x7c] sm:$0xf]
  %v53 = vld [vmem:[%s1 + $0x80] sm:$0xf]
  %v54 = vld [vmem:[%s1 + $0x84] sm:$0xf]
  %v55 = vld [vmem:[%s1 + $0x88] sm:$0xf]
  %v56 = vld [vmem:[%s1 + $0x8c] sm:$0xf]
  %v57 = vld [vmem:[%s1 + $0x90] sm:$0xf]
  %v58 = vld [vmem:[%s1 + $0x94] sm:$0xf]
  %v59 = vld [vmem:[%s1 + $0x98] sm:$0xf]
  %v60 = vld [vmem:[%s1 + $0x9c] sm:$0xf]
  %v61 = vld [vmem:[%s1 + $0xa0] sm:$0xf]
  %v62 = vld [vmem:[%s1 + $0xa4] sm:$0xf]
  %v63 = vld [vmem:[%s1 + $0xa8] sm:$0xf]
  %v64 = vld [vmem:[%s1 + $0xac] sm:$0xf]
  %v65 = vld [vmem:[%s1 + $0xb0] sm:$0xf]
  %v66 = vld [vmem:[%s1 + $0xb4] sm:$0xf]
  %v67 = vld [vmem:[%s1 + $0xb8] sm:$0xf]
  %v68 = vld [vmem:[%s1 + $0xbc] sm:$0xf]
  %v69 = vld [vmem:[%s1 + $0xc0] sm:$0xf]
  %v70 = vld [vmem:[%s1 + $0xc4] sm:$0xf]
  %v71 = vld [vmem:[%s1 + $0xc8] sm:$0xf]
  %v72 = vld [vmem:[%s1 + $0xcc] sm:$0xf]
  %v73 = vld [vmem:[%s1 + $0xd0] sm:$0xf]
  %v74 = vld [vmem:[%s1 + $0xd4] sm:$0xf]
  %v75 = vld [vmem:[%s1 + $0xd8] sm:$0xf]
  %v76 = vld [vmem:[%s1 + $0xdc] sm:$0xf]
  %v77 = vld [vmem:[%s1 + $0xe0] sm:$0xf]
  %v78 = vld [vmem:[%s1 + $0xe4] sm:$0xf]
  %v79 = vld [vmem:[%s1 + $0xe8] sm:$0xf]
  %v80 = vld [vmem:[%s1 + $0xec] sm:$0xf]
  %v81 = vld [vmem:[%s1 + $0xf0] sm:$0xf]
  %v82 = vld [vmem:[%s1 + $0xf4] sm:$0xf]
  %v83 = vld [vmem:[%s1 + $0xf8] sm:$0xf]
  %v84 = vld [vmem:[%s1 + $0xfc] sm:$0xf]
  %v85 = vld [vmem:[%s1 + $0x100] sm:$0xf]
  %v86 = vld [vmem:[%s1 + $0x104] sm:$0xf]
  %v87 = vld [vmem:[%s1 + $0x108] sm:$0xf]
  %v88 = vld [vmem:[%s1 + $0x10c] sm:$0xf]
  %v89 = vld [vmem:[%s1 + $0x110] sm:$0xf]
  %v90 = vld [vmem:[%s1 + $0x114] sm:$0xf]
  %v91 = vld [vmem:[%s1 + $0x118] sm:$0xf]
  %v92 = vld [vmem:[%s1 + $0x11c] sm:$0xf]
  %v93 = vld [vmem:[%s1 + $0x120] sm:$0xf]
  %v94 = vld [vmem:[%s1 + $0x124] sm:$0xf]
  %v95 = vld [vmem:[%s1 + $0x128] sm:$0xf]
  %v96 = vld [vmem:[%s1 + $0x12c] sm:$0xf]
  %v97 = vld [vmem:[%s1 + $0x130] sm:$0xf]
  %v98 = vld [vmem:[%s1 + $0x134] sm:$0xf]
  %v99 = vld [vmem:[%s1 + $0x138] sm:$0xf]
  %v100 = vld [vmem:[%s1 + $0x13c] sm:$0xf]
  %v101 = vld [vmem:[%s1 + $0x140] sm:$0xf]
  %v102 = vld [vmem:[%s1 + $0x144] sm:$0xf]
  %v103 = vld [vmem:[%s1 + $0x148] sm:$0xf]
  %v104 = vld [vmem:[%s1 + $0x14c] sm:$0xf]
  %v105 = vld [vmem:[%s1 + $0x150] sm:$0xf]
  %v106 = vld [vmem:[%s1 + $0x154] sm:$0xf]
  %v107 = vld [vmem:[%s1 + $0x158] sm:$0xf]
  %v108 = vld [vmem:[%s1 + $0x15c] sm:$0xf]
  %v109 = vld [vmem:[%s1 + $0x160] sm:$0xf]
  %v110 = vld [vmem:[%s1 + $0x164] sm:$0xf]
  %v111 = vld [vmem:[%s1 + $0x168] sm:$0xf]
  %v112 = vld [vmem:[%s1 + $0x16c] sm:$0xf]
  %v113 = vld [vmem:[%s1 + $0x170] sm:$0xf]
  %v114 = vld [vmem:[%s1 + $0x174] sm:$0xf]
  %v115 = vld [vmem:[%s1 + $0x178] sm:$0xf]
  %v116 = vld [vmem:[%s1 + $0x17c] sm:$0xf]
  %v117 = vld [vmem:[%s1 + $0x180] sm:$0xf]
  %v118 = vld [vmem:[%s1 + $0x184] sm:$0xf]
  %v119 = vld [vmem:[%s1 + $0x188] sm:$0xf]
  %v120 = vld [vmem:[%s1 + $0x18c] sm:$0xf]
  %v121 = vld [vmem:[%s1 + $0x190] sm:$0xf]
  %v122 = vld [vmem:[%s1 + $0x194] sm:$0xf]
  %v123 = vld [vmem:[%s1 + $0x198] sm:$0xf]
  %v124 = vld [vmem:[%s1 + $0x19c] sm:$0xf]
  %v125 = vld [vmem:[%s1 + $0x1a0] sm:$0xf]
  %v126 = vld [vmem:[%s1 + $0x1a4] sm:$0xf]
  %v127 = vld [vmem:[%s1 + $0x1a8] sm:$0xf]
  %v128 = vld [vmem:[%s1 + $0x1ac] sm:$0xf]
  %v129 = vld [vmem:[%s1 + $0x1b0] sm:$0xf]
  %v130 = vld [vmem:[%s1 + $0x1b4] sm:$0xf]
  %v131 = vld [vmem:[%s1 + $0x1b8] sm:$0xf]
  %v132 = vld [vmem:[%s1 + $0x1bc] sm:$0xf]
  %v133 = vld [vmem:[%s1 + $0x1c0] sm:$0xf]
  %v134 = vld [vmem:[%s1 + $0x1c4] sm:$0xf]
  %v135 = vld [vmem:[%s1 + $0x1c8] sm:$0xf]
  %v136 = vld [vmem:[%s1 + $0x1cc] sm:$0xf]
  %v137 = vld [vmem:[%s1 + $0x1d0] sm:$0xf]
  %v138 = vld [vmem:[%s1 + $0x1d4] sm:$0xf]
  %v139 = vld [vmem:[%s1 + $0x1d8] sm:$0xf]
  %v140 = vld [vmem:[%s1 + $0x1dc] sm:$0xf]
  %v141 = vld [vmem:[%s1 + $0x1e0] sm:$0xf]
  %v142 = vld [vmem:[%s1 + $0x1e4] sm:$0xf]
  %v143 = vld [vmem:[%s1 + $0x1e8] sm:$0xf]
  %v144 = vld [vmem:[%s1 + $0x1ec] sm:$0xf]
  %v145 = vld [vmem:[%s1 + $0x1f0] sm:$0xf]
  %v146 = vld [vmem:[%s1 + $0x1f4] sm:$0xf]
  %v147 = vld [vmem:[%s1 + $0x1f8] sm:$0xf]
  %v148 = vld [vmem:[%s1 + $0x1fc] sm:$0xf]
  %v149 = vld [vmem:[%s1 + $0x200] sm:$0xf]
  %v150 = vld [vmem:[%s1 + $0x204] sm:$0xf]
  %v151 = vld [vmem:[%s1 + $0x208] sm:$0xf]
  %v152 = vld [vmem:[%s1 + $0x20c] sm:$0xf]
  %v153 = vld [vmem:[%s1 + $0x210] sm:$0xf]
  %v154 = vld [vmem:[%s1 + $0x214] sm:$0xf]
  %v155 = vld [vmem:[%s1 + $0x218] sm:$0xf]
  %v156 = vld [vmem:[%s1 + $0x21c] sm:$0xf]
  %v157 = vld [vmem:[%s1 + $0x220] sm:$0xf]
  %v158 = vld [vmem:[%s1 + $0x224] sm:$0xf]
  %v159 = vld [vmem:[%s1 + $0x228] sm:$0xf]
  %v160 = vld [vmem:[%s1 + $0x22c] sm:$0xf]
  %v161 = vld [vmem:[%s1 + $0x230] sm:$0xf]
  %v162 = vld [vmem:[%s1 + $0x234] sm:$0xf]
  %v163 = vld [vmem:[%s1 + $0x238] sm:$0xf]
  %v164 = vld [vmem:[%s1 + $0x23c] sm:$0xf]
  %v165 = vld [vmem:[%s1 + $0x240] sm:$0xf]
  %v166 = vld [vmem:[%s1 + $0x244] sm:$0xf]
  %v167 = vld [vmem:[%s1 + $0x248] sm:$0xf]
  %v168 = vld [vmem:[%s1 + $0x24c] sm:$0xf]
  %v169 = vld [vmem:[%s1 + $0x250] sm:$0xf]
  %v170 = vld [vmem:[%s1 + $0x254] sm:$0xf]
  %v171 = vld [vmem:[%s1 + $0x258] sm:$0xf]
  %v172 = vld [vmem:[%s1 + $0x25c] sm:$0xf]
  %v173 = vld [vmem:[%s1 + $0x260] sm:$0xf]
  %v174 = vld [vmem:[%s1 + $0x264] sm:$0xf]
  %v175 = vld [vmem:[%s1 + $0x268] sm:$0xf]
  %v176 = vld [vmem:[%s1 + $0x26c] sm:$0xf]
  %v177 = vld [vmem:[%s1 + $0x270] sm:$0xf]
  %v178 = vld [vmem:[%s1 + $0x274] sm:$0xf]
  %v179 = vld [vmem:[%s1 + $0x278] sm:$0xf]
  %v180 = vld [vmem:[%s1 + $0x27c] sm:$0xf]
  %v181 = vld [vmem:[%s1 + $0x280] sm:$0xf]
  %v182 = vld [vmem:[%s1 + $0x284] sm:$0xf]
  %v183 = vld [vmem:[%s1 + $0x288] sm:$0xf]
  %v184 = vld [vmem:[%s1 + $0x28c] sm:$0xf]
  %v185 = vld [vmem:[%s1 + $0x290] sm:$0xf]
  %v186 = vld [vmem:[%s1 + $0x294] sm:$0xf]
  %v187 = vld [vmem:[%s1 + $0x298] sm:$0xf]
  %v188 = vld [vmem:[%s1 + $0x29c] sm:$0xf]
  %v189 = vld [vmem:[%s1 + $0x2a0] sm:$0xf]
  %v190 = vld [vmem:[%s1 + $0x2a4] sm:$0xf]
  %v191 = vld [vmem:[%s1 + $0x2a8] sm:$0xf]
  %v192 = vld [vmem:[%s1 + $0x2ac] sm:$0xf]
  %v193 = vld [vmem:[%s1 + $0x2b0] sm:$0xf]
  %v194 = vld [vmem:[%s1 + $0x2b4] sm:$0xf]
  %v195 = vld [vmem:[%s1 + $0x2b8] sm:$0xf]
  %v196 = vld [vmem:[%s1 + $0x2bc] sm:$0xf]
  %v197 = vld [vmem:[%s1 + $0x2c0] sm:$0xf]
  %v198 = vld [vmem:[%s1 + $0x2c4] sm:$0xf]
  %v199 = vld [vmem:[%s1 + $0x2c8] sm:$0xf]
  %v200 = vld [vmem:[%s1 + $0x2cc] sm:$0xf]
  %v201 = vld [vmem:[%s1 + $0x2d0] sm:$0xf]
  %v202 = vld [vmem:[%s1 + $0x2d4] sm:$0xf]
  %v203 = vld [vmem:[%s1 + $0x2d8] sm:$0xf]
  %v204 = vld [vmem:[%s1 + $0x2dc] sm:$0xf]
  %v205 = vld [vmem:[%s1 + $0x2e0] sm:$0xf]
  %v206 = vld [vmem:[%s1 + $0x2e4] sm:$0xf]
  %v207 = vld [vmem:[%s1 + $0x2e8] sm:$0xf]
  %v208 = vld [vmem:[%s1 + $0x2ec] sm:$0xf]
  %v209 = vld [vmem:[%s1 + $0x2f0] sm:$0xf]
  %v210 = vld [vmem:[%s1 + $0x2f4] sm:$0xf]
  %v211 = vld [vmem:[%s1 + $0x2f8] sm:$0xf]
  %v212 = vld [vmem:[%s1 + $0x2fc] sm:$0xf]
  %v213 = vld [vmem:[%s1 + $0x300] sm:$0xf]
  %v214 = vld [vmem:[%s1 + $0x304] sm:$0xf]
  %v215 = vld [vmem:[%s1 + $0x308] sm:$0xf]
  %v216 = vld [vmem:[%s1 + $0x30c] sm:$0xf]
  %v217 = vld [vmem:[%s1 + $0x310] sm:$0xf]
  %v218 = vld [vmem:[%s1 + $0x314] sm:$0xf]
  %v219 = vld [vmem:[%s1 + $0x318] sm:$0xf]
  %v220 = vld [vmem:[%s1 + $0x31c] sm:$0xf]
  %v221 = vld [vmem:[%s1 + $0x320] sm:$0xf]
  %v222 = vld [vmem:[%s1 + $0x324] sm:$0xf]
  %v223 = vld [vmem:[%s1 + $0x328] sm:$0xf]
  %v224 = vld [vmem:[%s1 + $0x32c] sm:$0xf]
  %v225 = vld [vmem:[%s1 + $0x330] sm:$0xf]
  %v226 = vld [vmem:[%s1 + $0x334] sm:$0xf]
  %v227 = vld [vmem:[%s1 + $0x338] sm:$0xf]
  %v228 = vld [vmem:[%s1 + $0x33c] sm:$0xf]
  %v229 = vld [vmem:[%s1 + $0x340] sm:$0xf]
  %v230 = vld [vmem:[%s1 + $0x344] sm:$0xf]
  %v231 = vld [vmem:[%s1 + $0x348] sm:$0xf]
  %v232 = vld [vmem:[%s1 + $0x34c] sm:$0xf]
  %v233 = vld [vmem:[%s1 + $0x350] sm:$0xf]
  %v234 = vld [vmem:[%s1 + $0x354] sm:$0xf]
  %v235 = vld [vmem:[%s1 + $0x358] sm:$0xf]
  %v236 = vld [vmem:[%s1 + $0x35c] sm:$0xf]
  %v237 = vld [vmem:[%s1 + $0x360] sm:$0xf]
  %v238 = vld [vmem:[%s1 + $0x364] sm:$0xf]
  %v239 = vld [vmem:[%s1 + $0x368] sm:$0xf]
  %v240 = vld [vmem:[%s1 + $0x36c] sm:$0xf]
  %v241 = vld [vmem:[%s1 + $0x370] sm:$0xf]
  %v242 = vld [vmem:[%s1 + $0x374] sm:$0xf]
  %v243 = vld [vmem:[%s1 + $0x378] sm:$0xf]
  %v244 = vld [vmem:[%s1 + $0x37c] sm:$0xf]
  %v245 = vld [vmem:[%s1 + $0x380] sm:$0xf]
  %v246 = vld [vmem:[%s1 + $0x384] sm:$0xf]
  %v247 = vld [vmem:[%s1 + $0x388] sm:$0xf]
  %v248 = vld [vmem:[%s1 + $0x38c] sm:$0xf]
  %v249 = vld [vmem:[%s1 + $0x390] sm:$0xf]
  %v250 = vld [vmem:[%s1 + $0x394] sm:$0xf]
  %v251 = vld [vmem:[%s1 + $0x398] sm:$0xf]
  %v252 = vld [vmem:[%s1 + $0x39c] sm:$0xf]
  %v253 = vld [vmem:[%s1 + $0x3a0] sm:$0xf]
  %v254 = vld [vmem:[%s1 + $0x3a4] sm:$0xf]
  %v255 = vld [vmem:[%s1 + $0x3a8] sm:$0xf]
  %v256 = vld [vmem:[%s1 + $0x3ac] sm:$0xf]
  %v257 = vld [vmem:[%s1 + $0x3b0] sm:$0xf]
  %v258 = vld [vmem:[%s1 + $0x3b4] sm:$0xf]
  %v259 = vld [vmem:[%s1 + $0x3b8] sm:$0xf]
  %v260 = vld [vmem:[%s1 + $0x3bc] sm:$0xf]
  %v261 = vld [vmem:[%s1 + $0x3c0] sm:$0xf]
  %v262 = vld [vmem:[%s1 + $0x3c4] sm:$0xf]
  %v263 = vld [vmem:[%s1 + $0x3c8] sm:$0xf]
  %v264 = vld [vmem:[%s1 + $0x3cc] sm:$0xf]
  %v265 = vld [vmem:[%s1 + $0x3d0] sm:$0xf]
  %v266 = vld [vmem:[%s1 + $0x3d4] sm:$0xf]
  %v267 = vld [vmem:[%s1 + $0x3d8] sm:$0xf]
  %v268 = vld [vmem:[%s1 + $0x3dc] sm:$0xf]
  %v269 = vld [vmem:[%s1 + $0x3e0] sm:$0xf]
  %v270 = vld [vmem:[%s1 + $0x3e4] sm:$0xf]
  %v271 = vld [vmem:[%s1 + $0x3e8] sm:$0xf]
  %v272 = vld [vmem:[%s1 + $0x3ec] sm:$0xf]
  %v273 = vld [vmem:[%s1 + $0x3f0] sm:$0xf]
  %v274 = vld [vmem:[%s1 + $0x3f4] sm:$0xf]
  %v275 = vld [vmem:[%s1 + $0x3f8] sm:$0xf]
  %v276 = vld [vmem:[%s1 + $0x3fc] sm:$0xf]
  %v285 = vunpack.c.l.b16 %v13
  %v286 = vunpack.c.h.b16 %v13
  %v287 = vunpack.c.l.b16 %v14
  %v288 = vunpack.c.h.b16 %v14
  %v289 = vunpack.c.l.b16 %v15
  %v290 = vunpack.c.h.b16 %v15
  %v291 = vunpack.c.l.b16 %v16
  %v292 = vunpack.c.h.b16 %v16
  %v293 = vunpack.c.l.b16 %v17
  %v294 = vunpack.c.h.b16 %v17
  %v295 = vunpack.c.l.b16 %v18
  %v296 = vunpack.c.h.b16 %v18
  %v297 = vunpack.c.l.b16 %v19
  %v298 = vunpack.c.h.b16 %v19
  %v299 = vunpack.c.l.b16 %v20
  %v300 = vunpack.c.h.b16 %v20
  %v301 = vpack.c.b16 %v285, %v285
  %v302 = vpack.c.b16 %v286, %v286
  %v303 = vpack.c.b16 %v287, %v287
  %v304 = vpack.c.b16 %v288, %v288
  %v305 = vpack.c.b16 %v289, %v289
  %v306 = vpack.c.b16 %v290, %v290
  %v307 = vpack.c.b16 %v291, %v291
  %v308 = vpack.c.b16 %v292, %v292
  %v309 = vpack.c.b16 %v293, %v293
  %v310 = vpack.c.b16 %v294, %v294
  %v311 = vpack.c.b16 %v295, %v295
  %v312 = vpack.c.b16 %v296, %v296
  %v313 = vpack.c.b16 %v297, %v297
  %v314 = vpack.c.b16 %v298, %v298
  %v315 = vpack.c.b16 %v299, %v299
  %v316 = vpack.c.b16 %v300, %v300
  %v589 = vunpack.c.l.b16 %v21
  %v590 = vunpack.c.l.b16 %v22
  %v591 = vunpack.c.l.b16 %v23
  %v592 = vunpack.c.l.b16 %v24
  %v593 = vunpack.c.l.b16 %v25
  %v594 = vunpack.c.l.b16 %v26
  %v595 = vunpack.c.l.b16 %v27
  %v596 = vunpack.c.l.b16 %v28
  %v597 = vunpack.c.l.b16 %v29
  %v598 = vunpack.c.l.b16 %v30
  %v599 = vunpack.c.l.b16 %v31
  %v600 = vunpack.c.l.b16 %v32
  %v601 = vunpack.c.l.b16 %v33
  %v602 = vunpack.c.l.b16 %v34
  %v603 = vunpack.c.l.b16 %v35
  %v604 = vunpack.c.l.b16 %v36
  %v605 = vunpack.c.l.b16 %v37
  %v606 = vunpack.c.l.b16 %v38
  %v607 = vunpack.c.l.b16 %v39
  %v608 = vunpack.c.l.b16 %v40
  %v609 = vunpack.c.l.b16 %v41
  %v610 = vunpack.c.l.b16 %v42
  %v611 = vunpack.c.l.b16 %v43
  %v612 = vunpack.c.l.b16 %v44
  %v613 = vunpack.c.l.b16 %v45
  %v614 = vunpack.c.l.b16 %v46
  %v615 = vunpack.c.l.b16 %v47
  %v616 = vunpack.c.l.b16 %v48
  %v617 = vunpack.c.l.b16 %v49
  %v618 = vunpack.c.l.b16 %v50
  %v619 = vunpack.c.l.b16 %v51
  %v620 = vunpack.c.l.b16 %v52
  %v621 = vunpack.c.l.b16 %v53
  %v622 = vunpack.c.l.b16 %v54
  %v623 = vunpack.c.l.b16 %v55
  %v624 = vunpack.c.l.b16 %v56
  %v625 = vunpack.c.l.b16 %v57
  %v626 = vunpack.c.l.b16 %v58
  %v627 = vunpack.c.l.b16 %v59
  %v628 = vunpack.c.l.b16 %v60
  %v629 = vunpack.c.l.b16 %v61
  %v630 = vunpack.c.l.b16 %v62
  %v631 = vunpack.c.l.b16 %v63
  %v632 = vunpack.c.l.b16 %v64
  %v633 = vunpack.c.l.b16 %v65
  %v634 = vunpack.c.l.b16 %v66
  %v635 = vunpack.c.l.b16 %v67
  %v636 = vunpack.c.l.b16 %v68
  %v637 = vunpack.c.l.b16 %v69
  %v638 = vunpack.c.l.b16 %v70
  %v639 = vunpack.c.l.b16 %v71
  %v640 = vunpack.c.l.b16 %v72
  %v641 = vunpack.c.l.b16 %v73
  %v642 = vunpack.c.l.b16 %v74
  %v643 = vunpack.c.l.b16 %v75
  %v644 = vunpack.c.l.b16 %v76
  %v645 = vunpack.c.l.b16 %v77
  %v646 = vunpack.c.l.b16 %v78
  %v647 = vunpack.c.l.b16 %v79
  %v648 = vunpack.c.l.b16 %v80
  %v649 = vunpack.c.l.b16 %v81
  %v650 = vunpack.c.l.b16 %v82
  %v651 = vunpack.c.l.b16 %v83
  %v652 = vunpack.c.l.b16 %v84
  %v653 = vunpack.c.l.b16 %v85
  %v654 = vunpack.c.l.b16 %v86
  %v655 = vunpack.c.l.b16 %v87
  %v656 = vunpack.c.l.b16 %v88
  %v657 = vunpack.c.l.b16 %v89
  %v658 = vunpack.c.l.b16 %v90
  %v659 = vunpack.c.l.b16 %v91
  %v660 = vunpack.c.l.b16 %v92
  %v661 = vunpack.c.l.b16 %v93
  %v662 = vunpack.c.l.b16 %v94
  %v663 = vunpack.c.l.b16 %v95
  %v664 = vunpack.c.l.b16 %v96
  %v665 = vunpack.c.l.b16 %v97
  %v666 = vunpack.c.l.b16 %v98
  %v667 = vunpack.c.l.b16 %v99
  %v668 = vunpack.c.l.b16 %v100
  %v669 = vunpack.c.l.b16 %v101
  %v670 = vunpack.c.l.b16 %v102
  %v671 = vunpack.c.l.b16 %v103
  %v672 = vunpack.c.l.b16 %v104
  %v673 = vunpack.c.l.b16 %v105
  %v674 = vunpack.c.l.b16 %v106
  %v675 = vunpack.c.l.b16 %v107
  %v676 = vunpack.c.l.b16 %v108
  %v677 = vunpack.c.l.b16 %v109
  %v678 = vunpack.c.l.b16 %v110
  %v679 = vunpack.c.l.b16 %v111
  %v680 = vunpack.c.l.b16 %v112
  %v681 = vunpack.c.l.b16 %v113
  %v682 = vunpack.c.l.b16 %v114
  %v683 = vunpack.c.l.b16 %v115
  %v684 = vunpack.c.l.b16 %v116
  %v685 = vunpack.c.l.b16 %v117
  %v686 = vunpack.c.l.b16 %v118
  %v687 = vunpack.c.l.b16 %v119
  %v688 = vunpack.c.l.b16 %v120
  %v689 = vunpack.c.l.b16 %v121
  %v690 = vunpack.c.l.b16 %v122
  %v691 = vunpack.c.l.b16 %v123
  %v692 = vunpack.c.l.b16 %v124
  %v693 = vunpack.c.l.b16 %v125
  %v694 = vunpack.c.l.b16 %v126
  %v695 = vunpack.c.l.b16 %v127
  %v696 = vunpack.c.l.b16 %v128
  %v697 = vunpack.c.l.b16 %v129
  %v698 = vunpack.c.l.b16 %v130
  %v699 = vunpack.c.l.b16 %v131
  %v700 = vunpack.c.l.b16 %v132
  %v701 = vunpack.c.l.b16 %v133
  %v702 = vunpack.c.l.b16 %v134
  %v703 = vunpack.c.l.b16 %v135
  %v704 = vunpack.c.l.b16 %v136
  %v705 = vunpack.c.l.b16 %v137
  %v706 = vunpack.c.l.b16 %v138
  %v707 = vunpack.c.l.b16 %v139
  %v708 = vunpack.c.l.b16 %v140
  %v709 = vunpack.c.l.b16 %v141
  %v710 = vunpack.c.l.b16 %v142
  %v711 = vunpack.c.l.b16 %v143
  %v712 = vunpack.c.l.b16 %v144
  %v713 = vunpack.c.l.b16 %v145
  %v714 = vunpack.c.l.b16 %v146
  %v715 = vunpack.c.l.b16 %v147
  %v716 = vunpack.c.l.b16 %v148
  %v717 = vunpack.c.l.b16 %v149
  %v718 = vunpack.c.l.b16 %v150
  %v719 = vunpack.c.l.b16 %v151
  %v720 = vunpack.c.l.b16 %v152
  %v721 = vunpack.c.l.b16 %v153
  %v722 = vunpack.c.l.b16 %v154
  %v723 = vunpack.c.l.b16 %v155
  %v724 = vunpack.c.l.b16 %v156
  %v725 = vunpack.c.l.b16 %v157
  %v726 = vunpack.c.l.b16 %v158
  %v727 = vunpack.c.l.b16 %v159
  %v728 = vunpack.c.l.b16 %v160
  %v729 = vunpack.c.l.b16 %v161
  %v730 = vunpack.c.l.b16 %v162
  %v731 = vunpack.c.l.b16 %v163
  %v732 = vunpack.c.l.b16 %v164
  %v733 = vunpack.c.l.b16 %v165
  %v734 = vunpack.c.l.b16 %v166
  %v735 = vunpack.c.l.b16 %v167
  %v736 = vunpack.c.l.b16 %v168
  %v737 = vunpack.c.l.b16 %v169
  %v738 = vunpack.c.l.b16 %v170
  %v739 = vunpack.c.l.b16 %v171
  %v740 = vunpack.c.l.b16 %v172
  %v741 = vunpack.c.l.b16 %v173
  %v742 = vunpack.c.l.b16 %v174
  %v743 = vunpack.c.l.b16 %v175
  %v744 = vunpack.c.l.b16 %v176
  %v745 = vunpack.c.l.b16 %v177
  %v746 = vunpack.c.l.b16 %v178
  %v747 = vunpack.c.l.b16 %v179
  %v748 = vunpack.c.l.b16 %v180
  %v749 = vunpack.c.l.b16 %v181
  %v750 = vunpack.c.l.b16 %v182
  %v751 = vunpack.c.l.b16 %v183
  %v752 = vunpack.c.l.b16 %v184
  %v753 = vunpack.c.l.b16 %v185
  %v754 = vunpack.c.l.b16 %v186
  %v755 = vunpack.c.l.b16 %v187
  %v756 = vunpack.c.l.b16 %v188
  %v757 = vunpack.c.l.b16 %v189
  %v758 = vunpack.c.l.b16 %v190
  %v759 = vunpack.c.l.b16 %v191
  %v760 = vunpack.c.l.b16 %v192
  %v761 = vunpack.c.l.b16 %v193
  %v762 = vunpack.c.l.b16 %v194
  %v763 = vunpack.c.l.b16 %v195
  %v764 = vunpack.c.l.b16 %v196
  %v765 = vunpack.c.l.b16 %v197
  %v766 = vunpack.c.l.b16 %v198
  %v767 = vunpack.c.l.b16 %v199
  %v768 = vunpack.c.l.b16 %v200
  %v769 = vunpack.c.l.b16 %v201
  %v770 = vunpack.c.l.b16 %v202
  %v771 = vunpack.c.l.b16 %v203
  %v772 = vunpack.c.l.b16 %v204
  %v773 = vunpack.c.l.b16 %v205
  %v774 = vunpack.c.l.b16 %v206
  %v775 = vunpack.c.l.b16 %v207
  %v776 = vunpack.c.l.b16 %v208
  %v777 = vunpack.c.l.b16 %v209
  %v778 = vunpack.c.l.b16 %v210
  %v779 = vunpack.c.l.b16 %v211
  %v780 = vunpack.c.l.b16 %v212
  %v781 = vunpack.c.l.b16 %v213
  %v782 = vunpack.c.l.b16 %v214
  %v783 = vunpack.c.l.b16 %v215
  %v784 = vunpack.c.l.b16 %v216
  %v785 = vunpack.c.l.b16 %v217
  %v786 = vunpack.c.l.b16 %v218
  %v787 = vunpack.c.l.b16 %v219
  %v788 = vunpack.c.l.b16 %v220
  %v789 = vunpack.c.l.b16 %v221
  %v790 = vunpack.c.l.b16 %v222
  %v791 = vunpack.c.l.b16 %v223
  %v792 = vunpack.c.l.b16 %v224
  %v793 = vunpack.c.l.b16 %v225
  %v794 = vunpack.c.l.b16 %v226
  %v795 = vunpack.c.l.b16 %v227
  %v796 = vunpack.c.l.b16 %v228
  %v797 = vunpack.c.l.b16 %v229
  %v798 = vunpack.c.l.b16 %v230
  %v799 = vunpack.c.l.b16 %v231
  %v800 = vunpack.c.l.b16 %v232
  %v801 = vunpack.c.l.b16 %v233
  %v802 = vunpack.c.l.b16 %v234
  %v803 = vunpack.c.l.b16 %v235
  %v804 = vunpack.c.l.b16 %v236
  %v805 = vunpack.c.l.b16 %v237
  %v806 = vunpack.c.l.b16 %v238
  %v807 = vunpack.c.l.b16 %v239
  %v808 = vunpack.c.l.b16 %v240
  %v809 = vunpack.c.l.b16 %v241
  %v810 = vunpack.c.l.b16 %v242
  %v811 = vunpack.c.l.b16 %v243
  %v812 = vunpack.c.l.b16 %v244
  %v813 = vunpack.c.l.b16 %v245
  %v814 = vunpack.c.l.b16 %v246
  %v815 = vunpack.c.l.b16 %v247
  %v816 = vunpack.c.l.b16 %v248
  %v817 = vunpack.c.l.b16 %v249
  %v818 = vunpack.c.l.b16 %v250
  %v819 = vunpack.c.l.b16 %v251
  %v820 = vunpack.c.l.b16 %v252
  %v821 = vunpack.c.l.b16 %v253
  %v822 = vunpack.c.l.b16 %v254
  %v823 = vunpack.c.l.b16 %v255
  %v824 = vunpack.c.l.b16 %v256
  %v825 = vunpack.c.l.b16 %v257
  %v826 = vunpack.c.l.b16 %v258
  %v827 = vunpack.c.l.b16 %v259
  %v828 = vunpack.c.l.b16 %v260
  %v829 = vunpack.c.l.b16 %v261
  %v830 = vunpack.c.l.b16 %v262
  %v831 = vunpack.c.l.b16 %v263
  %v832 = vunpack.c.l.b16 %v264
  %v833 = vunpack.c.l.b16 %v265
  %v834 = vunpack.c.l.b16 %v266
  %v835 = vunpack.c.l.b16 %v267
  %v836 = vunpack.c.l.b16 %v268
  %v837 = vunpack.c.l.b16 %v269
  %v838 = vunpack.c.l.b16 %v270
  %v839 = vunpack.c.l.b16 %v271
  %v840 = vunpack.c.l.b16 %v272
  %v841 = vunpack.c.l.b16 %v273
  %v842 = vunpack.c.l.b16 %v274
  %v843 = vunpack.c.l.b16 %v275
  %v844 = vunpack.c.l.b16 %v276
  %v845 = vpack.c.b16 %v590, %v589
  %v846 = vpack.c.b16 %v592, %v591
  %v847 = vpack.c.b16 %v594, %v593
  %v848 = vpack.c.b16 %v596, %v595
  %v849 = vpack.c.b16 %v598, %v597
  %v850 = vpack.c.b16 %v600, %v599
  %v851 = vpack.c.b16 %v602, %v601
  %v852 = vpack.c.b16 %v604, %v603
  %v853 = vpack.c.b16 %v606, %v605
  %v854 = vpack.c.b16 %v608, %v607
  %v855 = vpack.c.b16 %v610, %v609
  %v856 = vpack.c.b16 %v612, %v611
  %v857 = vpack.c.b16 %v614, %v613
  %v858 = vpack.c.b16 %v616, %v615
  %v859 = vpack.c.b16 %v618, %v617
  %v860 = vpack.c.b16 %v620, %v619
  %v861 = vpack.c.b16 %v622, %v621
  %v862 = vpack.c.b16 %v624, %v623
  %v863 = vpack.c.b16 %v626, %v625
  %v864 = vpack.c.b16 %v628, %v627
  %v865 = vpack.c.b16 %v630, %v629
  %v866 = vpack.c.b16 %v632, %v631
  %v867 = vpack.c.b16 %v634, %v633
  %v868 = vpack.c.b16 %v636, %v635
  %v869 = vpack.c.b16 %v638, %v637
  %v870 = vpack.c.b16 %v640, %v639
  %v871 = vpack.c.b16 %v642, %v641
  %v872 = vpack.c.b16 %v644, %v643
  %v873 = vpack.c.b16 %v646, %v645
  %v874 = vpack.c.b16 %v648, %v647
  %v875 = vpack.c.b16 %v650, %v649
  %v876 = vpack.c.b16 %v652, %v651
  %v877 = vpack.c.b16 %v654, %v653
  %v878 = vpack.c.b16 %v656, %v655
  %v879 = vpack.c.b16 %v658, %v657
  %v880 = vpack.c.b16 %v660, %v659
  %v881 = vpack.c.b16 %v662, %v661
  %v882 = vpack.c.b16 %v664, %v663
  %v883 = vpack.c.b16 %v666, %v665
  %v884 = vpack.c.b16 %v668, %v667
  %v885 = vpack.c.b16 %v670, %v669
  %v886 = vpack.c.b16 %v672, %v671
  %v887 = vpack.c.b16 %v674, %v673
  %v888 = vpack.c.b16 %v676, %v675
  %v889 = vpack.c.b16 %v678, %v677
  %v890 = vpack.c.b16 %v680, %v679
  %v891 = vpack.c.b16 %v682, %v681
  %v892 = vpack.c.b16 %v684, %v683
  %v893 = vpack.c.b16 %v686, %v685
  %v894 = vpack.c.b16 %v688, %v687
  %v895 = vpack.c.b16 %v690, %v689
  %v896 = vpack.c.b16 %v692, %v691
  %v897 = vpack.c.b16 %v694, %v693
  %v898 = vpack.c.b16 %v696, %v695
  %v899 = vpack.c.b16 %v698, %v697
  %v900 = vpack.c.b16 %v700, %v699
  %v901 = vpack.c.b16 %v702, %v701
  %v902 = vpack.c.b16 %v704, %v703
  %v903 = vpack.c.b16 %v706, %v705
  %v904 = vpack.c.b16 %v708, %v707
  %v905 = vpack.c.b16 %v710, %v709
  %v906 = vpack.c.b16 %v712, %v711
  %v907 = vpack.c.b16 %v714, %v713
  %v908 = vpack.c.b16 %v716, %v715
  %v909 = vpack.c.b16 %v718, %v717
  %v910 = vpack.c.b16 %v720, %v719
  %v911 = vpack.c.b16 %v722, %v721
  %v912 = vpack.c.b16 %v724, %v723
  %v913 = vpack.c.b16 %v726, %v725
  %v914 = vpack.c.b16 %v728, %v727
  %v915 = vpack.c.b16 %v730, %v729
  %v916 = vpack.c.b16 %v732, %v731
  %v917 = vpack.c.b16 %v734, %v733
  %v918 = vpack.c.b16 %v736, %v735
  %v919 = vpack.c.b16 %v738, %v737
  %v920 = vpack.c.b16 %v740, %v739
  %v921 = vpack.c.b16 %v742, %v741
  %v922 = vpack.c.b16 %v744, %v743
  %v923 = vpack.c.b16 %v746, %v745
  %v924 = vpack.c.b16 %v748, %v747
  %v925 = vpack.c.b16 %v750, %v749
  %v926 = vpack.c.b16 %v752, %v751
  %v927 = vpack.c.b16 %v754, %v753
  %v928 = vpack.c.b16 %v756, %v755
  %v929 = vpack.c.b16 %v758, %v757
  %v930 = vpack.c.b16 %v760, %v759
  %v931 = vpack.c.b16 %v762, %v761
  %v932 = vpack.c.b16 %v764, %v763
  %v933 = vpack.c.b16 %v766, %v765
  %v934 = vpack.c.b16 %v768, %v767
  %v935 = vpack.c.b16 %v770, %v769
  %v936 = vpack.c.b16 %v772, %v771
  %v937 = vpack.c.b16 %v774, %v773
  %v938 = vpack.c.b16 %v776, %v775
  %v939 = vpack.c.b16 %v778, %v777
  %v940 = vpack.c.b16 %v780, %v779
  %v941 = vpack.c.b16 %v782, %v781
  %v942 = vpack.c.b16 %v784, %v783
  %v943 = vpack.c.b16 %v786, %v785
  %v944 = vpack.c.b16 %v788, %v787
  %v945 = vpack.c.b16 %v790, %v789
  %v946 = vpack.c.b16 %v792, %v791
  %v947 = vpack.c.b16 %v794, %v793
  %v948 = vpack.c.b16 %v796, %v795
  %v949 = vpack.c.b16 %v798, %v797
  %v950 = vpack.c.b16 %v800, %v799
  %v951 = vpack.c.b16 %v802, %v801
  %v952 = vpack.c.b16 %v804, %v803
  %v953 = vpack.c.b16 %v806, %v805
  %v954 = vpack.c.b16 %v808, %v807
  %v955 = vpack.c.b16 %v810, %v809
  %v956 = vpack.c.b16 %v812, %v811
  %v957 = vpack.c.b16 %v814, %v813
  %v958 = vpack.c.b16 %v816, %v815
  %v959 = vpack.c.b16 %v818, %v817
  %v960 = vpack.c.b16 %v820, %v819
  %v961 = vpack.c.b16 %v822, %v821
  %v962 = vpack.c.b16 %v824, %v823
  %v963 = vpack.c.b16 %v826, %v825
  %v964 = vpack.c.b16 %v828, %v827
  %v965 = vpack.c.b16 %v830, %v829
  %v966 = vpack.c.b16 %v832, %v831
  %v967 = vpack.c.b16 %v834, %v833
  %v968 = vpack.c.b16 %v836, %v835
  %v969 = vpack.c.b16 %v838, %v837
  %v970 = vpack.c.b16 %v840, %v839
  %v971 = vpack.c.b16 %v842, %v841
  %v972 = vpack.c.b16 %v844, %v843
  %1101 = vmatpush.bf16.msra.mxu0 %v852
  %1102 = vmatpush.bf16.msra.mxu0 %v851
  %1103 = vmatpush.bf16.msra.mxu0 %v850
  %1104 = vmatpush.bf16.msra.mxu0 %v849
  %1105 = vmatpush.bf16.msra.mxu0 %v848
  %1106 = vmatpush.bf16.msra.mxu0 %v847
  %1107 = vmatpush.bf16.msra.mxu0 %v846
  %1108 = vmatpush.bf16.msra.mxu0 %v845
  %1109 = vmatmul.bf16.gmra.mxu0 %v301
  %v1110 = vpop.f32.mrf.mxu0
  %v1111 = vadd.f32 0.0, %v1110
  %v1112 = vpop.f32.mrf.mxu0
  %1113 = vdwg.mxu0
  %1114 = vmatpush.bf16.msra.mxu0 %v860
  %1115 = vmatpush.bf16.msra.mxu0 %v859
  %1116 = vmatpush.bf16.msra.mxu0 %v858
  %1117 = vmatpush.bf16.msra.mxu0 %v857
  %1118 = vmatpush.bf16.msra.mxu0 %v856
  %1119 = vmatpush.bf16.msra.mxu0 %v855
  %1120 = vmatpush.bf16.msra.mxu0 %v854
  %1121 = vmatpush.bf16.msra.mxu0 %v853
  %1122 = vmatmul.bf16.gmra.mxu0 %v302
  %v1123 = vpop.f32.mrf.mxu0
  %v1124 = vadd.f32 %v1111, %v1123
  %v1125 = vpop.f32.mrf.mxu0
  %1126 = vdwg.mxu0
  %1127 = vmatpush.bf16.msra.mxu0 %v868
  %1128 = vmatpush.bf16.msra.mxu0 %v867
  %1129 = vmatpush.bf16.msra.mxu0 %v866
  %1130 = vmatpush.bf16.msra.mxu0 %v865
  %1131 = vmatpush.bf16.msra.mxu0 %v864
  %1132 = vmatpush.bf16.msra.mxu0 %v863
  %1133 = vmatpush.bf16.msra.mxu0 %v862
  %1134 = vmatpush.bf16.msra.mxu0 %v861
  %1135 = vmatmul.bf16.gmra.mxu0 %v303
  %v1136 = vpop.f32.mrf.mxu0
  %v1137 = vadd.f32 %v1124, %v1136
  %v1138 = vpop.f32.mrf.mxu0
  %1139 = vdwg.mxu0
  %1140 = vmatpush.bf16.msra.mxu0 %v876
  %1141 = vmatpush.bf16.msra.mxu0 %v875
  %1142 = vmatpush.bf16.msra.mxu0 %v874
  %1143 = vmatpush.bf16.msra.mxu0 %v873
  %1144 = vmatpush.bf16.msra.mxu0 %v872
  %1145 = vmatpush.bf16.msra.mxu0 %v871
  %1146 = vmatpush.bf16.msra.mxu0 %v870
  %1147 = vmatpush.bf16.msra.mxu0 %v869
  %1148 = vmatmul.bf16.gmra.mxu0 %v304
  %v1149 = vpop.f32.mrf.mxu0
  %v1150 = vadd.f32 %v1137, %v1149
  %v1151 = vpop.f32.mrf.mxu0
  %1152 = vdwg.mxu0
  %1153 = vmatpush.bf16.msra.mxu0 %v884
  %1154 = vmatpush.bf16.msra.mxu0 %v883
  %1155 = vmatpush.bf16.msra.mxu0 %v882
  %1156 = vmatpush.bf16.msra.mxu0 %v881
  %1157 = vmatpush.bf16.msra.mxu0 %v880
  %1158 = vmatpush.bf16.msra.mxu0 %v879
  %1159 = vmatpush.bf16.msra.mxu0 %v878
  %1160 = vmatpush.bf16.msra.mxu0 %v877
  %1161 = vmatmul.bf16.gmra.mxu0 %v305
  %v1162 = vpop.f32.mrf.mxu0
  %v1163 = vadd.f32 %v1150, %v1162
  %v1164 = vpop.f32.mrf.mxu0
  %1165 = vdwg.mxu0
  %1166 = vmatpush.bf16.msra.mxu0 %v892
  %1167 = vmatpush.bf16.msra.mxu0 %v891
  %1168 = vmatpush.bf16.msra.mxu0 %v890
  %1169 = vmatpush.bf16.msra.mxu0 %v889
  %1170 = vmatpush.bf16.msra.mxu0 %v888
  %1171 = vmatpush.bf16.msra.mxu0 %v887
  %1172 = vmatpush.bf16.msra.mxu0 %v886
  %1173 = vmatpush.bf16.msra.mxu0 %v885
  %1174 = vmatmul.bf16.gmra.mxu0 %v306
  %v1175 = vpop.f32.mrf.mxu0
  %v1176 = vadd.f32 %v1163, %v1175
  %v1177 = vpop.f32.mrf.mxu0
  %1178 = vdwg.mxu0
  %1179 = vmatpush.bf16.msra.mxu0 %v900
  %1180 = vmatpush.bf16.msra.mxu0 %v899
  %1181 = vmatpush.bf16.msra.mxu0 %v898
  %1182 = vmatpush.bf16.msra.mxu0 %v897
  %1183 = vmatpush.bf16.msra.mxu0 %v896
  %1184 = vmatpush.bf16.msra.mxu0 %v895
  %1185 = vmatpush.bf16.msra.mxu0 %v894
  %1186 = vmatpush.bf16.msra.mxu0 %v893
  %1187 = vmatmul.bf16.gmra.mxu0 %v307
  %v1188 = vpop.f32.mrf.mxu0
  %v1189 = vadd.f32 %v1176, %v1188
  %v1190 = vpop.f32.mrf.mxu0
  %1191 = vdwg.mxu0
  %1192 = vmatpush.bf16.msra.mxu0 %v908
  %1193 = vmatpush.bf16.msra.mxu0 %v907
  %1194 = vmatpush.bf16.msra.mxu0 %v906
  %1195 = vmatpush.bf16.msra.mxu0 %v905
  %1196 = vmatpush.bf16.msra.mxu0 %v904
  %1197 = vmatpush.bf16.msra.mxu0 %v903
  %1198 = vmatpush.bf16.msra.mxu0 %v902
  %1199 = vmatpush.bf16.msra.mxu0 %v901
  %1200 = vmatmul.bf16.gmra.mxu0 %v308
  %v1201 = vpop.f32.mrf.mxu0
  %v1202 = vadd.f32 %v1189, %v1201
  %v1203 = vpop.f32.mrf.mxu0
  %1204 = vdwg.mxu0
  %1205 = vmatpush.bf16.msra.mxu0 %v916
  %1206 = vmatpush.bf16.msra.mxu0 %v915
  %1207 = vmatpush.bf16.msra.mxu0 %v914
  %1208 = vmatpush.bf16.msra.mxu0 %v913
  %1209 = vmatpush.bf16.msra.mxu0 %v912
  %1210 = vmatpush.bf16.msra.mxu0 %v911
  %1211 = vmatpush.bf16.msra.mxu0 %v910
  %1212 = vmatpush.bf16.msra.mxu0 %v909
  %1213 = vmatmul.bf16.gmra.mxu0 %v309
  %v1214 = vpop.f32.mrf.mxu0
  %v1215 = vadd.f32 %v1202, %v1214
  %v1216 = vpop.f32.mrf.mxu0
  %1217 = vdwg.mxu0
  %1218 = vmatpush.bf16.msra.mxu0 %v924
  %1219 = vmatpush.bf16.msra.mxu0 %v923
  %1220 = vmatpush.bf16.msra.mxu0 %v922
  %1221 = vmatpush.bf16.msra.mxu0 %v921
  %1222 = vmatpush.bf16.msra.mxu0 %v920
  %1223 = vmatpush.bf16.msra.mxu0 %v919
  %1224 = vmatpush.bf16.msra.mxu0 %v918
  %1225 = vmatpush.bf16.msra.mxu0 %v917
  %1226 = vmatmul.bf16.gmra.mxu0 %v310
  %v1227 = vpop.f32.mrf.mxu0
  %v1228 = vadd.f32 %v1215, %v1227
  %v1229 = vpop.f32.mrf.mxu0
  %1230 = vdwg.mxu0
  %1231 = vmatpush.bf16.msra.mxu0 %v932
  %1232 = vmatpush.bf16.msra.mxu0 %v931
  %1233 = vmatpush.bf16.msra.mxu0 %v930
  %1234 = vmatpush.bf16.msra.mxu0 %v929
  %1235 = vmatpush.bf16.msra.mxu0 %v928
  %1236 = vmatpush.bf16.msra.mxu0 %v927
  %1237 = vmatpush.bf16.msra.mxu0 %v926
  %1238 = vmatpush.bf16.msra.mxu0 %v925
  %1239 = vmatmul.bf16.gmra.mxu0 %v311
  %v1240 = vpop.f32.mrf.mxu0
  %v1241 = vadd.f32 %v1228, %v1240
  %v1242 = vpop.f32.mrf.mxu0
  %1243 = vdwg.mxu0
  %1244 = vmatpush.bf16.msra.mxu0 %v940
  %1245 = vmatpush.bf16.msra.mxu0 %v939
  %1246 = vmatpush.bf16.msra.mxu0 %v938
  %1247 = vmatpush.bf16.msra.mxu0 %v937
  %1248 = vmatpush.bf16.msra.mxu0 %v936
  %1249 = vmatpush.bf16.msra.mxu0 %v935
  %1250 = vmatpush.bf16.msra.mxu0 %v934
  %1251 = vmatpush.bf16.msra.mxu0 %v933
  %1252 = vmatmul.bf16.gmra.mxu0 %v312
  %v1253 = vpop.f32.mrf.mxu0
  %v1254 = vadd.f32 %v1241, %v1253
  %v1255 = vpop.f32.mrf.mxu0
  %1256 = vdwg.mxu0
  %1257 = vmatpush.bf16.msra.mxu0 %v948
  %1258 = vmatpush.bf16.msra.mxu0 %v947
  %1259 = vmatpush.bf16.msra.mxu0 %v946
  %1260 = vmatpush.bf16.msra.mxu0 %v945
  %1261 = vmatpush.bf16.msra.mxu0 %v944
  %1262 = vmatpush.bf16.msra.mxu0 %v943
  %1263 = vmatpush.bf16.msra.mxu0 %v942
  %1264 = vmatpush.bf16.msra.mxu0 %v941
  %1265 = vmatmul.bf16.gmra.mxu0 %v313
  %v1266 = vpop.f32.mrf.mxu0
  %v1267 = vadd.f32 %v1254, %v1266
  %v1268 = vpop.f32.mrf.mxu0
  %1269 = vdwg.mxu0
  %1270 = vmatpush.bf16.msra.mxu0 %v956
  %1271 = vmatpush.bf16.msra.mxu0 %v955
  %1272 = vmatpush.bf16.msra.mxu0 %v954
  %1273 = vmatpush.bf16.msra.mxu0 %v953
  %1274 = vmatpush.bf16.msra.mxu0 %v952
  %1275 = vmatpush.bf16.msra.mxu0 %v951
  %1276 = vmatpush.bf16.msra.mxu0 %v950
  %1277 = vmatpush.bf16.msra.mxu0 %v949
  %1278 = vmatmul.bf16.gmra.mxu0 %v314
  %v1279 = vpop.f32.mrf.mxu0
  %v1280 = vadd.f32 %v1267, %v1279
  %v1281 = vpop.f32.mrf.mxu0
  %1282 = vdwg.mxu0
  %1283 = vmatpush.bf16.msra.mxu0 %v964
  %1284 = vmatpush.bf16.msra.mxu0 %v963
  %1285 = vmatpush.bf16.msra.mxu0 %v962
  %1286 = vmatpush.bf16.msra.mxu0 %v961
  %1287 = vmatpush.bf16.msra.mxu0 %v960
  %1288 = vmatpush.bf16.msra.mxu0 %v959
  %1289 = vmatpush.bf16.msra.mxu0 %v958
  %1290 = vmatpush.bf16.msra.mxu0 %v957
  %1291 = vmatmul.bf16.gmra.mxu0 %v315
  %v1292 = vpop.f32.mrf.mxu0
  %v1293 = vadd.f32 %v1280, %v1292
  %v1294 = vpop.f32.mrf.mxu0
  %1295 = vdwg.mxu0
  %1296 = vmatpush.bf16.msra.mxu0 %v972
  %1297 = vmatpush.bf16.msra.mxu0 %v971
  %1298 = vmatpush.bf16.msra.mxu0 %v970
  %1299 = vmatpush.bf16.msra.mxu0 %v969
  %1300 = vmatpush.bf16.msra.mxu0 %v968
  %1301 = vmatpush.bf16.msra.mxu0 %v967
  %1302 = vmatpush.bf16.msra.mxu0 %v966
  %1303 = vmatpush.bf16.msra.mxu0 %v965
  %1304 = vmatmul.bf16.gmra.mxu0 %v316
  %v1305 = vpop.f32.mrf.mxu0
  %v1306 = vadd.f32 %v1293, %v1305
  %v1307 = vpop.f32.mrf.mxu0
  %1308 = vdwg.mxu0
  %1309 = vst [vmem:[%s2] sm:$0xff] %v1306
  %v1310 = vrot.slane %v1306, 4
  %v1311 = vadd.f32 %v1306, %v1310
  %v1312 = vrot.slane %v1311, 2
  %v1313 = vadd.f32 %v1311, %v1312
  %v1314 = vrot.slane %v1313, 1
  %v1315 = vadd.f32 %v1313, %v1314
  %v1316 = vmul.f32 %v1306, %v1306
  %v1317 = vrot.slane %v1316, 4
  %v1318 = vadd.f32 %v1316, %v1317
  %v1319 = vrot.slane %v1318, 2
  %v1320 = vadd.f32 %v1318, %v1319
  %v1321 = vrot.slane %v1320, 1
  %v1322 = vadd.f32 %v1320, %v1321
  %vm1323 = vcmask 1040384
  %v1324 = vsel %vm1323, %v1315, %v1322
  %vm1325 = vcmask 1041408
  %v1326 = vsel %vm1325, %v1324, 0.0
  %1327 = vst [vmem:[%s3] sm:$0xff] %v1326
  // Predicated region
  $region10: #{autoencoder_forward.23} parent=0 // pred_check
    _
  $region11: #{autoencoder_forward.23} parent=0 // pred_check_branch
    %1329 = sbr.rel (0) target = $region13
  $region12: #{autoencoder_forward.23} parent=0 // pred_region
    _
  $region13: #{autoencoder_forward.23} parent=0 // pred_fallthru
    _
  // Predicated region
  $region14: #{autoencoder_forward.23} parent=0 // pred_check
    _
  $region15: #{autoencoder_forward.23} parent=0 // pred_check_branch
    %1331 = sbr.rel (0) target = $region17
  $region16: #{autoencoder_forward.23} parent=0 // pred_region
    _
  $region17: #{autoencoder_forward.23} parent=0 // pred_fallthru
    _
  // Predicated region
  $region18: #{autoencoder_forward.23} parent=0 // pred_check
    _
  $region19: #{autoencoder_forward.23} parent=0 // pred_check_branch
    %1333 = sbr.rel (0) target = $region21
  $region20: #{autoencoder_forward.23} parent=0 // pred_region
    _
  $region21: #{autoencoder_forward.23} parent=0 // pred_fallthru
    _
  // Predicated region
  $region22: #{autoencoder_forward.23} parent=0 // pred_check
    _
  $region23: #{autoencoder_forward.23} parent=0 // pred_check_branch
    %1335 = sbr.rel (0) target = $region25
  $region24: #{autoencoder_forward.23} parent=0 // pred_region
    _
  $region25: #{autoencoder_forward.23} parent=0 // pred_fallthru
    _

// kernel: autoencoder_forward.25
$region0: #{autoencoder_forward.25}
  #allocation0 [shape = 'u32[]', space=smem, size = 0x4, offset = 0x4, fixed_abs, tag = 'smem constant byte address 0x4 - core index']
  #allocation1 [shape = 'u32[72,128]{1,0:T(1,128)}', space=vmem, size = 0x9000, scoped, tag = 'internal scratch']
  %s0 = inlined_call_operand.vmem [shape: bf16[32,1024], index: 0, kind: input, shape index: {}]
  %s1 = inlined_call_operand.vmem [shape: bf16[1024,128], index: 1, kind: input, shape index: {}]
  %s2 = inlined_call_operand.vmem [shape: f32[32,128], index: 2, kind: output, shape index: {0}]
  %s3 = inlined_call_operand.vmem [shape: f32[1,8,128], index: 3, kind: output, shape index: {1}]
  %4 = xla_tuple %s2, %s3
  %s5 = sld [smem:[#allocation0]]
  $region26: #{autoencoder_forward.25} parent=0
    _
  %s7 = ssub.s32 1, %s5
  %s8 = scalar_select 0, %s7, %s5
  // Predicated region
  $region2: #{autoencoder_forward.25} parent=0 // pred_check
    _
  $region3: #{autoencoder_forward.25} parent=0 // pred_check_branch
    %10 = sbr.rel (0) target = $region5
  $region4: #{autoencoder_forward.25} parent=0 // pred_region
    _
  $region5: #{autoencoder_forward.25} parent=0 // pred_fallthru
    _
  // Predicated region
  $region6: #{autoencoder_forward.25} parent=0 // pred_check
    _
  $region7: #{autoencoder_forward.25} parent=0 // pred_check_branch
    %12 = sbr.rel (0) target = $region9
  $region8: #{autoencoder_forward.25} parent=0 // pred_region
    _
  $region9: #{autoencoder_forward.25} parent=0 // pred_fallthru
    _
  %v13 = vld [vmem:[%s0] sm:$0xff]
  %v14 = vld [vmem:[%s0 + $0x8] sm:$0xff]
  %v15 = vld [vmem:[%s0 + $0x10] sm:$0xff]
  %v16 = vld [vmem:[%s0 + $0x18] sm:$0xff]
  %v17 = vld [vmem:[%s0 + $0x20] sm:$0xff]
  %v18 = vld [vmem:[%s0 + $0x28] sm:$0xff]
  %v19 = vld [vmem:[%s0 + $0x30] sm:$0xff]
  %v20 = vld [vmem:[%s0 + $0x38] sm:$0xff]
  %v21 = vld [vmem:[%s0 + $0x40] sm:$0xff]
  %v22 = vld [vmem:[%s0 + $0x48] sm:$0xff]
  %v23 = vld [vmem:[%s0 + $0x50] sm:$0xff]
  %v24 = vld [vmem:[%s0 + $0x58] sm:$0xff]
  %v25 = vld [vmem:[%s0 + $0x60] sm:$0xff]
  %v26 = vld [vmem:[%s0 + $0x68] sm:$0xff]
  %v27 = vld [vmem:[%s0 + $0x70] sm:$0xff]
  %v28 = vld [vmem:[%s0 + $0x78] sm:$0xff]
  %v29 = vld [vmem:[%s1] sm:$0xf]
  %v30 = vld [vmem:[%s1 + $0x4] sm:$0xf]
  %v31 = vld [vmem:[%s1 + $0x8] sm:$0xf]
  %v32 = vld [vmem:[%s1 + $0xc] sm:$0xf]
  %v33 = vld [vmem:[%s1 + $0x10] sm:$0xf]
  %v34 = vld [vmem:[%s1 + $0x14] sm:$0xf]
  %v35 = vld [vmem:[%s1 + $0x18] sm:$0xf]
  %v36 = vld [vmem:[%s1 + $0x1c] sm:$0xf]
  %v37 = vld [vmem:[%s1 + $0x20] sm:$0xf]
  %v38 = vld [vmem:[%s1 + $0x24] sm:$0xf]
  %v39 = vld [vmem:[%s1 + $0x28] sm:$0xf]
  %v40 = vld [vmem:[%s1 + $0x2c] sm:$0xf]
  %v41 = vld [vmem:[%s1 + $0x30] sm:$0xf]
  %v42 = vld [vmem:[%s1 + $0x34] sm:$0xf]
  %v43 = vld [vmem:[%s1 + $0x38] sm:$0xf]
  %v44 = vld [vmem:[%s1 + $0x3c] sm:$0xf]
  %v45 = vld [vmem:[%s1 + $0x40] sm:$0xf]
  %v46 = vld [vmem:[%s1 + $0x44] sm:$0xf]
  %v47 = vld [vmem:[%s1 + $0x48] sm:$0xf]
  %v48 = vld [vmem:[%s1 + $0x4c] sm:$0xf]
  %v49 = vld [vmem:[%s1 + $0x50] sm:$0xf]
  %v50 = vld [vmem:[%s1 + $0x54] sm:$0xf]
  %v51 = vld [vmem:[%s1 + $0x58] sm:$0xf]
  %v52 = vld [vmem:[%s1 + $0x5c] sm:$0xf]
  %v53 = vld [vmem:[%s1 + $0x60] sm:$0xf]
  %v54 = vld [vmem:[%s1 + $0x64] sm:$0xf]
  %v55 = vld [vmem:[%s1 + $0x68] sm:$0xf]
  %v56 = vld [vmem:[%s1 + $0x6c] sm:$0xf]
  %v57 = vld [vmem:[%s1 + $0x70] sm:$0xf]
  %v58 = vld [vmem:[%s1 + $0x74] sm:$0xf]
  %v59 = vld [vmem:[%s1 + $0x78] sm:$0xf]
  %v60 = vld [vmem:[%s1 + $0x7c] sm:$0xf]
  %v61 = vld [vmem:[%s1 + $0x80] sm:$0xf]
  %v62 = vld [vmem:[%s1 + $0x84] sm:$0xf]
  %v63 = vld [vmem:[%s1 + $0x88] sm:$0xf]
  %v64 = vld [vmem:[%s1 + $0x8c] sm:$0xf]
  %v65 = vld [vmem:[%s1 + $0x90] sm:$0xf]
  %v66 = vld [vmem:[%s1 + $0x94] sm:$0xf]
  %v67 = vld [vmem:[%s1 + $0x98] sm:$0xf]
  %v68 = vld [vmem:[%s1 + $0x9c] sm:$0xf]
  %v69 = vld [vmem:[%s1 + $0xa0] sm:$0xf]
  %v70 = vld [vmem:[%s1 + $0xa4] sm:$0xf]
  %v71 = vld [vmem:[%s1 + $0xa8] sm:$0xf]
  %v72 = vld [vmem:[%s1 + $0xac] sm:$0xf]
  %v73 = vld [vmem:[%s1 + $0xb0] sm:$0xf]
  %v74 = vld [vmem:[%s1 + $0xb4] sm:$0xf]
  %v75 = vld [vmem:[%s1 + $0xb8] sm:$0xf]
  %v76 = vld [vmem:[%s1 + $0xbc] sm:$0xf]
  %v77 = vld [vmem:[%s1 + $0xc0] sm:$0xf]
  %v78 = vld [vmem:[%s1 + $0xc4] sm:$0xf]
  %v79 = vld [vmem:[%s1 + $0xc8] sm:$0xf]
  %v80 = vld [vmem:[%s1 + $0xcc] sm:$0xf]
  %v81 = vld [vmem:[%s1 + $0xd0] sm:$0xf]
  %v82 = vld [vmem:[%s1 + $0xd4] sm:$0xf]
  %v83 = vld [vmem:[%s1 + $0xd8] sm:$0xf]
  %v84 = vld [vmem:[%s1 + $0xdc] sm:$0xf]
  %v85 = vld [vmem:[%s1 + $0xe0] sm:$0xf]
  %v86 = vld [vmem:[%s1 + $0xe4] sm:$0xf]
  %v87 = vld [vmem:[%s1 + $0xe8] sm:$0xf]
  %v88 = vld [vmem:[%s1 + $0xec] sm:$0xf]
  %v89 = vld [vmem:[%s1 + $0xf0] sm:$0xf]
  %v90 = vld [vmem:[%s1 + $0xf4] sm:$0xf]
  %v91 = vld [vmem:[%s1 + $0xf8] sm:$0xf]
  %v92 = vld [vmem:[%s1 + $0xfc] sm:$0xf]
  %v93 = vld [vmem:[%s1 + $0x100] sm:$0xf]
  %v94 = vld [vmem:[%s1 + $0x104] sm:$0xf]
  %v95 = vld [vmem:[%s1 + $0x108] sm:$0xf]
  %v96 = vld [vmem:[%s1 + $0x10c] sm:$0xf]
  %v97 = vld [vmem:[%s1 + $0x110] sm:$0xf]
  %v98 = vld [vmem:[%s1 + $0x114] sm:$0xf]
  %v99 = vld [vmem:[%s1 + $0x118] sm:$0xf]
  %v100 = vld [vmem:[%s1 + $0x11c] sm:$0xf]
  %v101 = vld [vmem:[%s1 + $0x120] sm:$0xf]
  %v102 = vld [vmem:[%s1 + $0x124] sm:$0xf]
  %v103 = vld [vmem:[%s1 + $0x128] sm:$0xf]
  %v104 = vld [vmem:[%s1 + $0x12c] sm:$0xf]
  %v105 = vld [vmem:[%s1 + $0x130] sm:$0xf]
  %v106 = vld [vmem:[%s1 + $0x134] sm:$0xf]
  %v107 = vld [vmem:[%s1 + $0x138] sm:$0xf]
  %v108 = vld [vmem:[%s1 + $0x13c] sm:$0xf]
  %v109 = vld [vmem:[%s1 + $0x140] sm:$0xf]
  %v110 = vld [vmem:[%s1 + $0x144] sm:$0xf]
  %v111 = vld [vmem:[%s1 + $0x148] sm:$0xf]
  %v112 = vld [vmem:[%s1 + $0x14c] sm:$0xf]
  %v113 = vld [vmem:[%s1 + $0x150] sm:$0xf]
  %v114 = vld [vmem:[%s1 + $0x154] sm:$0xf]
  %v115 = vld [vmem:[%s1 + $0x158] sm:$0xf]
  %v116 = vld [vmem:[%s1 + $0x15c] sm:$0xf]
  %v117 = vld [vmem:[%s1 + $0x160] sm:$0xf]
  %v118 = vld [vmem:[%s1 + $0x164] sm:$0xf]
  %v119 = vld [vmem:[%s1 + $0x168] sm:$0xf]
  %v120 = vld [vmem:[%s1 + $0x16c] sm:$0xf]
  %v121 = vld [vmem:[%s1 + $0x170] sm:$0xf]
  %v122 = vld [vmem:[%s1 + $0x174] sm:$0xf]
  %v123 = vld [vmem:[%s1 + $0x178] sm:$0xf]
  %v124 = vld [vmem:[%s1 + $0x17c] sm:$0xf]
  %v125 = vld [vmem:[%s1 + $0x180] sm:$0xf]
  %v126 = vld [vmem:[%s1 + $0x184] sm:$0xf]
  %v127 = vld [vmem:[%s1 + $0x188] sm:$0xf]
  %v128 = vld [vmem:[%s1 + $0x18c] sm:$0xf]
  %v129 = vld [vmem:[%s1 + $0x190] sm:$0xf]
  %v130 = vld [vmem:[%s1 + $0x194] sm:$0xf]
  %v131 = vld [vmem:[%s1 + $0x198] sm:$0xf]
  %v132 = vld [vmem:[%s1 + $0x19c] sm:$0xf]
  %v133 = vld [vmem:[%s1 + $0x1a0] sm:$0xf]
  %v134 = vld [vmem:[%s1 + $0x1a4] sm:$0xf]
  %v135 = vld [vmem:[%s1 + $0x1a8] sm:$0xf]
  %v136 = vld [vmem:[%s1 + $0x1ac] sm:$0xf]
  %v137 = vld [vmem:[%s1 + $0x1b0] sm:$0xf]
  %v138 = vld [vmem:[%s1 + $0x1b4] sm:$0xf]
  %v139 = vld [vmem:[%s1 + $0x1b8] sm:$0xf]
  %v140 = vld [vmem:[%s1 + $0x1bc] sm:$0xf]
  %v141 = vld [vmem:[%s1 + $0x1c0] sm:$0xf]
  %v142 = vld [vmem:[%s1 + $0x1c4] sm:$0xf]
  %v143 = vld [vmem:[%s1 + $0x1c8] sm:$0xf]
  %v144 = vld [vmem:[%s1 + $0x1cc] sm:$0xf]
  %v145 = vld [vmem:[%s1 + $0x1d0] sm:$0xf]
  %v146 = vld [vmem:[%s1 + $0x1d4] sm:$0xf]
  %v147 = vld [vmem:[%s1 + $0x1d8] sm:$0xf]
  %v148 = vld [vmem:[%s1 + $0x1dc] sm:$0xf]
  %v149 = vld [vmem:[%s1 + $0x1e0] sm:$0xf]
  %v150 = vld [vmem:[%s1 + $0x1e4] sm:$0xf]
  %v151 = vld [vmem:[%s1 + $0x1e8] sm:$0xf]
  %v152 = vld [vmem:[%s1 + $0x1ec] sm:$0xf]
  %v153 = vld [vmem:[%s1 + $0x1f0] sm:$0xf]
  %v154 = vld [vmem:[%s1 + $0x1f4] sm:$0xf]
  %v155 = vld [vmem:[%s1 + $0x1f8] sm:$0xf]
  %v156 = vld [vmem:[%s1 + $0x1fc] sm:$0xf]
  %v173 = vunpack.c.l.b16 %v13
  %v174 = vunpack.c.h.b16 %v13
  %v175 = vunpack.c.l.b16 %v14
  %v176 = vunpack.c.h.b16 %v14
  %v177 = vunpack.c.l.b16 %v15
  %v178 = vunpack.c.h.b16 %v15
  %v179 = vunpack.c.l.b16 %v16
  %v180 = vunpack.c.h.b16 %v16
  %v181 = vunpack.c.l.b16 %v17
  %v182 = vunpack.c.h.b16 %v17
  %v183 = vunpack.c.l.b16 %v18
  %v184 = vunpack.c.h.b16 %v18
  %v185 = vunpack.c.l.b16 %v19
  %v186 = vunpack.c.h.b16 %v19
  %v187 = vunpack.c.l.b16 %v20
  %v188 = vunpack.c.h.b16 %v20
  %v189 = vunpack.c.l.b16 %v21
  %v190 = vunpack.c.h.b16 %v21
  %v191 = vunpack.c.l.b16 %v22
  %v192 = vunpack.c.h.b16 %v22
  %v193 = vunpack.c.l.b16 %v23
  %v194 = vunpack.c.h.b16 %v23
  %v195 = vunpack.c.l.b16 %v24
  %v196 = vunpack.c.h.b16 %v24
  %v197 = vunpack.c.l.b16 %v25
  %v198 = vunpack.c.h.b16 %v25
  %v199 = vunpack.c.l.b16 %v26
  %v200 = vunpack.c.h.b16 %v26
  %v201 = vunpack.c.l.b16 %v27
  %v202 = vunpack.c.h.b16 %v27
  %v203 = vunpack.c.l.b16 %v28
  %v204 = vunpack.c.h.b16 %v28
  %v205 = vpack.c.b16 %v181, %v173
  %v206 = vpack.c.b16 %v182, %v174
  %v207 = vpack.c.b16 %v183, %v175
  %v208 = vpack.c.b16 %v184, %v176
  %v209 = vpack.c.b16 %v185, %v177
  %v210 = vpack.c.b16 %v186, %v178
  %v211 = vpack.c.b16 %v187, %v179
  %v212 = vpack.c.b16 %v188, %v180
  %v213 = vpack.c.b16 %v197, %v189
  %v214 = vpack.c.b16 %v198, %v190
  %v215 = vpack.c.b16 %v199, %v191
  %v216 = vpack.c.b16 %v200, %v192
  %v217 = vpack.c.b16 %v201, %v193
  %v218 = vpack.c.b16 %v202, %v194
  %v219 = vpack.c.b16 %v203, %v195
  %v220 = vpack.c.b16 %v204, %v196
  %v365 = vunpack.c.l.b16 %v29
  %v366 = vunpack.c.l.b16 %v30
  %v367 = vunpack.c.l.b16 %v31
  %v368 = vunpack.c.l.b16 %v32
  %v369 = vunpack.c.l.b16 %v33
  %v370 = vunpack.c.l.b16 %v34
  %v371 = vunpack.c.l.b16 %v35
  %v372 = vunpack.c.l.b16 %v36
  %v373 = vunpack.c.l.b16 %v37
  %v374 = vunpack.c.l.b16 %v38
  %v375 = vunpack.c.l.b16 %v39
  %v376 = vunpack.c.l.b16 %v40
  %v377 = vunpack.c.l.b16 %v41
  %v378 = vunpack.c.l.b16 %v42
  %v379 = vunpack.c.l.b16 %v43
  %v380 = vunpack.c.l.b16 %v44
  %v381 = vunpack.c.l.b16 %v45
  %v382 = vunpack.c.l.b16 %v46
  %v383 = vunpack.c.l.b16 %v47
  %v384 = vunpack.c.l.b16 %v48
  %v385 = vunpack.c.l.b16 %v49
  %v386 = vunpack.c.l.b16 %v50
  %v387 = vunpack.c.l.b16 %v51
  %v388 = vunpack.c.l.b16 %v52
  %v389 = vunpack.c.l.b16 %v53
  %v390 = vunpack.c.l.b16 %v54
  %v391 = vunpack.c.l.b16 %v55
  %v392 = vunpack.c.l.b16 %v56
  %v393 = vunpack.c.l.b16 %v57
  %v394 = vunpack.c.l.b16 %v58
  %v395 = vunpack.c.l.b16 %v59
  %v396 = vunpack.c.l.b16 %v60
  %v397 = vunpack.c.l.b16 %v61
  %v398 = vunpack.c.l.b16 %v62
  %v399 = vunpack.c.l.b16 %v63
  %v400 = vunpack.c.l.b16 %v64
  %v401 = vunpack.c.l.b16 %v65
  %v402 = vunpack.c.l.b16 %v66
  %v403 = vunpack.c.l.b16 %v67
  %v404 = vunpack.c.l.b16 %v68
  %v405 = vunpack.c.l.b16 %v69
  %v406 = vunpack.c.l.b16 %v70
  %v407 = vunpack.c.l.b16 %v71
  %v408 = vunpack.c.l.b16 %v72
  %v409 = vunpack.c.l.b16 %v73
  %v410 = vunpack.c.l.b16 %v74
  %v411 = vunpack.c.l.b16 %v75
  %v412 = vunpack.c.l.b16 %v76
  %v413 = vunpack.c.l.b16 %v77
  %v414 = vunpack.c.l.b16 %v78
  %v415 = vunpack.c.l.b16 %v79
  %v416 = vunpack.c.l.b16 %v80
  %v417 = vunpack.c.l.b16 %v81
  %v418 = vunpack.c.l.b16 %v82
  %v419 = vunpack.c.l.b16 %v83
  %v420 = vunpack.c.l.b16 %v84
  %v421 = vunpack.c.l.b16 %v85
  %v422 = vunpack.c.l.b16 %v86
  %v423 = vunpack.c.l.b16 %v87
  %v424 = vunpack.c.l.b16 %v88
  %v425 = vunpack.c.l.b16 %v89
  %v426 = vunpack.c.l.b16 %v90
  %v427 = vunpack.c.l.b16 %v91
  %v428 = vunpack.c.l.b16 %v92
  %v429 = vunpack.c.l.b16 %v93
  %v430 = vunpack.c.l.b16 %v94
  %v431 = vunpack.c.l.b16 %v95
  %v432 = vunpack.c.l.b16 %v96
  %v433 = vunpack.c.l.b16 %v97
  %v434 = vunpack.c.l.b16 %v98
  %v435 = vunpack.c.l.b16 %v99
  %v436 = vunpack.c.l.b16 %v100
  %v437 = vunpack.c.l.b16 %v101
  %v438 = vunpack.c.l.b16 %v102
  %v439 = vunpack.c.l.b16 %v103
  %v440 = vunpack.c.l.b16 %v104
  %v441 = vunpack.c.l.b16 %v105
  %v442 = vunpack.c.l.b16 %v106
  %v443 = vunpack.c.l.b16 %v107
  %v444 = vunpack.c.l.b16 %v108
  %v445 = vunpack.c.l.b16 %v109
  %v446 = vunpack.c.l.b16 %v110
  %v447 = vunpack.c.l.b16 %v111
  %v448 = vunpack.c.l.b16 %v112
  %v449 = vunpack.c.l.b16 %v113
  %v450 = vunpack.c.l.b16 %v114
  %v451 = vunpack.c.l.b16 %v115
  %v452 = vunpack.c.l.b16 %v116
  %v453 = vunpack.c.l.b16 %v117
  %v454 = vunpack.c.l.b16 %v118
  %v455 = vunpack.c.l.b16 %v119
  %v456 = vunpack.c.l.b16 %v120
  %v457 = vunpack.c.l.b16 %v121
  %v458 = vunpack.c.l.b16 %v122
  %v459 = vunpack.c.l.b16 %v123
  %v460 = vunpack.c.l.b16 %v124
  %v461 = vunpack.c.l.b16 %v125
  %v462 = vunpack.c.l.b16 %v126
  %v463 = vunpack.c.l.b16 %v127
  %v464 = vunpack.c.l.b16 %v128
  %v465 = vunpack.c.l.b16 %v129
  %v466 = vunpack.c.l.b16 %v130
  %v467 = vunpack.c.l.b16 %v131
  %v468 = vunpack.c.l.b16 %v132
  %v469 = vunpack.c.l.b16 %v133
  %v470 = vunpack.c.l.b16 %v134
  %v471 = vunpack.c.l.b16 %v135
  %v472 = vunpack.c.l.b16 %v136
  %v473 = vunpack.c.l.b16 %v137
  %v474 = vunpack.c.l.b16 %v138
  %v475 = vunpack.c.l.b16 %v139
  %v476 = vunpack.c.l.b16 %v140
  %v477 = vunpack.c.l.b16 %v141
  %v478 = vunpack.c.l.b16 %v142
  %v479 = vunpack.c.l.b16 %v143
  %v480 = vunpack.c.l.b16 %v144
  %v481 = vunpack.c.l.b16 %v145
  %v482 = vunpack.c.l.b16 %v146
  %v483 = vunpack.c.l.b16 %v147
  %v484 = vunpack.c.l.b16 %v148
  %v485 = vunpack.c.l.b16 %v149
  %v486 = vunpack.c.l.b16 %v150
  %v487 = vunpack.c.l.b16 %v151
  %v488 = vunpack.c.l.b16 %v152
  %v489 = vunpack.c.l.b16 %v153
  %v490 = vunpack.c.l.b16 %v154
  %v491 = vunpack.c.l.b16 %v155
  %v492 = vunpack.c.l.b16 %v156
  %v493 = vpack.c.b16 %v366, %v365
  %v494 = vpack.c.b16 %v368, %v367
  %v495 = vpack.c.b16 %v370, %v369
  %v496 = vpack.c.b16 %v372, %v371
  %v497 = vpack.c.b16 %v374, %v373
  %v498 = vpack.c.b16 %v376, %v375
  %v499 = vpack.c.b16 %v378, %v377
  %v500 = vpack.c.b16 %v380, %v379
  %v501 = vpack.c.b16 %v382, %v381
  %v502 = vpack.c.b16 %v384, %v383
  %v503 = vpack.c.b16 %v386, %v385
  %v504 = vpack.c.b16 %v388, %v387
  %v505 = vpack.c.b16 %v390, %v389
  %v506 = vpack.c.b16 %v392, %v391
  %v507 = vpack.c.b16 %v394, %v393
  %v508 = vpack.c.b16 %v396, %v395
  %v509 = vpack.c.b16 %v398, %v397
  %v510 = vpack.c.b16 %v400, %v399
  %v511 = vpack.c.b16 %v402, %v401
  %v512 = vpack.c.b16 %v404, %v403
  %v513 = vpack.c.b16 %v406, %v405
  %v514 = vpack.c.b16 %v408, %v407
  %v515 = vpack.c.b16 %v410, %v409
  %v516 = vpack.c.b16 %v412, %v411
  %v517 = vpack.c.b16 %v414, %v413
  %v518 = vpack.c.b16 %v416, %v415
  %v519 = vpack.c.b16 %v418, %v417
  %v520 = vpack.c.b16 %v420, %v419
  %v521 = vpack.c.b16 %v422, %v421
  %v522 = vpack.c.b16 %v424, %v423
  %v523 = vpack.c.b16 %v426, %v425
  %v524 = vpack.c.b16 %v428, %v427
  %v525 = vpack.c.b16 %v430, %v429
  %v526 = vpack.c.b16 %v432, %v431
  %v527 = vpack.c.b16 %v434, %v433
  %v528 = vpack.c.b16 %v436, %v435
  %v529 = vpack.c.b16 %v438, %v437
  %v530 = vpack.c.b16 %v440, %v439
  %v531 = vpack.c.b16 %v442, %v441
  %v532 = vpack.c.b16 %v444, %v443
  %v533 = vpack.c.b16 %v446, %v445
  %v534 = vpack.c.b16 %v448, %v447
  %v535 = vpack.c.b16 %v450, %v449
  %v536 = vpack.c.b16 %v452, %v451
  %v537 = vpack.c.b16 %v454, %v453
  %v538 = vpack.c.b16 %v456, %v455
  %v539 = vpack.c.b16 %v458, %v457
  %v540 = vpack.c.b16 %v460, %v459
  %v541 = vpack.c.b16 %v462, %v461
  %v542 = vpack.c.b16 %v464, %v463
  %v543 = vpack.c.b16 %v466, %v465
  %v544 = vpack.c.b16 %v468, %v467
  %v545 = vpack.c.b16 %v470, %v469
  %v546 = vpack.c.b16 %v472, %v471
  %v547 = vpack.c.b16 %v474, %v473
  %v548 = vpack.c.b16 %v476, %v475
  %v549 = vpack.c.b16 %v478, %v477
  %v550 = vpack.c.b16 %v480, %v479
  %v551 = vpack.c.b16 %v482, %v481
  %v552 = vpack.c.b16 %v484, %v483
  %v553 = vpack.c.b16 %v486, %v485
  %v554 = vpack.c.b16 %v488, %v487
  %v555 = vpack.c.b16 %v490, %v489
  %v556 = vpack.c.b16 %v492, %v491
  %621 = vmatpush.bf16.msra.mxu0 %v500
  %622 = vmatpush.bf16.msra.mxu0 %v499
  %623 = vmatpush.bf16.msra.mxu0 %v498
  %624 = vmatpush.bf16.msra.mxu0 %v497
  %625 = vmatpush.bf16.msra.mxu0 %v496
  %626 = vmatpush.bf16.msra.mxu0 %v495
  %627 = vmatpush.bf16.msra.mxu0 %v494
  %628 = vmatpush.bf16.msra.mxu0 %v493
  %629 = vmatmul.bf16.gmra.mxu0 %v205
  %v630 = vpop.f32.mrf.mxu0
  %v631 = vadd.f32 0.0, %v630
  %v632 = vpop.f32.mrf.mxu0
  %v633 = vadd.f32 0.0, %v632
  %634 = vmatmul.bf16.gmra.mxu0 %v213
  %v635 = vpop.f32.mrf.mxu0
  %v636 = vadd.f32 0.0, %v635
  %v637 = vpop.f32.mrf.mxu0
  %v638 = vadd.f32 0.0, %v637
  %639 = vdwg.mxu0
  %640 = vmatpush.bf16.msra.mxu0 %v508
  %641 = vmatpush.bf16.msra.mxu0 %v507
  %642 = vmatpush.bf16.msra.mxu0 %v506
  %643 = vmatpush.bf16.msra.mxu0 %v505
  %644 = vmatpush.bf16.msra.mxu0 %v504
  %645 = vmatpush.bf16.msra.mxu0 %v503
  %646 = vmatpush.bf16.msra.mxu0 %v502
  %647 = vmatpush.bf16.msra.mxu0 %v501
  %648 = vmatmul.bf16.gmra.mxu0 %v206
  %v649 = vpop.f32.mrf.mxu0
  %v650 = vadd.f32 %v631, %v649
  %v651 = vpop.f32.mrf.mxu0
  %v652 = vadd.f32 %v633, %v651
  %653 = vmatmul.bf16.gmra.mxu0 %v214
  %v654 = vpop.f32.mrf.mxu0
  %v655 = vadd.f32 %v636, %v654
  %v656 = vpop.f32.mrf.mxu0
  %v657 = vadd.f32 %v638, %v656
  %658 = vdwg.mxu0
  %659 = vmatpush.bf16.msra.mxu0 %v516
  %660 = vmatpush.bf16.msra.mxu0 %v515
  %661 = vmatpush.bf16.msra.mxu0 %v514
  %662 = vmatpush.bf16.msra.mxu0 %v513
  %663 = vmatpush.bf16.msra.mxu0 %v512
  %664 = vmatpush.bf16.msra.mxu0 %v511
  %665 = vmatpush.bf16.msra.mxu0 %v510
  %666 = vmatpush.bf16.msra.mxu0 %v509
  %667 = vmatmul.bf16.gmra.mxu0 %v207
  %v668 = vpop.f32.mrf.mxu0
  %v669 = vadd.f32 %v650, %v668
  %v670 = vpop.f32.mrf.mxu0
  %v671 = vadd.f32 %v652, %v670
  %672 = vmatmul.bf16.gmra.mxu0 %v215
  %v673 = vpop.f32.mrf.mxu0
  %v674 = vadd.f32 %v655, %v673
  %v675 = vpop.f32.mrf.mxu0
  %v676 = vadd.f32 %v657, %v675
  %677 = vdwg.mxu0
  %678 = vmatpush.bf16.msra.mxu0 %v524
  %679 = vmatpush.bf16.msra.mxu0 %v523
  %680 = vmatpush.bf16.msra.mxu0 %v522
  %681 = vmatpush.bf16.msra.mxu0 %v521
  %682 = vmatpush.bf16.msra.mxu0 %v520
  %683 = vmatpush.bf16.msra.mxu0 %v519
  %684 = vmatpush.bf16.msra.mxu0 %v518
  %685 = vmatpush.bf16.msra.mxu0 %v517
  %686 = vmatmul.bf16.gmra.mxu0 %v208
  %v687 = vpop.f32.mrf.mxu0
  %v688 = vadd.f32 %v669, %v687
  %v689 = vpop.f32.mrf.mxu0
  %v690 = vadd.f32 %v671, %v689
  %691 = vmatmul.bf16.gmra.mxu0 %v216
  %v692 = vpop.f32.mrf.mxu0
  %v693 = vadd.f32 %v674, %v692
  %v694 = vpop.f32.mrf.mxu0
  %v695 = vadd.f32 %v676, %v694
  %696 = vdwg.mxu0
  %697 = vmatpush.bf16.msra.mxu0 %v532
  %698 = vmatpush.bf16.msra.mxu0 %v531
  %699 = vmatpush.bf16.msra.mxu0 %v530
  %700 = vmatpush.bf16.msra.mxu0 %v529
  %701 = vmatpush.bf16.msra.mxu0 %v528
  %702 = vmatpush.bf16.msra.mxu0 %v527
  %703 = vmatpush.bf16.msra.mxu0 %v526
  %704 = vmatpush.bf16.msra.mxu0 %v525
  %705 = vmatmul.bf16.gmra.mxu0 %v209
  %v706 = vpop.f32.mrf.mxu0
  %v707 = vadd.f32 %v688, %v706
  %v708 = vpop.f32.mrf.mxu0
  %v709 = vadd.f32 %v690, %v708
  %710 = vmatmul.bf16.gmra.mxu0 %v217
  %v711 = vpop.f32.mrf.mxu0
  %v712 = vadd.f32 %v693, %v711
  %v713 = vpop.f32.mrf.mxu0
  %v714 = vadd.f32 %v695, %v713
  %715 = vdwg.mxu0
  %716 = vmatpush.bf16.msra.mxu0 %v540
  %717 = vmatpush.bf16.msra.mxu0 %v539
  %718 = vmatpush.bf16.msra.mxu0 %v538
  %719 = vmatpush.bf16.msra.mxu0 %v537
  %720 = vmatpush.bf16.msra.mxu0 %v536
  %721 = vmatpush.bf16.msra.mxu0 %v535
  %722 = vmatpush.bf16.msra.mxu0 %v534
  %723 = vmatpush.bf16.msra.mxu0 %v533
  %724 = vmatmul.bf16.gmra.mxu0 %v210
  %v725 = vpop.f32.mrf.mxu0
  %v726 = vadd.f32 %v707, %v725
  %v727 = vpop.f32.mrf.mxu0
  %v728 = vadd.f32 %v709, %v727
  %729 = vmatmul.bf16.gmra.mxu0 %v218
  %v730 = vpop.f32.mrf.mxu0
  %v731 = vadd.f32 %v712, %v730
  %v732 = vpop.f32.mrf.mxu0
  %v733 = vadd.f32 %v714, %v732
  %734 = vdwg.mxu0
  %735 = vmatpush.bf16.msra.mxu0 %v548
  %736 = vmatpush.bf16.msra.mxu0 %v547
  %737 = vmatpush.bf16.msra.mxu0 %v546
  %738 = vmatpush.bf16.msra.mxu0 %v545
  %739 = vmatpush.bf16.msra.mxu0 %v544
  %740 = vmatpush.bf16.msra.mxu0 %v543
  %741 = vmatpush.bf16.msra.mxu0 %v542
  %742 = vmatpush.bf16.msra.mxu0 %v541
  %743 = vmatmul.bf16.gmra.mxu0 %v211
  %v744 = vpop.f32.mrf.mxu0
  %v745 = vadd.f32 %v726, %v744
  %v746 = vpop.f32.mrf.mxu0
  %v747 = vadd.f32 %v728, %v746
  %748 = vmatmul.bf16.gmra.mxu0 %v219
  %v749 = vpop.f32.mrf.mxu0
  %v750 = vadd.f32 %v731, %v749
  %v751 = vpop.f32.mrf.mxu0
  %v752 = vadd.f32 %v733, %v751
  %753 = vdwg.mxu0
  %754 = vmatpush.bf16.msra.mxu0 %v556
  %755 = vmatpush.bf16.msra.mxu0 %v555
  %756 = vmatpush.bf16.msra.mxu0 %v554
  %757 = vmatpush.bf16.msra.mxu0 %v553
  %758 = vmatpush.bf16.msra.mxu0 %v552
  %759 = vmatpush.bf16.msra.mxu0 %v551
  %760 = vmatpush.bf16.msra.mxu0 %v550
  %761 = vmatpush.bf16.msra.mxu0 %v549
  %762 = vmatmul.bf16.gmra.mxu0 %v212
  %v763 = vpop.f32.mrf.mxu0
  %v764 = vadd.f32 %v745, %v763
  %v765 = vpop.f32.mrf.mxu0
  %v766 = vadd.f32 %v747, %v765
  %767 = vmatmul.bf16.gmra.mxu0 %v220
  %v768 = vpop.f32.mrf.mxu0
  %v769 = vadd.f32 %v750, %v768
  %v770 = vpop.f32.mrf.mxu0
  %v771 = vadd.f32 %v752, %v770
  %772 = vdwg.mxu0
  %773 = vst [vmem:[%s2] sm:$0xff] %v764
  %774 = vst [vmem:[%s2 + $0x8] sm:$0xff] %v766
  %775 = vst [vmem:[%s2 + $0x10] sm:$0xff] %v769
  %776 = vst [vmem:[%s2 + $0x18] sm:$0xff] %v771
  %v777 = vadd.f32 %v764, %v766
  %v778 = vadd.f32 %v777, %v769
  %v779 = vadd.f32 %v778, %v771
  %v780 = vrot.slane %v779, 4
  %v781 = vadd.f32 %v779, %v780
  %v782 = vrot.slane %v781, 2
  %v783 = vadd.f32 %v781, %v782
  %v784 = vrot.slane %v783, 1
  %v785 = vadd.f32 %v783, %v784
  %v786 = vmul.f32 %v764, %v764
  %v787 = vmul.f32 %v766, %v766
  %v788 = vmul.f32 %v769, %v769
  %v789 = vmul.f32 %v771, %v771
  %v790 = vadd.f32 %v786, %v787
  %v791 = vadd.f32 %v790, %v788
  %v792 = vadd.f32 %v791, %v789
  %v793 = vrot.slane %v792, 4
  %v794 = vadd.f32 %v792, %v793
  %v795 = vrot.slane %v794, 2
  %v796 = vadd.f32 %v794, %v795
  %v797 = vrot.slane %v796, 1
  %v798 = vadd.f32 %v796, %v797
  %vm799 = vcmask 1040384
  %v800 = vsel %vm799, %v785, %v798
  %vm801 = vcmask 1041408
  %v802 = vsel %vm801, %v800, 0.0
  %803 = vst [vmem:[%s3] sm:$0xff] %v802
  // Predicated region
  $region10: #{autoencoder_forward.25} parent=0 // pred_check
    _
  $region11: #{autoencoder_forward.25} parent=0 // pred_check_branch
    %805 = sbr.rel (0) target = $region13
  $region12: #{autoencoder_forward.25} parent=0 // pred_region
    _
  $region13: #{autoencoder_forward.25} parent=0 // pred_fallthru
    _
  // Predicated region
  $region14: #{autoencoder_forward.25} parent=0 // pred_check
    _
  $region15: #{autoencoder_forward.25} parent=0 // pred_check_branch
    %807 = sbr.rel (0) target = $region17
  $region16: #{autoencoder_forward.25} parent=0 // pred_region
    _
  $region17: #{autoencoder_forward.25} parent=0 // pred_fallthru
    _
  // Predicated region
  $region18: #{autoencoder_forward.25} parent=0 // pred_check
    _
  $region19: #{autoencoder_forward.25} parent=0 // pred_check_branch
    %809 = sbr.rel (0) target = $region21
  $region20: #{autoencoder_forward.25} parent=0 // pred_region
    _
  $region21: #{autoencoder_forward.25} parent=0 // pred_fallthru
    _
  // Predicated region
  $region22: #{autoencoder_forward.25} parent=0 // pred_check
    _
  $region23: #{autoencoder_forward.25} parent=0 // pred_check_branch
    %811 = sbr.rel (0) target = $region25
  $region24: #{autoencoder_forward.25} parent=0 // pred_region
    _
  $region25: #{autoencoder_forward.25} parent=0 // pred_fallthru
    _

// kernel: autoencoder_forward.27
$region0: #{autoencoder_forward.27}
  #allocation0 [shape = 'u32[]', space=smem, size = 0x4, offset = 0x4, fixed_abs, tag = 'smem constant byte address 0x4 - core index']
  #allocation1 [shape = 'u32[72,128]{1,0:T(1,128)}', space=vmem, size = 0x9000, scoped, tag = 'internal scratch']
  %s0 = inlined_call_operand.vmem [shape: bf16[128,512], index: 0, kind: input, shape index: {}]
  %s1 = inlined_call_operand.vmem [shape: bf16[512,128], index: 1, kind: input, shape index: {}]
  %s2 = inlined_call_operand.vmem [shape: f32[128,128], index: 2, kind: output, shape index: {0}]
  %s3 = inlined_call_operand.vmem [shape: f32[1,8,128], index: 3, kind: output, shape index: {1}]
  %4 = xla_tuple %s2, %s3
  %s5 = sld [smem:[#allocation0]]
  $region26: #{autoencoder_forward.27} parent=0
    _
  %s7 = ssub.s32 1, %s5
  %s8 = scalar_select 0, %s7, %s5
  // Predicated region
  $region2: #{autoencoder_forward.27} parent=0 // pred_check
    _
  $region3: #{autoencoder_forward.27} parent=0 // pred_check_branch
    %10 = sbr.rel (0) target = $region5
  $region4: #{autoencoder_forward.27} parent=0 // pred_region
    _
  $region5: #{autoencoder_forward.27} parent=0 // pred_fallthru
    _
  // Predicated region
  $region6: #{autoencoder_forward.27} parent=0 // pred_check
    _
  $region7: #{autoencoder_forward.27} parent=0 // pred_check_branch
    %12 = sbr.rel (0) target = $region9
  $region8: #{autoencoder_forward.27} parent=0 // pred_region
    _
  $region9: #{autoencoder_forward.27} parent=0 // pred_fallthru
    _
  %v13 = vld [vmem:[%s0] sm:$0xff]
  %v14 = vld [vmem:[%s0 + $0x8] sm:$0xff]
  %v15 = vld [vmem:[%s0 + $0x10] sm:$0xff]
  %v16 = vld [vmem:[%s0 + $0x18] sm:$0xff]
  %v17 = vld [vmem:[%s0 + $0x20] sm:$0xff]
  %v18 = vld [vmem:[%s0 + $0x28] sm:$0xff]
  %v19 = vld [vmem:[%s0 + $0x30] sm:$0xff]
  %v20 = vld [vmem:[%s0 + $0x38] sm:$0xff]
  %v21 = vld [vmem:[%s0 + $0x40] sm:$0xff]
  %v22 = vld [vmem:[%s0 + $0x48] sm:$0xff]
  %v23 = vld [vmem:[%s0 + $0x50] sm:$0xff]
  %v24 = vld [vmem:[%s0 + $0x58] sm:$0xff]
  %v25 = vld [vmem:[%s0 + $0x60] sm:$0xff]
  %v26 = vld [vmem:[%s0 + $0x68] sm:$0xff]
  %v27 = vld [vmem:[%s0 + $0x70] sm:$0xff]
  %v28 = vld [vmem:[%s0 + $0x78] sm:$0xff]
  %v29 = vld [vmem:[%s0 + $0x80] sm:$0xff]
  %v30 = vld [vmem:[%s0 + $0x88] sm:$0xff]
  %v31 = vld [vmem:[%s0 + $0x90] sm:$0xff]
  %v32 = vld [vmem:[%s0 + $0x98] sm:$0xff]
  %v33 = vld [vmem:[%s0 + $0xa0] sm:$0xff]
  %v34 = vld [vmem:[%s0 + $0xa8] sm:$0xff]
  %v35 = vld [vmem:[%s0 + $0xb0] sm:$0xff]
  %v36 = vld [vmem:[%s0 + $0xb8] sm:$0xff]
  %v37 = vld [vmem:[%s0 + $0xc0] sm:$0xff]
  %v38 = vld [vmem:[%s0 + $0xc8] sm:$0xff]
  %v39 = vld [vmem:[%s0 + $0xd0] sm:$0xff]
  %v40 = vld [vmem:[%s0 + $0xd8] sm:$0xff]
  %v41 = vld [vmem:[%s0 + $0xe0] sm:$0xff]
  %v42 = vld [vmem:[%s0 + $0xe8] sm:$0xff]
  %v43 = vld [vmem:[%s0 + $0xf0] sm:$0xff]
  %v44 = vld [vmem:[%s0 + $0xf8] sm:$0xff]
  %v45 = vld [vmem:[%s1] sm:$0xf]
  %v46 = vld [vmem:[%s1 + $0x4] sm:$0xf]
  %v47 = vld [vmem:[%s1 + $0x8] sm:$0xf]
  %v48 = vld [vmem:[%s1 + $0xc] sm:$0xf]
  %v49 = vld [vmem:[%s1 + $0x10] sm:$0xf]
  %v50 = vld [vmem:[%s1 + $0x14] sm:$0xf]
  %v51 = vld [vmem:[%s1 + $0x18] sm:$0xf]
  %v52 = vld [vmem:[%s1 + $0x1c] sm:$0xf]
  %v53 = vld [vmem:[%s1 + $0x20] sm:$0xf]
  %v54 = vld [vmem:[%s1 + $0x24] sm:$0xf]
  %v55 = vld [vmem:[%s1 + $0x28] sm:$0xf]
  %v56 = vld [vmem:[%s1 + $0x2c] sm:$0xf]
  %v57 = vld [vmem:[%s1 + $0x30] sm:$0xf]
  %v58 = vld [vmem:[%s1 + $0x34] sm:$0xf]
  %v59 = vld [vmem:[%s1 + $0x38] sm:$0xf]
  %v60 = vld [vmem:[%s1 + $0x3c] sm:$0xf]
  %v61 = vld [vmem:[%s1 + $0x40] sm:$0xf]
  %v62 = vld [vmem:[%s1 + $0x44] sm:$0xf]
  %v63 = vld [vmem:[%s1 + $0x48] sm:$0xf]
  %v64 = vld [vmem:[%s1 + $0x4c] sm:$0xf]
  %v65 = vld [vmem:[%s1 + $0x50] sm:$0xf]
  %v66 = vld [vmem:[%s1 + $0x54] sm:$0xf]
  %v67 = vld [vmem:[%s1 + $0x58] sm:$0xf]
  %v68 = vld [vmem:[%s1 + $0x5c] sm:$0xf]
  %v69 = vld [vmem:[%s1 + $0x60] sm:$0xf]
  %v70 = vld [vmem:[%s1 + $0x64] sm:$0xf]
  %v71 = vld [vmem:[%s1 + $0x68] sm:$0xf]
  %v72 = vld [vmem:[%s1 + $0x6c] sm:$0xf]
  %v73 = vld [vmem:[%s1 + $0x70] sm:$0xf]
  %v74 = vld [vmem:[%s1 + $0x74] sm:$0xf]
  %v75 = vld [vmem:[%s1 + $0x78] sm:$0xf]
  %v76 = vld [vmem:[%s1 + $0x7c] sm:$0xf]
  %v77 = vld [vmem:[%s1 + $0x80] sm:$0xf]
  %v78 = vld [vmem:[%s1 + $0x84] sm:$0xf]
  %v79 = vld [vmem:[%s1 + $0x88] sm:$0xf]
  %v80 = vld [vmem:[%s1 + $0x8c] sm:$0xf]
  %v81 = vld [vmem:[%s1 + $0x90] sm:$0xf]
  %v82 = vld [vmem:[%s1 + $0x94] sm:$0xf]
  %v83 = vld [vmem:[%s1 + $0x98] sm:$0xf]
  %v84 = vld [vmem:[%s1 + $0x9c] sm:$0xf]
  %v85 = vld [vmem:[%s1 + $0xa0] sm:$0xf]
  %v86 = vld [vmem:[%s1 + $0xa4] sm:$0xf]
  %v87 = vld [vmem:[%s1 + $0xa8] sm:$0xf]
  %v88 = vld [vmem:[%s1 + $0xac] sm:$0xf]
  %v89 = vld [vmem:[%s1 + $0xb0] sm:$0xf]
  %v90 = vld [vmem:[%s1 + $0xb4] sm:$0xf]
  %v91 = vld [vmem:[%s1 + $0xb8] sm:$0xf]
  %v92 = vld [vmem:[%s1 + $0xbc] sm:$0xf]
  %v93 = vld [vmem:[%s1 + $0xc0] sm:$0xf]
  %v94 = vld [vmem:[%s1 + $0xc4] sm:$0xf]
  %v95 = vld [vmem:[%s1 + $0xc8] sm:$0xf]
  %v96 = vld [vmem:[%s1 + $0xcc] sm:$0xf]
  %v97 = vld [vmem:[%s1 + $0xd0] sm:$0xf]
  %v98 = vld [vmem:[%s1 + $0xd4] sm:$0xf]
  %v99 = vld [vmem:[%s1 + $0xd8] sm:$0xf]
  %v100 = vld [vmem:[%s1 + $0xdc] sm:$0xf]
  %v101 = vld [vmem:[%s1 + $0xe0] sm:$0xf]
  %v102 = vld [vmem:[%s1 + $0xe4] sm:$0xf]
  %v103 = vld [vmem:[%s1 + $0xe8] sm:$0xf]
  %v104 = vld [vmem:[%s1 + $0xec] sm:$0xf]
  %v105 = vld [vmem:[%s1 + $0xf0] sm:$0xf]
  %v106 = vld [vmem:[%s1 + $0xf4] sm:$0xf]
  %v107 = vld [vmem:[%s1 + $0xf8] sm:$0xf]
  %v108 = vld [vmem:[%s1 + $0xfc] sm:$0xf]
  %v141 = vunpack.c.l.b16 %v13
  %v142 = vunpack.c.h.b16 %v13
  %v143 = vunpack.c.l.b16 %v14
  %v144 = vunpack.c.h.b16 %v14
  %v145 = vunpack.c.l.b16 %v15
  %v146 = vunpack.c.h.b16 %v15
  %v147 = vunpack.c.l.b16 %v16
  %v148 = vunpack.c.h.b16 %v16
  %v149 = vunpack.c.l.b16 %v17
  %v150 = vunpack.c.h.b16 %v17
  %v151 = vunpack.c.l.b16 %v18
  %v152 = vunpack.c.h.b16 %v18
  %v153 = vunpack.c.l.b16 %v19
  %v154 = vunpack.c.h.b16 %v19
  %v155 = vunpack.c.l.b16 %v20
  %v156 = vunpack.c.h.b16 %v20
  %v157 = vunpack.c.l.b16 %v21
  %v158 = vunpack.c.h.b16 %v21
  %v159 = vunpack.c.l.b16 %v22
  %v160 = vunpack.c.h.b16 %v22
  %v161 = vunpack.c.l.b16 %v23
  %v162 = vunpack.c.h.b16 %v23
  %v163 = vunpack.c.l.b16 %v24
  %v164 = vunpack.c.h.b16 %v24
  %v165 = vunpack.c.l.b16 %v25
  %v166 = vunpack.c.h.b16 %v25
  %v167 = vunpack.c.l.b16 %v26
  %v168 = vunpack.c.h.b16 %v26
  %v169 = vunpack.c.l.b16 %v27
  %v170 = vunpack.c.h.b16 %v27
  %v171 = vunpack.c.l.b16 %v28
  %v172 = vunpack.c.h.b16 %v28
  %v173 = vunpack.c.l.b16 %v29
  %v174 = vunpack.c.h.b16 %v29
  %v175 = vunpack.c.l.b16 %v30
  %v176 = vunpack.c.h.b16 %v30
  %v177 = vunpack.c.l.b16 %v31
  %v178 = vunpack.c.h.b16 %v31
  %v179 = vunpack.c.l.b16 %v32
  %v180 = vunpack.c.h.b16 %v32
  %v181 = vunpack.c.l.b16 %v33
  %v182 = vunpack.c.h.b16 %v33
  %v183 = vunpack.c.l.b16 %v34
  %v184 = vunpack.c.h.b16 %v34
  %v185 = vunpack.c.l.b16 %v35
  %v186 = vunpack.c.h.b16 %v35
  %v187 = vunpack.c.l.b16 %v36
  %v188 = vunpack.c.h.b16 %v36
  %v189 = vunpack.c.l.b16 %v37
  %v190 = vunpack.c.h.b16 %v37
  %v191 = vunpack.c.l.b16 %v38
  %v192 = vunpack.c.h.b16 %v38
  %v193 = vunpack.c.l.b16 %v39
  %v194 = vunpack.c.h.b16 %v39
  %v195 = vunpack.c.l.b16 %v40
  %v196 = vunpack.c.h.b16 %v40
  %v197 = vunpack.c.l.b16 %v41
  %v198 = vunpack.c.h.b16 %v41
  %v199 = vunpack.c.l.b16 %v42
  %v200 = vunpack.c.h.b16 %v42
  %v201 = vunpack.c.l.b16 %v43
  %v202 = vunpack.c.h.b16 %v43
  %v203 = vunpack.c.l.b16 %v44
  %v204 = vunpack.c.h.b16 %v44
  %v205 = vpack.c.b16 %v145, %v141
  %v206 = vpack.c.b16 %v146, %v142
  %v207 = vpack.c.b16 %v147, %v143
  %v208 = vpack.c.b16 %v148, %v144
  %v209 = vpack.c.b16 %v153, %v149
  %v210 = vpack.c.b16 %v154, %v150
  %v211 = vpack.c.b16 %v155, %v151
  %v212 = vpack.c.b16 %v156, %v152
  %v213 = vpack.c.b16 %v161, %v157
  %v214 = vpack.c.b16 %v162, %v158
  %v215 = vpack.c.b16 %v163, %v159
  %v216 = vpack.c.b16 %v164, %v160
  %v217 = vpack.c.b16 %v169, %v165
  %v218 = vpack.c.b16 %v170, %v166
  %v219 = vpack.c.b16 %v171, %v167
  %v220 = vpack.c.b16 %v172, %v168
  %v221 = vpack.c.b16 %v177, %v173
  %v222 = vpack.c.b16 %v178, %v174
  %v223 = vpack.c.b16 %v179, %v175
  %v224 = vpack.c.b16 %v180, %v176
  %v225 = vpack.c.b16 %v185, %v181
  %v226 = vpack.c.b16 %v186, %v182
  %v227 = vpack.c.b16 %v187, %v183
  %v228 = vpack.c.b16 %v188, %v184
  %v229 = vpack.c.b16 %v193, %v189
  %v230 = vpack.c.b16 %v194, %v190
  %v231 = vpack.c.b16 %v195, %v191
  %v232 = vpack.c.b16 %v196, %v192
  %v233 = vpack.c.b16 %v201, %v197
  %v234 = vpack.c.b16 %v202, %v198
  %v235 = vpack.c.b16 %v203, %v199
  %v236 = vpack.c.b16 %v204, %v200
  %v333 = vunpack.c.l.b16 %v45
  %v334 = vunpack.c.l.b16 %v46
  %v335 = vunpack.c.l.b16 %v47
  %v336 = vunpack.c.l.b16 %v48
  %v337 = vunpack.c.l.b16 %v49
  %v338 = vunpack.c.l.b16 %v50
  %v339 = vunpack.c.l.b16 %v51
  %v340 = vunpack.c.l.b16 %v52
  %v341 = vunpack.c.l.b16 %v53
  %v342 = vunpack.c.l.b16 %v54
  %v343 = vunpack.c.l.b16 %v55
  %v344 = vunpack.c.l.b16 %v56
  %v345 = vunpack.c.l.b16 %v57
  %v346 = vunpack.c.l.b16 %v58
  %v347 = vunpack.c.l.b16 %v59
  %v348 = vunpack.c.l.b16 %v60
  %v349 = vunpack.c.l.b16 %v61
  %v350 = vunpack.c.l.b16 %v62
  %v351 = vunpack.c.l.b16 %v63
  %v352 = vunpack.c.l.b16 %v64
  %v353 = vunpack.c.l.b16 %v65
  %v354 = vunpack.c.l.b16 %v66
  %v355 = vunpack.c.l.b16 %v67
  %v356 = vunpack.c.l.b16 %v68
  %v357 = vunpack.c.l.b16 %v69
  %v358 = vunpack.c.l.b16 %v70
  %v359 = vunpack.c.l.b16 %v71
  %v360 = vunpack.c.l.b16 %v72
  %v361 = vunpack.c.l.b16 %v73
  %v362 = vunpack.c.l.b16 %v74
  %v363 = vunpack.c.l.b16 %v75
  %v364 = vunpack.c.l.b16 %v76
  %v365 = vunpack.c.l.b16 %v77
  %v366 = vunpack.c.l.b16 %v78
  %v367 = vunpack.c.l.b16 %v79
  %v368 = vunpack.c.l.b16 %v80
  %v369 = vunpack.c.l.b16 %v81
  %v370 = vunpack.c.l.b16 %v82
  %v371 = vunpack.c.l.b16 %v83
  %v372 = vunpack.c.l.b16 %v84
  %v373 = vunpack.c.l.b16 %v85
  %v374 = vunpack.c.l.b16 %v86
  %v375 = vunpack.c.l.b16 %v87
  %v376 = vunpack.c.l.b16 %v88
  %v377 = vunpack.c.l.b16 %v89
  %v378 = vunpack.c.l.b16 %v90
  %v379 = vunpack.c.l.b16 %v91
  %v380 = vunpack.c.l.b16 %v92
  %v381 = vunpack.c.l.b16 %v93
  %v382 = vunpack.c.l.b16 %v94
  %v383 = vunpack.c.l.b16 %v95
  %v384 = vunpack.c.l.b16 %v96
  %v385 = vunpack.c.l.b16 %v97
  %v386 = vunpack.c.l.b16 %v98
  %v387 = vunpack.c.l.b16 %v99
  %v388 = vunpack.c.l.b16 %v100
  %v389 = vunpack.c.l.b16 %v101
  %v390 = vunpack.c.l.b16 %v102
  %v391 = vunpack.c.l.b16 %v103
  %v392 = vunpack.c.l.b16 %v104
  %v393 = vunpack.c.l.b16 %v105
  %v394 = vunpack.c.l.b16 %v106
  %v395 = vunpack.c.l.b16 %v107
  %v396 = vunpack.c.l.b16 %v108
  %v397 = vpack.c.b16 %v334, %v333
  %v398 = vpack.c.b16 %v336, %v335
  %v399 = vpack.c.b16 %v338, %v337
  %v400 = vpack.c.b16 %v340, %v339
  %v401 = vpack.c.b16 %v342, %v341
  %v402 = vpack.c.b16 %v344, %v343
  %v403 = vpack.c.b16 %v346, %v345
  %v404 = vpack.c.b16 %v348, %v347
  %v405 = vpack.c.b16 %v350, %v349
  %v406 = vpack.c.b16 %v352, %v351
  %v407 = vpack.c.b16 %v354, %v353
  %v408 = vpack.c.b16 %v356, %v355
  %v409 = vpack.c.b16 %v358, %v357
  %v410 = vpack.c.b16 %v360, %v359
  %v411 = vpack.c.b16 %v362, %v361
  %v412 = vpack.c.b16 %v364, %v363
  %v413 = vpack.c.b16 %v366, %v365
  %v414 = vpack.c.b16 %v368, %v367
  %v415 = vpack.c.b16 %v370, %v369
  %v416 = vpack.c.b16 %v372, %v371
  %v417 = vpack.c.b16 %v374, %v373
  %v418 = vpack.c.b16 %v376, %v375
  %v419 = vpack.c.b16 %v378, %v377
  %v420 = vpack.c.b16 %v380, %v379
  %v421 = vpack.c.b16 %v382, %v381
  %v422 = vpack.c.b16 %v384, %v383
  %v423 = vpack.c.b16 %v386, %v385
  %v424 = vpack.c.b16 %v388, %v387
  %v425 = vpack.c.b16 %v390, %v389
  %v426 = vpack.c.b16 %v392, %v391
  %v427 = vpack.c.b16 %v394, %v393
  %v428 = vpack.c.b16 %v396, %v395
  %461 = vmatpush.bf16.msra.mxu0 %v404
  %462 = vmatpush.bf16.msra.mxu0 %v403
  %463 = vmatpush.bf16.msra.mxu0 %v402
  %464 = vmatpush.bf16.msra.mxu0 %v401
  %465 = vmatpush.bf16.msra.mxu0 %v400
  %466 = vmatpush.bf16.msra.mxu0 %v399
  %467 = vmatpush.bf16.msra.mxu0 %v398
  %468 = vmatpush.bf16.msra.mxu0 %v397
  %469 = vmatmul.bf16.gmra.mxu0 %v205
  %v470 = vpop.f32.mrf.mxu0
  %v471 = vadd.f32 0.0, %v470
  %v472 = vpop.f32.mrf.mxu0
  %v473 = vadd.f32 0.0, %v472
  %474 = vmatmul.bf16.gmra.mxu0 %v209
  %v475 = vpop.f32.mrf.mxu0
  %v476 = vadd.f32 0.0, %v475
  %v477 = vpop.f32.mrf.mxu0
  %v478 = vadd.f32 0.0, %v477
  %479 = vmatmul.bf16.gmra.mxu0 %v213
  %v480 = vpop.f32.mrf.mxu0
  %v481 = vadd.f32 0.0, %v480
  %v482 = vpop.f32.mrf.mxu0
  %v483 = vadd.f32 0.0, %v482
  %484 = vmatmul.bf16.gmra.mxu0 %v217
  %v485 = vpop.f32.mrf.mxu0
  %v486 = vadd.f32 0.0, %v485
  %v487 = vpop.f32.mrf.mxu0
  %v488 = vadd.f32 0.0, %v487
  %489 = vmatmul.bf16.gmra.mxu0 %v221
  %v490 = vpop.f32.mrf.mxu0
  %v491 = vadd.f32 0.0, %v490
  %v492 = vpop.f32.mrf.mxu0
  %v493 = vadd.f32 0.0, %v492
  %494 = vmatmul.bf16.gmra.mxu0 %v225
  %v495 = vpop.f32.mrf.mxu0
  %v496 = vadd.f32 0.0, %v495
  %v497 = vpop.f32.mrf.mxu0
  %v498 = vadd.f32 0.0, %v497
  %499 = vmatmul.bf16.gmra.mxu0 %v229
  %v500 = vpop.f32.mrf.mxu0
  %v501 = vadd.f32 0.0, %v500
  %v502 = vpop.f32.mrf.mxu0
  %v503 = vadd.f32 0.0, %v502
  %504 = vmatmul.bf16.gmra.mxu0 %v233
  %v505 = vpop.f32.mrf.mxu0
  %v506 = vadd.f32 0.0, %v505
  %v507 = vpop.f32.mrf.mxu0
  %v508 = vadd.f32 0.0, %v507
  %509 = vdwg.mxu0
  %510 = vmatpush.bf16.msra.mxu0 %v412
  %511 = vmatpush.bf16.msra.mxu0 %v411
  %512 = vmatpush.bf16.msra.mxu0 %v410
  %513 = vmatpush.bf16.msra.mxu0 %v409
  %514 = vmatpush.bf16.msra.mxu0 %v408
  %515 = vmatpush.bf16.msra.mxu0 %v407
  %516 = vmatpush.bf16.msra.mxu0 %v406
  %517 = vmatpush.bf16.msra.mxu0 %v405
  %518 = vmatmul.bf16.gmra.mxu0 %v206
  %v519 = vpop.f32.mrf.mxu0
  %v520 = vadd.f32 %v471, %v519
  %v521 = vpop.f32.mrf.mxu0
  %v522 = vadd.f32 %v473, %v521
  %523 = vmatmul.bf16.gmra.mxu0 %v210
  %v524 = vpop.f32.mrf.mxu0
  %v525 = vadd.f32 %v476, %v524
  %v526 = vpop.f32.mrf.mxu0
  %v527 = vadd.f32 %v478, %v526
  %528 = vmatmul.bf16.gmra.mxu0 %v214
  %v529 = vpop.f32.mrf.mxu0
  %v530 = vadd.f32 %v481, %v529
  %v531 = vpop.f32.mrf.mxu0
  %v532 = vadd.f32 %v483, %v531
  %533 = vmatmul.bf16.gmra.mxu0 %v218
  %v534 = vpop.f32.mrf.mxu0
  %v535 = vadd.f32 %v486, %v534
  %v536 = vpop.f32.mrf.mxu0
  %v537 = vadd.f32 %v488, %v536
  %538 = vmatmul.bf16.gmra.mxu0 %v222
  %v539 = vpop.f32.mrf.mxu0
  %v540 = vadd.f32 %v491, %v539
  %v541 = vpop.f32.mrf.mxu0
  %v542 = vadd.f32 %v493, %v541
  %543 = vmatmul.bf16.gmra.mxu0 %v226
  %v544 = vpop.f32.mrf.mxu0
  %v545 = vadd.f32 %v496, %v544
  %v546 = vpop.f32.mrf.mxu0
  %v547 = vadd.f32 %v498, %v546
  %548 = vmatmul.bf16.gmra.mxu0 %v230
  %v549 = vpop.f32.mrf.mxu0
  %v550 = vadd.f32 %v501, %v549
  %v551 = vpop.f32.mrf.mxu0
  %v552 = vadd.f32 %v503, %v551
  %553 = vmatmul.bf16.gmra.mxu0 %v234
  %v554 = vpop.f32.mrf.mxu0
  %v555 = vadd.f32 %v506, %v554
  %v556 = vpop.f32.mrf.mxu0
  %v557 = vadd.f32 %v508, %v556
  %558 = vdwg.mxu0
  %559 = vmatpush.bf16.msra.mxu0 %v420
  %560 = vmatpush.bf16.msra.mxu0 %v419
  %561 = vmatpush.bf16.msra.mxu0 %v418
  %562 = vmatpush.bf16.msra.mxu0 %v417
  %563 = vmatpush.bf16.msra.mxu0 %v416
  %564 = vmatpush.bf16.msra.mxu0 %v415
  %565 = vmatpush.bf16.msra.mxu0 %v414
  %566 = vmatpush.bf16.msra.mxu0 %v413
  %567 = vmatmul.bf16.gmra.mxu0 %v207
  %v568 = vpop.f32.mrf.mxu0
  %v569 = vadd.f32 %v520, %v568
  %v570 = vpop.f32.mrf.mxu0
  %v571 = vadd.f32 %v522, %v570
  %572 = vmatmul.bf16.gmra.mxu0 %v211
  %v573 = vpop.f32.mrf.mxu0
  %v574 = vadd.f32 %v525, %v573
  %v575 = vpop.f32.mrf.mxu0
  %v576 = vadd.f32 %v527, %v575
  %577 = vmatmul.bf16.gmra.mxu0 %v215
  %v578 = vpop.f32.mrf.mxu0
  %v579 = vadd.f32 %v530, %v578
  %v580 = vpop.f32.mrf.mxu0
  %v581 = vadd.f32 %v532, %v580
  %582 = vmatmul.bf16.gmra.mxu0 %v219
  %v583 = vpop.f32.mrf.mxu0
  %v584 = vadd.f32 %v535, %v583
  %v585 = vpop.f32.mrf.mxu0
  %v586 = vadd.f32 %v537, %v585
  %587 = vmatmul.bf16.gmra.mxu0 %v223
  %v588 = vpop.f32.mrf.mxu0
  %v589 = vadd.f32 %v540, %v588
  %v590 = vpop.f32.mrf.mxu0
  %v591 = vadd.f32 %v542, %v590
  %592 = vmatmul.bf16.gmra.mxu0 %v227
  %v593 = vpop.f32.mrf.mxu0
  %v594 = vadd.f32 %v545, %v593
  %v595 = vpop.f32.mrf.mxu0
  %v596 = vadd.f32 %v547, %v595
  %597 = vmatmul.bf16.gmra.mxu0 %v231
  %v598 = vpop.f32.mrf.mxu0
  %v599 = vadd.f32 %v550, %v598
  %v600 = vpop.f32.mrf.mxu0
  %v601 = vadd.f32 %v552, %v600
  %602 = vmatmul.bf16.gmra.mxu0 %v235
  %v603 = vpop.f32.mrf.mxu0
  %v604 = vadd.f32 %v555, %v603
  %v605 = vpop.f32.mrf.mxu0
  %v606 = vadd.f32 %v557, %v605
  %607 = vdwg.mxu0
  %608 = vmatpush.bf16.msra.mxu0 %v428
  %609 = vmatpush.bf16.msra.mxu0 %v427
  %610 = vmatpush.bf16.msra.mxu0 %v426
  %611 = vmatpush.bf16.msra.mxu0 %v425
  %612 = vmatpush.bf16.msra.mxu0 %v424
  %613 = vmatpush.bf16.msra.mxu0 %v423
  %614 = vmatpush.bf16.msra.mxu0 %v422
  %615 = vmatpush.bf16.msra.mxu0 %v421
  %616 = vmatmul.bf16.gmra.mxu0 %v208
  %v617 = vpop.f32.mrf.mxu0
  %v618 = vadd.f32 %v569, %v617
  %v619 = vpop.f32.mrf.mxu0
  %v620 = vadd.f32 %v571, %v619
  %621 = vmatmul.bf16.gmra.mxu0 %v212
  %v622 = vpop.f32.mrf.mxu0
  %v623 = vadd.f32 %v574, %v622
  %v624 = vpop.f32.mrf.mxu0
  %v625 = vadd.f32 %v576, %v624
  %626 = vmatmul.bf16.gmra.mxu0 %v216
  %v627 = vpop.f32.mrf.mxu0
  %v628 = vadd.f32 %v579, %v627
  %v629 = vpop.f32.mrf.mxu0
  %v630 = vadd.f32 %v581, %v629
  %631 = vmatmul.bf16.gmra.mxu0 %v220
  %v632 = vpop.f32.mrf.mxu0
  %v633 = vadd.f32 %v584, %v632
  %v634 = vpop.f32.mrf.mxu0
  %v635 = vadd.f32 %v586, %v634
  %636 = vmatmul.bf16.gmra.mxu0 %v224
  %v637 = vpop.f32.mrf.mxu0
  %v638 = vadd.f32 %v589, %v637
  %v639 = vpop.f32.mrf.mxu0
  %v640 = vadd.f32 %v591, %v639
  %641 = vmatmul.bf16.gmra.mxu0 %v228
  %v642 = vpop.f32.mrf.mxu0
  %v643 = vadd.f32 %v594, %v642
  %v644 = vpop.f32.mrf.mxu0
  %v645 = vadd.f32 %v596, %v644
  %646 = vmatmul.bf16.gmra.mxu0 %v232
  %v647 = vpop.f32.mrf.mxu0
  %v648 = vadd.f32 %v599, %v647
  %v649 = vpop.f32.mrf.mxu0
  %v650 = vadd.f32 %v601, %v649
  %651 = vmatmul.bf16.gmra.mxu0 %v236
  %v652 = vpop.f32.mrf.mxu0
  %v653 = vadd.f32 %v604, %v652
  %v654 = vpop.f32.mrf.mxu0
  %v655 = vadd.f32 %v606, %v654
  %656 = vdwg.mxu0
  %657 = vst [vmem:[%s2] sm:$0xff] %v618
  %658 = vst [vmem:[%s2 + $0x8] sm:$0xff] %v620
  %659 = vst [vmem:[%s2 + $0x10] sm:$0xff] %v623
  %660 = vst [vmem:[%s2 + $0x18] sm:$0xff] %v625
  %661 = vst [vmem:[%s2 + $0x20] sm:$0xff] %v628
  %662 = vst [vmem:[%s2 + $0x28] sm:$0xff] %v630
  %663 = vst [vmem:[%s2 + $0x30] sm:$0xff] %v633
  %664 = vst [vmem:[%s2 + $0x38] sm:$0xff] %v635
  %665 = vst [vmem:[%s2 + $0x40] sm:$0xff] %v638
  %666 = vst [vmem:[%s2 + $0x48] sm:$0xff] %v640
  %667 = vst [vmem:[%s2 + $0x50] sm:$0xff] %v643
  %668 = vst [vmem:[%s2 + $0x58] sm:$0xff] %v645
  %669 = vst [vmem:[%s2 + $0x60] sm:$0xff] %v648
  %670 = vst [vmem:[%s2 + $0x68] sm:$0xff] %v650
  %671 = vst [vmem:[%s2 + $0x70] sm:$0xff] %v653
  %672 = vst [vmem:[%s2 + $0x78] sm:$0xff] %v655
  %v673 = vadd.f32 %v618, %v620
  %v674 = vadd.f32 %v673, %v623
  %v675 = vadd.f32 %v674, %v625
  %v676 = vadd.f32 %v675, %v628
  %v677 = vadd.f32 %v676, %v630
  %v678 = vadd.f32 %v677, %v633
  %v679 = vadd.f32 %v678, %v635
  %v680 = vadd.f32 %v679, %v638
  %v681 = vadd.f32 %v680, %v640
  %v682 = vadd.f32 %v681, %v643
  %v683 = vadd.f32 %v682, %v645
  %v684 = vadd.f32 %v683, %v648
  %v685 = vadd.f32 %v684, %v650
  %v686 = vadd.f32 %v685, %v653
  %v687 = vadd.f32 %v686, %v655
  %v688 = vrot.slane %v687, 4
  %v689 = vadd.f32 %v687, %v688
  %v690 = vrot.slane %v689, 2
  %v691 = vadd.f32 %v689, %v690
  %v692 = vrot.slane %v691, 1
  %v693 = vadd.f32 %v691, %v692
  %v694 = vmul.f32 %v618, %v618
  %v695 = vmul.f32 %v620, %v620
  %v696 = vmul.f32 %v623, %v623
  %v697 = vmul.f32 %v625, %v625
  %v698 = vmul.f32 %v628, %v628
  %v699 = vmul.f32 %v630, %v630
  %v700 = vmul.f32 %v633, %v633
  %v701 = vmul.f32 %v635, %v635
  %v702 = vmul.f32 %v638, %v638
  %v703 = vmul.f32 %v640, %v640
  %v704 = vmul.f32 %v643, %v643
  %v705 = vmul.f32 %v645, %v645
  %v706 = vmul.f32 %v648, %v648
  %v707 = vmul.f32 %v650, %v650
  %v708 = vmul.f32 %v653, %v653
  %v709 = vmul.f32 %v655, %v655
  %v710 = vadd.f32 %v694, %v695
  %v711 = vadd.f32 %v710, %v696
  %v712 = vadd.f32 %v711, %v697
  %v713 = vadd.f32 %v712, %v698
  %v714 = vadd.f32 %v713, %v699
  %v715 = vadd.f32 %v714, %v700
  %v716 = vadd.f32 %v715, %v701
  %v717 = vadd.f32 %v716, %v702
  %v718 = vadd.f32 %v717, %v703
  %v719 = vadd.f32 %v718, %v704
  %v720 = vadd.f32 %v719, %v705
  %v721 = vadd.f32 %v720, %v706
  %v722 = vadd.f32 %v721, %v707
  %v723 = vadd.f32 %v722, %v708
  %v724 = vadd.f32 %v723, %v709
  %v725 = vrot.slane %v724, 4
  %v726 = vadd.f32 %v724, %v725
  %v727 = vrot.slane %v726, 2
  %v728 = vadd.f32 %v726, %v727
  %v729 = vrot.slane %v728, 1
  %v730 = vadd.f32 %v728, %v729
  %vm731 = vcmask 1040384
  %v732 = vsel %vm731, %v693, %v730
  %vm733 = vcmask 1041408
  %v734 = vsel %vm733, %v732, 0.0
  %735 = vst [vmem:[%s3] sm:$0xff] %v734
  // Predicated region
  $region10: #{autoencoder_forward.27} parent=0 // pred_check
    _
  $region11: #{autoencoder_forward.27} parent=0 // pred_check_branch
    %737 = sbr.rel (0) target = $region13
  $region12: #{autoencoder_forward.27} parent=0 // pred_region
    _
  $region13: #{autoencoder_forward.27} parent=0 // pred_fallthru
    _
  // Predicated region
  $region14: #{autoencoder_forward.27} parent=0 // pred_check
    _
  $region15: #{autoencoder_forward.27} parent=0 // pred_check_branch
    %739 = sbr.rel (0) target = $region17
  $region16: #{autoencoder_forward.27} parent=0 // pred_region
    _
  $region17: #{autoencoder_forward.27} parent=0 // pred_fallthru
    _
  // Predicated region
  $region18: #{autoencoder_forward.27} parent=0 // pred_check
    _
  $region19: #{autoencoder_forward.27} parent=0 // pred_check_branch
    %741 = sbr.rel (0) target = $region21
  $region20: #{autoencoder_forward.27} parent=0 // pred_region
    _
  $region21: #{autoencoder_forward.27} parent=0 // pred_fallthru
    _
  // Predicated region
  $region22: #{autoencoder_forward.27} parent=0 // pred_check
    _
  $region23: #{autoencoder_forward.27} parent=0 // pred_check_branch
    %743 = sbr.rel (0) target = $region25
  $region24: #{autoencoder_forward.27} parent=0 // pred_region
    _
  $region25: #{autoencoder_forward.27} parent=0 // pred_fallthru
    _

// kernel: autoencoder_forward.29
$region0: #{autoencoder_forward.29}
  #allocation0 [shape = 'u32[]', space=smem, size = 0x4, offset = 0x4, fixed_abs, tag = 'smem constant byte address 0x4 - core index']
  #allocation1 [shape = 'u32[72,128]{1,0:T(1,128)}', space=vmem, size = 0x9000, scoped, tag = 'internal scratch']
  %s0 = inlined_call_operand.vmem [shape: bf16[512,256], index: 0, kind: input, shape index: {}]
  %s1 = inlined_call_operand.vmem [shape: bf16[256,128], index: 1, kind: input, shape index: {}]
  %s2 = inlined_call_operand.vmem [shape: f32[1,128], index: 2, kind: input, shape index: {}]
  %s3 = inlined_call_operand.vmem [shape: f32[512,128], index: 3, kind: output, shape index: {}]
  %s4 = sld [smem:[#allocation0]]
  $region22: #{autoencoder_forward.29} parent=0
    _
  %s6 = ssub.s32 1, %s4
  %s7 = scalar_select 0, %s6, %s4
  // Predicated region
  $region2: #{autoencoder_forward.29} parent=0 // pred_check
    _
  $region3: #{autoencoder_forward.29} parent=0 // pred_check_branch
    %9 = sbr.rel (0) target = $region5
  $region4: #{autoencoder_forward.29} parent=0 // pred_region
    _
  $region5: #{autoencoder_forward.29} parent=0 // pred_fallthru
    _
  // Predicated region
  $region6: #{autoencoder_forward.29} parent=0 // pred_check
    _
  $region7: #{autoencoder_forward.29} parent=0 // pred_check_branch
    %11 = sbr.rel (0) target = $region9
  $region8: #{autoencoder_forward.29} parent=0 // pred_region
    _
  $region9: #{autoencoder_forward.29} parent=0 // pred_fallthru
    _
  // Predicated region
  $region10: #{autoencoder_forward.29} parent=0 // pred_check
    _
  $region11: #{autoencoder_forward.29} parent=0 // pred_check_branch
    %13 = sbr.rel (0) target = $region13
  $region12: #{autoencoder_forward.29} parent=0 // pred_region
    _
  $region13: #{autoencoder_forward.29} parent=0 // pred_fallthru
    _
  %v14 = vld [vmem:[%s0] sm:$0xff]
  %v15 = vld [vmem:[%s0 + $0x8] sm:$0xff]
  %v16 = vld [vmem:[%s0 + $0x10] sm:$0xff]
  %v17 = vld [vmem:[%s0 + $0x18] sm:$0xff]
  %v18 = vld [vmem:[%s0 + $0x20] sm:$0xff]
  %v19 = vld [vmem:[%s0 + $0x28] sm:$0xff]
  %v20 = vld [vmem:[%s0 + $0x30] sm:$0xff]
  %v21 = vld [vmem:[%s0 + $0x38] sm:$0xff]
  %v22 = vld [vmem:[%s0 + $0x40] sm:$0xff]
  %v23 = vld [vmem:[%s0 + $0x48] sm:$0xff]
  %v24 = vld [vmem:[%s0 + $0x50] sm:$0xff]
  %v25 = vld [vmem:[%s0 + $0x58] sm:$0xff]
  %v26 = vld [vmem:[%s0 + $0x60] sm:$0xff]
  %v27 = vld [vmem:[%s0 + $0x68] sm:$0xff]
  %v28 = vld [vmem:[%s0 + $0x70] sm:$0xff]
  %v29 = vld [vmem:[%s0 + $0x78] sm:$0xff]
  %v30 = vld [vmem:[%s0 + $0x80] sm:$0xff]
  %v31 = vld [vmem:[%s0 + $0x88] sm:$0xff]
  %v32 = vld [vmem:[%s0 + $0x90] sm:$0xff]
  %v33 = vld [vmem:[%s0 + $0x98] sm:$0xff]
  %v34 = vld [vmem:[%s0 + $0xa0] sm:$0xff]
  %v35 = vld [vmem:[%s0 + $0xa8] sm:$0xff]
  %v36 = vld [vmem:[%s0 + $0xb0] sm:$0xff]
  %v37 = vld [vmem:[%s0 + $0xb8] sm:$0xff]
  %v38 = vld [vmem:[%s0 + $0xc0] sm:$0xff]
  %v39 = vld [vmem:[%s0 + $0xc8] sm:$0xff]
  %v40 = vld [vmem:[%s0 + $0xd0] sm:$0xff]
  %v41 = vld [vmem:[%s0 + $0xd8] sm:$0xff]
  %v42 = vld [vmem:[%s0 + $0xe0] sm:$0xff]
  %v43 = vld [vmem:[%s0 + $0xe8] sm:$0xff]
  %v44 = vld [vmem:[%s0 + $0xf0] sm:$0xff]
  %v45 = vld [vmem:[%s0 + $0xf8] sm:$0xff]
  %v46 = vld [vmem:[%s0 + $0x100] sm:$0xff]
  %v47 = vld [vmem:[%s0 + $0x108] sm:$0xff]
  %v48 = vld [vmem:[%s0 + $0x110] sm:$0xff]
  %v49 = vld [vmem:[%s0 + $0x118] sm:$0xff]
  %v50 = vld [vmem:[%s0 + $0x120] sm:$0xff]
  %v51 = vld [vmem:[%s0 + $0x128] sm:$0xff]
  %v52 = vld [vmem:[%s0 + $0x130] sm:$0xff]
  %v53 = vld [vmem:[%s0 + $0x138] sm:$0xff]
  %v54 = vld [vmem:[%s0 + $0x140] sm:$0xff]
  %v55 = vld [vmem:[%s0 + $0x148] sm:$0xff]
  %v56 = vld [vmem:[%s0 + $0x150] sm:$0xff]
  %v57 = vld [vmem:[%s0 + $0x158] sm:$0xff]
  %v58 = vld [vmem:[%s0 + $0x160] sm:$0xff]
  %v59 = vld [vmem:[%s0 + $0x168] sm:$0xff]
  %v60 = vld [vmem:[%s0 + $0x170] sm:$0xff]
  %v61 = vld [vmem:[%s0 + $0x178] sm:$0xff]
  %v62 = vld [vmem:[%s0 + $0x180] sm:$0xff]
  %v63 = vld [vmem:[%s0 + $0x188] sm:$0xff]
  %v64 = vld [vmem:[%s0 + $0x190] sm:$0xff]
  %v65 = vld [vmem:[%s0 + $0x198] sm:$0xff]
  %v66 = vld [vmem:[%s0 + $0x1a0] sm:$0xff]
  %v67 = vld [vmem:[%s0 + $0x1a8] sm:$0xff]
  %v68 = vld [vmem:[%s0 + $0x1b0] sm:$0xff]
  %v69 = vld [vmem:[%s0 + $0x1b8] sm:$0xff]
  %v70 = vld [vmem:[%s0 + $0x1c0] sm:$0xff]
  %v71 = vld [vmem:[%s0 + $0x1c8] sm:$0xff]
  %v72 = vld [vmem:[%s0 + $0x1d0] sm:$0xff]
  %v73 = vld [vmem:[%s0 + $0x1d8] sm:$0xff]
  %v74 = vld [vmem:[%s0 + $0x1e0] sm:$0xff]
  %v75 = vld [vmem:[%s0 + $0x1e8] sm:$0xff]
  %v76 = vld [vmem:[%s0 + $0x1f0] sm:$0xff]
  %v77 = vld [vmem:[%s0 + $0x1f8] sm:$0xff]
  %v78 = vld [vmem:[%s1] sm:$0xf]
  %v79 = vld [vmem:[%s1 + $0x4] sm:$0xf]
  %v80 = vld [vmem:[%s1 + $0x8] sm:$0xf]
  %v81 = vld [vmem:[%s1 + $0xc] sm:$0xf]
  %v82 = vld [vmem:[%s1 + $0x10] sm:$0xf]
  %v83 = vld [vmem:[%s1 + $0x14] sm:$0xf]
  %v84 = vld [vmem:[%s1 + $0x18] sm:$0xf]
  %v85 = vld [vmem:[%s1 + $0x1c] sm:$0xf]
  %v86 = vld [vmem:[%s1 + $0x20] sm:$0xf]
  %v87 = vld [vmem:[%s1 + $0x24] sm:$0xf]
  %v88 = vld [vmem:[%s1 + $0x28] sm:$0xf]
  %v89 = vld [vmem:[%s1 + $0x2c] sm:$0xf]
  %v90 = vld [vmem:[%s1 + $0x30] sm:$0xf]
  %v91 = vld [vmem:[%s1 + $0x34] sm:$0xf]
  %v92 = vld [vmem:[%s1 + $0x38] sm:$0xf]
  %v93 = vld [vmem:[%s1 + $0x3c] sm:$0xf]
  %v94 = vld [vmem:[%s1 + $0x40] sm:$0xf]
  %v95 = vld [vmem:[%s1 + $0x44] sm:$0xf]
  %v96 = vld [vmem:[%s1 + $0x48] sm:$0xf]
  %v97 = vld [vmem:[%s1 + $0x4c] sm:$0xf]
  %v98 = vld [vmem:[%s1 + $0x50] sm:$0xf]
  %v99 = vld [vmem:[%s1 + $0x54] sm:$0xf]
  %v100 = vld [vmem:[%s1 + $0x58] sm:$0xf]
  %v101 = vld [vmem:[%s1 + $0x5c] sm:$0xf]
  %v102 = vld [vmem:[%s1 + $0x60] sm:$0xf]
  %v103 = vld [vmem:[%s1 + $0x64] sm:$0xf]
  %v104 = vld [vmem:[%s1 + $0x68] sm:$0xf]
  %v105 = vld [vmem:[%s1 + $0x6c] sm:$0xf]
  %v106 = vld [vmem:[%s1 + $0x70] sm:$0xf]
  %v107 = vld [vmem:[%s1 + $0x74] sm:$0xf]
  %v108 = vld [vmem:[%s1 + $0x78] sm:$0xf]
  %v109 = vld [vmem:[%s1 + $0x7c] sm:$0xf]
  %v110 = vld [vmem:[%s2] sm:$0x1]
  %v112 = vperm.slane %v110, 0
  %v178 = vunpack.c.l.b16 %v14
  %v179 = vunpack.c.h.b16 %v14
  %v180 = vunpack.c.l.b16 %v15
  %v181 = vunpack.c.h.b16 %v15
  %v182 = vunpack.c.l.b16 %v16
  %v183 = vunpack.c.h.b16 %v16
  %v184 = vunpack.c.l.b16 %v17
  %v185 = vunpack.c.h.b16 %v17
  %v186 = vunpack.c.l.b16 %v18
  %v187 = vunpack.c.h.b16 %v18
  %v188 = vunpack.c.l.b16 %v19
  %v189 = vunpack.c.h.b16 %v19
  %v190 = vunpack.c.l.b16 %v20
  %v191 = vunpack.c.h.b16 %v20
  %v192 = vunpack.c.l.b16 %v21
  %v193 = vunpack.c.h.b16 %v21
  %v194 = vunpack.c.l.b16 %v22
  %v195 = vunpack.c.h.b16 %v22
  %v196 = vunpack.c.l.b16 %v23
  %v197 = vunpack.c.h.b16 %v23
  %v198 = vunpack.c.l.b16 %v24
  %v199 = vunpack.c.h.b16 %v24
  %v200 = vunpack.c.l.b16 %v25
  %v201 = vunpack.c.h.b16 %v25
  %v202 = vunpack.c.l.b16 %v26
  %v203 = vunpack.c.h.b16 %v26
  %v204 = vunpack.c.l.b16 %v27
  %v205 = vunpack.c.h.b16 %v27
  %v206 = vunpack.c.l.b16 %v28
  %v207 = vunpack.c.h.b16 %v28
  %v208 = vunpack.c.l.b16 %v29
  %v209 = vunpack.c.h.b16 %v29
  %v210 = vunpack.c.l.b16 %v30
  %v211 = vunpack.c.h.b16 %v30
  %v212 = vunpack.c.l.b16 %v31
  %v213 = vunpack.c.h.b16 %v31
  %v214 = vunpack.c.l.b16 %v32
  %v215 = vunpack.c.h.b16 %v32
  %v216 = vunpack.c.l.b16 %v33
  %v217 = vunpack.c.h.b16 %v33
  %v218 = vunpack.c.l.b16 %v34
  %v219 = vunpack.c.h.b16 %v34
  %v220 = vunpack.c.l.b16 %v35
  %v221 = vunpack.c.h.b16 %v35
  %v222 = vunpack.c.l.b16 %v36
  %v223 = vunpack.c.h.b16 %v36
  %v224 = vunpack.c.l.b16 %v37
  %v225 = vunpack.c.h.b16 %v37
  %v226 = vunpack.c.l.b16 %v38
  %v227 = vunpack.c.h.b16 %v38
  %v228 = vunpack.c.l.b16 %v39
  %v229 = vunpack.c.h.b16 %v39
  %v230 = vunpack.c.l.b16 %v40
  %v231 = vunpack.c.h.b16 %v40
  %v232 = vunpack.c.l.b16 %v41
  %v233 = vunpack.c.h.b16 %v41
  %v234 = vunpack.c.l.b16 %v42
  %v235 = vunpack.c.h.b16 %v42
  %v236 = vunpack.c.l.b16 %v43
  %v237 = vunpack.c.h.b16 %v43
  %v238 = vunpack.c.l.b16 %v44
  %v239 = vunpack.c.h.b16 %v44
  %v240 = vunpack.c.l.b16 %v45
  %v241 = vunpack.c.h.b16 %v45
  %v242 = vunpack.c.l.b16 %v46
  %v243 = vunpack.c.h.b16 %v46
  %v244 = vunpack.c.l.b16 %v47
  %v245 = vunpack.c.h.b16 %v47
  %v246 = vunpack.c.l.b16 %v48
  %v247 = vunpack.c.h.b16 %v48
  %v248 = vunpack.c.l.b16 %v49
  %v249 = vunpack.c.h.b16 %v49
  %v250 = vunpack.c.l.b16 %v50
  %v251 = vunpack.c.h.b16 %v50
  %v252 = vunpack.c.l.b16 %v51
  %v253 = vunpack.c.h.b16 %v51
  %v254 = vunpack.c.l.b16 %v52
  %v255 = vunpack.c.h.b16 %v52
  %v256 = vunpack.c.l.b16 %v53
  %v257 = vunpack.c.h.b16 %v53
  %v258 = vunpack.c.l.b16 %v54
  %v259 = vunpack.c.h.b16 %v54
  %v260 = vunpack.c.l.b16 %v55
  %v261 = vunpack.c.h.b16 %v55
  %v262 = vunpack.c.l.b16 %v56
  %v263 = vunpack.c.h.b16 %v56
  %v264 = vunpack.c.l.b16 %v57
  %v265 = vunpack.c.h.b16 %v57
  %v266 = vunpack.c.l.b16 %v58
  %v267 = vunpack.c.h.b16 %v58
  %v268 = vunpack.c.l.b16 %v59
  %v269 = vunpack.c.h.b16 %v59
  %v270 = vunpack.c.l.b16 %v60
  %v271 = vunpack.c.h.b16 %v60
  %v272 = vunpack.c.l.b16 %v61
  %v273 = vunpack.c.h.b16 %v61
  %v274 = vunpack.c.l.b16 %v62
  %v275 = vunpack.c.h.b16 %v62
  %v276 = vunpack.c.l.b16 %v63
  %v277 = vunpack.c.h.b16 %v63
  %v278 = vunpack.c.l.b16 %v64
  %v279 = vunpack.c.h.b16 %v64
  %v280 = vunpack.c.l.b16 %v65
  %v281 = vunpack.c.h.b16 %v65
  %v282 = vunpack.c.l.b16 %v66
  %v283 = vunpack.c.h.b16 %v66
  %v284 = vunpack.c.l.b16 %v67
  %v285 = vunpack.c.h.b16 %v67
  %v286 = vunpack.c.l.b16 %v68
  %v287 = vunpack.c.h.b16 %v68
  %v288 = vunpack.c.l.b16 %v69
  %v289 = vunpack.c.h.b16 %v69
  %v290 = vunpack.c.l.b16 %v70
  %v291 = vunpack.c.h.b16 %v70
  %v292 = vunpack.c.l.b16 %v71
  %v293 = vunpack.c.h.b16 %v71
  %v294 = vunpack.c.l.b16 %v72
  %v295 = vunpack.c.h.b16 %v72
  %v296 = vunpack.c.l.b16 %v73
  %v297 = vunpack.c.h.b16 %v73
  %v298 = vunpack.c.l.b16 %v74
  %v299 = vunpack.c.h.b16 %v74
  %v300 = vunpack.c.l.b16 %v75
  %v301 = vunpack.c.h.b16 %v75
  %v302 = vunpack.c.l.b16 %v76
  %v303 = vunpack.c.h.b16 %v76
  %v304 = vunpack.c.l.b16 %v77
  %v305 = vunpack.c.h.b16 %v77
  %v306 = vpack.c.b16 %v180, %v178
  %v307 = vpack.c.b16 %v181, %v179
  %v308 = vpack.c.b16 %v184, %v182
  %v309 = vpack.c.b16 %v185, %v183
  %v310 = vpack.c.b16 %v188, %v186
  %v311 = vpack.c.b16 %v189, %v187
  %v312 = vpack.c.b16 %v192, %v190
  %v313 = vpack.c.b16 %v193, %v191
  %v314 = vpack.c.b16 %v196, %v194
  %v315 = vpack.c.b16 %v197, %v195
  %v316 = vpack.c.b16 %v200, %v198
  %v317 = vpack.c.b16 %v201, %v199
  %v318 = vpack.c.b16 %v204, %v202
  %v319 = vpack.c.b16 %v205, %v203
  %v320 = vpack.c.b16 %v208, %v206
  %v321 = vpack.c.b16 %v209, %v207
  %v322 = vpack.c.b16 %v212, %v210
  %v323 = vpack.c.b16 %v213, %v211
  %v324 = vpack.c.b16 %v216, %v214
  %v325 = vpack.c.b16 %v217, %v215
  %v326 = vpack.c.b16 %v220, %v218
  %v327 = vpack.c.b16 %v221, %v219
  %v328 = vpack.c.b16 %v224, %v222
  %v329 = vpack.c.b16 %v225, %v223
  %v330 = vpack.c.b16 %v228, %v226
  %v331 = vpack.c.b16 %v229, %v227
  %v332 = vpack.c.b16 %v232, %v230
  %v333 = vpack.c.b16 %v233, %v231
  %v334 = vpack.c.b16 %v236, %v234
  %v335 = vpack.c.b16 %v237, %v235
  %v336 = vpack.c.b16 %v240, %v238
  %v337 = vpack.c.b16 %v241, %v239
  %v338 = vpack.c.b16 %v244, %v242
  %v339 = vpack.c.b16 %v245, %v243
  %v340 = vpack.c.b16 %v248, %v246
  %v341 = vpack.c.b16 %v249, %v247
  %v342 = vpack.c.b16 %v252, %v250
  %v343 = vpack.c.b16 %v253, %v251
  %v344 = vpack.c.b16 %v256, %v254
  %v345 = vpack.c.b16 %v257, %v255
  %v346 = vpack.c.b16 %v260, %v258
  %v347 = vpack.c.b16 %v261, %v259
  %v348 = vpack.c.b16 %v264, %v262
  %v349 = vpack.c.b16 %v265, %v263
  %v350 = vpack.c.b16 %v268, %v266
  %v351 = vpack.c.b16 %v269, %v267
  %v352 = vpack.c.b16 %v272, %v270
  %v353 = vpack.c.b16 %v273, %v271
  %v354 = vpack.c.b16 %v276, %v274
  %v355 = vpack.c.b16 %v277, %v275
  %v356 = vpack.c.b16 %v280, %v278
  %v357 = vpack.c.b16 %v281, %v279
  %v358 = vpack.c.b16 %v284, %v282
  %v359 = vpack.c.b16 %v285, %v283
  %v360 = vpack.c.b16 %v288, %v286
  %v361 = vpack.c.b16 %v289, %v287
  %v362 = vpack.c.b16 %v292, %v290
  %v363 = vpack.c.b16 %v293, %v291
  %v364 = vpack.c.b16 %v296, %v294
  %v365 = vpack.c.b16 %v297, %v295
  %v366 = vpack.c.b16 %v300, %v298
  %v367 = vpack.c.b16 %v301, %v299
  %v368 = vpack.c.b16 %v304, %v302
  %v369 = vpack.c.b16 %v305, %v303
  %v466 = vunpack.c.l.b16 %v78
  %v467 = vunpack.c.l.b16 %v79
  %v468 = vunpack.c.l.b16 %v80
  %v469 = vunpack.c.l.b16 %v81
  %v470 = vunpack.c.l.b16 %v82
  %v471 = vunpack.c.l.b16 %v83
  %v472 = vunpack.c.l.b16 %v84
  %v473 = vunpack.c.l.b16 %v85
  %v474 = vunpack.c.l.b16 %v86
  %v475 = vunpack.c.l.b16 %v87
  %v476 = vunpack.c.l.b16 %v88
  %v477 = vunpack.c.l.b16 %v89
  %v478 = vunpack.c.l.b16 %v90
  %v479 = vunpack.c.l.b16 %v91
  %v480 = vunpack.c.l.b16 %v92
  %v481 = vunpack.c.l.b16 %v93
  %v482 = vunpack.c.l.b16 %v94
  %v483 = vunpack.c.l.b16 %v95
  %v484 = vunpack.c.l.b16 %v96
  %v485 = vunpack.c.l.b16 %v97
  %v486 = vunpack.c.l.b16 %v98
  %v487 = vunpack.c.l.b16 %v99
  %v488 = vunpack.c.l.b16 %v100
  %v489 = vunpack.c.l.b16 %v101
  %v490 = vunpack.c.l.b16 %v102
  %v491 = vunpack.c.l.b16 %v103
  %v492 = vunpack.c.l.b16 %v104
  %v493 = vunpack.c.l.b16 %v105
  %v494 = vunpack.c.l.b16 %v106
  %v495 = vunpack.c.l.b16 %v107
  %v496 = vunpack.c.l.b16 %v108
  %v497 = vunpack.c.l.b16 %v109
  %v498 = vpack.c.b16 %v467, %v466
  %v499 = vpack.c.b16 %v469, %v468
  %v500 = vpack.c.b16 %v471, %v470
  %v501 = vpack.c.b16 %v473, %v472
  %v502 = vpack.c.b16 %v475, %v474
  %v503 = vpack.c.b16 %v477, %v476
  %v504 = vpack.c.b16 %v479, %v478
  %v505 = vpack.c.b16 %v481, %v480
  %v506 = vpack.c.b16 %v483, %v482
  %v507 = vpack.c.b16 %v485, %v484
  %v508 = vpack.c.b16 %v487, %v486
  %v509 = vpack.c.b16 %v489, %v488
  %v510 = vpack.c.b16 %v491, %v490
  %v511 = vpack.c.b16 %v493, %v492
  %v512 = vpack.c.b16 %v495, %v494
  %v513 = vpack.c.b16 %v497, %v496
  %530 = vmatpush.bf16.msra.mxu0 %v505
  %531 = vmatpush.bf16.msra.mxu0 %v504
  %532 = vmatpush.bf16.msra.mxu0 %v503
  %533 = vmatpush.bf16.msra.mxu0 %v502
  %534 = vmatpush.bf16.msra.mxu0 %v501
  %535 = vmatpush.bf16.msra.mxu0 %v500
  %536 = vmatpush.bf16.msra.mxu0 %v499
  %537 = vmatpush.bf16.msra.mxu0 %v498
  %538 = vmatmul.bf16.gmra.mxu0 %v306
  %v539 = vpop.f32.mrf.mxu0
  %v540 = vadd.f32 %v112, %v539
  %v541 = vpop.f32.mrf.mxu0
  %v542 = vadd.f32 %v112, %v541
  %543 = vmatmul.bf16.gmra.mxu0 %v308
  %v544 = vpop.f32.mrf.mxu0
  %v545 = vadd.f32 %v112, %v544
  %v546 = vpop.f32.mrf.mxu0
  %v547 = vadd.f32 %v112, %v546
  %548 = vmatmul.bf16.gmra.mxu0 %v310
  %v549 = vpop.f32.mrf.mxu0
  %v550 = vadd.f32 %v112, %v549
  %v551 = vpop.f32.mrf.mxu0
  %v552 = vadd.f32 %v112, %v551
  %553 = vmatmul.bf16.gmra.mxu0 %v312
  %v554 = vpop.f32.mrf.mxu0
  %v555 = vadd.f32 %v112, %v554
  %v556 = vpop.f32.mrf.mxu0
  %v557 = vadd.f32 %v112, %v556
  %558 = vmatmul.bf16.gmra.mxu0 %v314
  %v559 = vpop.f32.mrf.mxu0
  %v560 = vadd.f32 %v112, %v559
  %v561 = vpop.f32.mrf.mxu0
  %v562 = vadd.f32 %v112, %v561
  %563 = vmatmul.bf16.gmra.mxu0 %v316
  %v564 = vpop.f32.mrf.mxu0
  %v565 = vadd.f32 %v112, %v564
  %v566 = vpop.f32.mrf.mxu0
  %v567 = vadd.f32 %v112, %v566
  %568 = vmatmul.bf16.gmra.mxu0 %v318
  %v569 = vpop.f32.mrf.mxu0
  %v570 = vadd.f32 %v112, %v569
  %v571 = vpop.f32.mrf.mxu0
  %v572 = vadd.f32 %v112, %v571
  %573 = vmatmul.bf16.gmra.mxu0 %v320
  %v574 = vpop.f32.mrf.mxu0
  %v575 = vadd.f32 %v112, %v574
  %v576 = vpop.f32.mrf.mxu0
  %v577 = vadd.f32 %v112, %v576
  %578 = vmatmul.bf16.gmra.mxu0 %v322
  %v579 = vpop.f32.mrf.mxu0
  %v580 = vadd.f32 %v112, %v579
  %v581 = vpop.f32.mrf.mxu0
  %v582 = vadd.f32 %v112, %v581
  %583 = vmatmul.bf16.gmra.mxu0 %v324
  %v584 = vpop.f32.mrf.mxu0
  %v585 = vadd.f32 %v112, %v584
  %v586 = vpop.f32.mrf.mxu0
  %v587 = vadd.f32 %v112, %v586
  %588 = vmatmul.bf16.gmra.mxu0 %v326
  %v589 = vpop.f32.mrf.mxu0
  %v590 = vadd.f32 %v112, %v589
  %v591 = vpop.f32.mrf.mxu0
  %v592 = vadd.f32 %v112, %v591
  %593 = vmatmul.bf16.gmra.mxu0 %v328
  %v594 = vpop.f32.mrf.mxu0
  %v595 = vadd.f32 %v112, %v594
  %v596 = vpop.f32.mrf.mxu0
  %v597 = vadd.f32 %v112, %v596
  %598 = vmatmul.bf16.gmra.mxu0 %v330
  %v599 = vpop.f32.mrf.mxu0
  %v600 = vadd.f32 %v112, %v599
  %v601 = vpop.f32.mrf.mxu0
  %v602 = vadd.f32 %v112, %v601
  %603 = vmatmul.bf16.gmra.mxu0 %v332
  %v604 = vpop.f32.mrf.mxu0
  %v605 = vadd.f32 %v112, %v604
  %v606 = vpop.f32.mrf.mxu0
  %v607 = vadd.f32 %v112, %v606
  %608 = vmatmul.bf16.gmra.mxu0 %v334
  %v609 = vpop.f32.mrf.mxu0
  %v610 = vadd.f32 %v112, %v609
  %v611 = vpop.f32.mrf.mxu0
  %v612 = vadd.f32 %v112, %v611
  %613 = vmatmul.bf16.gmra.mxu0 %v336
  %v614 = vpop.f32.mrf.mxu0
  %v615 = vadd.f32 %v112, %v614
  %v616 = vpop.f32.mrf.mxu0
  %v617 = vadd.f32 %v112, %v616
  %618 = vmatmul.bf16.gmra.mxu0 %v338
  %v619 = vpop.f32.mrf.mxu0
  %v620 = vadd.f32 %v112, %v619
  %v621 = vpop.f32.mrf.mxu0
  %v622 = vadd.f32 %v112, %v621
  %623 = vmatmul.bf16.gmra.mxu0 %v340
  %v624 = vpop.f32.mrf.mxu0
  %v625 = vadd.f32 %v112, %v624
  %v626 = vpop.f32.mrf.mxu0
  %v627 = vadd.f32 %v112, %v626
  %628 = vmatmul.bf16.gmra.mxu0 %v342
  %v629 = vpop.f32.mrf.mxu0
  %v630 = vadd.f32 %v112, %v629
  %v631 = vpop.f32.mrf.mxu0
  %v632 = vadd.f32 %v112, %v631
  %633 = vmatmul.bf16.gmra.mxu0 %v344
  %v634 = vpop.f32.mrf.mxu0
  %v635 = vadd.f32 %v112, %v634
  %v636 = vpop.f32.mrf.mxu0
  %v637 = vadd.f32 %v112, %v636
  %638 = vmatmul.bf16.gmra.mxu0 %v346
  %v639 = vpop.f32.mrf.mxu0
  %v640 = vadd.f32 %v112, %v639
  %v641 = vpop.f32.mrf.mxu0
  %v642 = vadd.f32 %v112, %v641
  %643 = vmatmul.bf16.gmra.mxu0 %v348
  %v644 = vpop.f32.mrf.mxu0
  %v645 = vadd.f32 %v112, %v644
  %v646 = vpop.f32.mrf.mxu0
  %v647 = vadd.f32 %v112, %v646
  %648 = vmatmul.bf16.gmra.mxu0 %v350
  %v649 = vpop.f32.mrf.mxu0
  %v650 = vadd.f32 %v112, %v649
  %v651 = vpop.f32.mrf.mxu0
  %v652 = vadd.f32 %v112, %v651
  %653 = vmatmul.bf16.gmra.mxu0 %v352
  %v654 = vpop.f32.mrf.mxu0
  %v655 = vadd.f32 %v112, %v654
  %v656 = vpop.f32.mrf.mxu0
  %v657 = vadd.f32 %v112, %v656
  %658 = vmatmul.bf16.gmra.mxu0 %v354
  %v659 = vpop.f32.mrf.mxu0
  %v660 = vadd.f32 %v112, %v659
  %v661 = vpop.f32.mrf.mxu0
  %v662 = vadd.f32 %v112, %v661
  %663 = vmatmul.bf16.gmra.mxu0 %v356
  %v664 = vpop.f32.mrf.mxu0
  %v665 = vadd.f32 %v112, %v664
  %v666 = vpop.f32.mrf.mxu0
  %v667 = vadd.f32 %v112, %v666
  %668 = vmatmul.bf16.gmra.mxu0 %v358
  %v669 = vpop.f32.mrf.mxu0
  %v670 = vadd.f32 %v112, %v669
  %v671 = vpop.f32.mrf.mxu0
  %v672 = vadd.f32 %v112, %v671
  %673 = vmatmul.bf16.gmra.mxu0 %v360
  %v674 = vpop.f32.mrf.mxu0
  %v675 = vadd.f32 %v112, %v674
  %v676 = vpop.f32.mrf.mxu0
  %v677 = vadd.f32 %v112, %v676
  %678 = vmatmul.bf16.gmra.mxu0 %v362
  %v679 = vpop.f32.mrf.mxu0
  %v680 = vadd.f32 %v112, %v679
  %v681 = vpop.f32.mrf.mxu0
  %v682 = vadd.f32 %v112, %v681
  %683 = vmatmul.bf16.gmra.mxu0 %v364
  %v684 = vpop.f32.mrf.mxu0
  %v685 = vadd.f32 %v112, %v684
  %v686 = vpop.f32.mrf.mxu0
  %v687 = vadd.f32 %v112, %v686
  %688 = vmatmul.bf16.gmra.mxu0 %v366
  %v689 = vpop.f32.mrf.mxu0
  %v690 = vadd.f32 %v112, %v689
  %v691 = vpop.f32.mrf.mxu0
  %v692 = vadd.f32 %v112, %v691
  %693 = vmatmul.bf16.gmra.mxu0 %v368
  %v694 = vpop.f32.mrf.mxu0
  %v695 = vadd.f32 %v112, %v694
  %v696 = vpop.f32.mrf.mxu0
  %v697 = vadd.f32 %v112, %v696
  %698 = vdwg.mxu0
  %699 = vmatpush.bf16.msra.mxu0 %v513
  %700 = vmatpush.bf16.msra.mxu0 %v512
  %701 = vmatpush.bf16.msra.mxu0 %v511
  %702 = vmatpush.bf16.msra.mxu0 %v510
  %703 = vmatpush.bf16.msra.mxu0 %v509
  %704 = vmatpush.bf16.msra.mxu0 %v508
  %705 = vmatpush.bf16.msra.mxu0 %v507
  %706 = vmatpush.bf16.msra.mxu0 %v506
  %707 = vmatmul.bf16.gmra.mxu0 %v307
  %v708 = vpop.f32.mrf.mxu0
  %v709 = vadd.f32 %v540, %v708
  %v710 = vpop.f32.mrf.mxu0
  %v711 = vadd.f32 %v542, %v710
  %712 = vmatmul.bf16.gmra.mxu0 %v309
  %v713 = vpop.f32.mrf.mxu0
  %v714 = vadd.f32 %v545, %v713
  %v715 = vpop.f32.mrf.mxu0
  %v716 = vadd.f32 %v547, %v715
  %717 = vmatmul.bf16.gmra.mxu0 %v311
  %v718 = vpop.f32.mrf.mxu0
  %v719 = vadd.f32 %v550, %v718
  %v720 = vpop.f32.mrf.mxu0
  %v721 = vadd.f32 %v552, %v720
  %722 = vmatmul.bf16.gmra.mxu0 %v313
  %v723 = vpop.f32.mrf.mxu0
  %v724 = vadd.f32 %v555, %v723
  %v725 = vpop.f32.mrf.mxu0
  %v726 = vadd.f32 %v557, %v725
  %727 = vmatmul.bf16.gmra.mxu0 %v315
  %v728 = vpop.f32.mrf.mxu0
  %v729 = vadd.f32 %v560, %v728
  %v730 = vpop.f32.mrf.mxu0
  %v731 = vadd.f32 %v562, %v730
  %732 = vmatmul.bf16.gmra.mxu0 %v317
  %v733 = vpop.f32.mrf.mxu0
  %v734 = vadd.f32 %v565, %v733
  %v735 = vpop.f32.mrf.mxu0
  %v736 = vadd.f32 %v567, %v735
  %737 = vmatmul.bf16.gmra.mxu0 %v319
  %v738 = vpop.f32.mrf.mxu0
  %v739 = vadd.f32 %v570, %v738
  %v740 = vpop.f32.mrf.mxu0
  %v741 = vadd.f32 %v572, %v740
  %742 = vmatmul.bf16.gmra.mxu0 %v321
  %v743 = vpop.f32.mrf.mxu0
  %v744 = vadd.f32 %v575, %v743
  %v745 = vpop.f32.mrf.mxu0
  %v746 = vadd.f32 %v577, %v745
  %747 = vmatmul.bf16.gmra.mxu0 %v323
  %v748 = vpop.f32.mrf.mxu0
  %v749 = vadd.f32 %v580, %v748
  %v750 = vpop.f32.mrf.mxu0
  %v751 = vadd.f32 %v582, %v750
  %752 = vmatmul.bf16.gmra.mxu0 %v325
  %v753 = vpop.f32.mrf.mxu0
  %v754 = vadd.f32 %v585, %v753
  %v755 = vpop.f32.mrf.mxu0
  %v756 = vadd.f32 %v587, %v755
  %757 = vmatmul.bf16.gmra.mxu0 %v327
  %v758 = vpop.f32.mrf.mxu0
  %v759 = vadd.f32 %v590, %v758
  %v760 = vpop.f32.mrf.mxu0
  %v761 = vadd.f32 %v592, %v760
  %762 = vmatmul.bf16.gmra.mxu0 %v329
  %v763 = vpop.f32.mrf.mxu0
  %v764 = vadd.f32 %v595, %v763
  %v765 = vpop.f32.mrf.mxu0
  %v766 = vadd.f32 %v597, %v765
  %767 = vmatmul.bf16.gmra.mxu0 %v331
  %v768 = vpop.f32.mrf.mxu0
  %v769 = vadd.f32 %v600, %v768
  %v770 = vpop.f32.mrf.mxu0
  %v771 = vadd.f32 %v602, %v770
  %772 = vmatmul.bf16.gmra.mxu0 %v333
  %v773 = vpop.f32.mrf.mxu0
  %v774 = vadd.f32 %v605, %v773
  %v775 = vpop.f32.mrf.mxu0
  %v776 = vadd.f32 %v607, %v775
  %777 = vmatmul.bf16.gmra.mxu0 %v335
  %v778 = vpop.f32.mrf.mxu0
  %v779 = vadd.f32 %v610, %v778
  %v780 = vpop.f32.mrf.mxu0
  %v781 = vadd.f32 %v612, %v780
  %782 = vmatmul.bf16.gmra.mxu0 %v337
  %v783 = vpop.f32.mrf.mxu0
  %v784 = vadd.f32 %v615, %v783
  %v785 = vpop.f32.mrf.mxu0
  %v786 = vadd.f32 %v617, %v785
  %787 = vmatmul.bf16.gmra.mxu0 %v339
  %v788 = vpop.f32.mrf.mxu0
  %v789 = vadd.f32 %v620, %v788
  %v790 = vpop.f32.mrf.mxu0
  %v791 = vadd.f32 %v622, %v790
  %792 = vmatmul.bf16.gmra.mxu0 %v341
  %v793 = vpop.f32.mrf.mxu0
  %v794 = vadd.f32 %v625, %v793
  %v795 = vpop.f32.mrf.mxu0
  %v796 = vadd.f32 %v627, %v795
  %797 = vmatmul.bf16.gmra.mxu0 %v343
  %v798 = vpop.f32.mrf.mxu0
  %v799 = vadd.f32 %v630, %v798
  %v800 = vpop.f32.mrf.mxu0
  %v801 = vadd.f32 %v632, %v800
  %802 = vmatmul.bf16.gmra.mxu0 %v345
  %v803 = vpop.f32.mrf.mxu0
  %v804 = vadd.f32 %v635, %v803
  %v805 = vpop.f32.mrf.mxu0
  %v806 = vadd.f32 %v637, %v805
  %807 = vmatmul.bf16.gmra.mxu0 %v347
  %v808 = vpop.f32.mrf.mxu0
  %v809 = vadd.f32 %v640, %v808
  %v810 = vpop.f32.mrf.mxu0
  %v811 = vadd.f32 %v642, %v810
  %812 = vmatmul.bf16.gmra.mxu0 %v349
  %v813 = vpop.f32.mrf.mxu0
  %v814 = vadd.f32 %v645, %v813
  %v815 = vpop.f32.mrf.mxu0
  %v816 = vadd.f32 %v647, %v815
  %817 = vmatmul.bf16.gmra.mxu0 %v351
  %v818 = vpop.f32.mrf.mxu0
  %v819 = vadd.f32 %v650, %v818
  %v820 = vpop.f32.mrf.mxu0
  %v821 = vadd.f32 %v652, %v820
  %822 = vmatmul.bf16.gmra.mxu0 %v353
  %v823 = vpop.f32.mrf.mxu0
  %v824 = vadd.f32 %v655, %v823
  %v825 = vpop.f32.mrf.mxu0
  %v826 = vadd.f32 %v657, %v825
  %827 = vmatmul.bf16.gmra.mxu0 %v355
  %v828 = vpop.f32.mrf.mxu0
  %v829 = vadd.f32 %v660, %v828
  %v830 = vpop.f32.mrf.mxu0
  %v831 = vadd.f32 %v662, %v830
  %832 = vmatmul.bf16.gmra.mxu0 %v357
  %v833 = vpop.f32.mrf.mxu0
  %v834 = vadd.f32 %v665, %v833
  %v835 = vpop.f32.mrf.mxu0
  %v836 = vadd.f32 %v667, %v835
  %837 = vmatmul.bf16.gmra.mxu0 %v359
  %v838 = vpop.f32.mrf.mxu0
  %v839 = vadd.f32 %v670, %v838
  %v840 = vpop.f32.mrf.mxu0
  %v841 = vadd.f32 %v672, %v840
  %842 = vmatmul.bf16.gmra.mxu0 %v361
  %v843 = vpop.f32.mrf.mxu0
  %v844 = vadd.f32 %v675, %v843
  %v845 = vpop.f32.mrf.mxu0
  %v846 = vadd.f32 %v677, %v845
  %847 = vmatmul.bf16.gmra.mxu0 %v363
  %v848 = vpop.f32.mrf.mxu0
  %v849 = vadd.f32 %v680, %v848
  %v850 = vpop.f32.mrf.mxu0
  %v851 = vadd.f32 %v682, %v850
  %852 = vmatmul.bf16.gmra.mxu0 %v365
  %v853 = vpop.f32.mrf.mxu0
  %v854 = vadd.f32 %v685, %v853
  %v855 = vpop.f32.mrf.mxu0
  %v856 = vadd.f32 %v687, %v855
  %857 = vmatmul.bf16.gmra.mxu0 %v367
  %v858 = vpop.f32.mrf.mxu0
  %v859 = vadd.f32 %v690, %v858
  %v860 = vpop.f32.mrf.mxu0
  %v861 = vadd.f32 %v692, %v860
  %862 = vmatmul.bf16.gmra.mxu0 %v369
  %v863 = vpop.f32.mrf.mxu0
  %v864 = vadd.f32 %v695, %v863
  %v865 = vpop.f32.mrf.mxu0
  %v866 = vadd.f32 %v697, %v865
  %867 = vdwg.mxu0
  %v868 = vtanh.pop %v709
  %v869 = vtanh.pop %v711
  %v870 = vtanh.pop %v714
  %v871 = vtanh.pop %v716
  %v872 = vtanh.pop %v719
  %v873 = vtanh.pop %v721
  %v874 = vtanh.pop %v724
  %v875 = vtanh.pop %v726
  %v876 = vtanh.pop %v729
  %v877 = vtanh.pop %v731
  %v878 = vtanh.pop %v734
  %v879 = vtanh.pop %v736
  %v880 = vtanh.pop %v739
  %v881 = vtanh.pop %v741
  %v882 = vtanh.pop %v744
  %v883 = vtanh.pop %v746
  %v884 = vtanh.pop %v749
  %v885 = vtanh.pop %v751
  %v886 = vtanh.pop %v754
  %v887 = vtanh.pop %v756
  %v888 = vtanh.pop %v759
  %v889 = vtanh.pop %v761
  %v890 = vtanh.pop %v764
  %v891 = vtanh.pop %v766
  %v892 = vtanh.pop %v769
  %v893 = vtanh.pop %v771
  %v894 = vtanh.pop %v774
  %v895 = vtanh.pop %v776
  %v896 = vtanh.pop %v779
  %v897 = vtanh.pop %v781
  %v898 = vtanh.pop %v784
  %v899 = vtanh.pop %v786
  %v900 = vtanh.pop %v789
  %v901 = vtanh.pop %v791
  %v902 = vtanh.pop %v794
  %v903 = vtanh.pop %v796
  %v904 = vtanh.pop %v799
  %v905 = vtanh.pop %v801
  %v906 = vtanh.pop %v804
  %v907 = vtanh.pop %v806
  %v908 = vtanh.pop %v809
  %v909 = vtanh.pop %v811
  %v910 = vtanh.pop %v814
  %v911 = vtanh.pop %v816
  %v912 = vtanh.pop %v819
  %v913 = vtanh.pop %v821
  %v914 = vtanh.pop %v824
  %v915 = vtanh.pop %v826
  %v916 = vtanh.pop %v829
  %v917 = vtanh.pop %v831
  %v918 = vtanh.pop %v834
  %v919 = vtanh.pop %v836
  %v920 = vtanh.pop %v839
  %v921 = vtanh.pop %v841
  %v922 = vtanh.pop %v844
  %v923 = vtanh.pop %v846
  %v924 = vtanh.pop %v849
  %v925 = vtanh.pop %v851
  %v926 = vtanh.pop %v854
  %v927 = vtanh.pop %v856
  %v928 = vtanh.pop %v859
  %v929 = vtanh.pop %v861
  %v930 = vtanh.pop %v864
  %v931 = vtanh.pop %v866
  %932 = vst [vmem:[%s3] sm:$0xff] %v868
  %933 = vst [vmem:[%s3 + $0x8] sm:$0xff] %v869
  %934 = vst [vmem:[%s3 + $0x10] sm:$0xff] %v870
  %935 = vst [vmem:[%s3 + $0x18] sm:$0xff] %v871
  %936 = vst [vmem:[%s3 + $0x20] sm:$0xff] %v872
  %937 = vst [vmem:[%s3 + $0x28] sm:$0xff] %v873
  %938 = vst [vmem:[%s3 + $0x30] sm:$0xff] %v874
  %939 = vst [vmem:[%s3 + $0x38] sm:$0xff] %v875
  %940 = vst [vmem:[%s3 + $0x40] sm:$0xff] %v876
  %941 = vst [vmem:[%s3 + $0x48] sm:$0xff] %v877
  %942 = vst [vmem:[%s3 + $0x50] sm:$0xff] %v878
  %943 = vst [vmem:[%s3 + $0x58] sm:$0xff] %v879
  %944 = vst [vmem:[%s3 + $0x60] sm:$0xff] %v880
  %945 = vst [vmem:[%s3 + $0x68] sm:$0xff] %v881
  %946 = vst [vmem:[%s3 + $0x70] sm:$0xff] %v882
  %947 = vst [vmem:[%s3 + $0x78] sm:$0xff] %v883
  %948 = vst [vmem:[%s3 + $0x80] sm:$0xff] %v884
  %949 = vst [vmem:[%s3 + $0x88] sm:$0xff] %v885
  %950 = vst [vmem:[%s3 + $0x90] sm:$0xff] %v886
  %951 = vst [vmem:[%s3 + $0x98] sm:$0xff] %v887
  %952 = vst [vmem:[%s3 + $0xa0] sm:$0xff] %v888
  %953 = vst [vmem:[%s3 + $0xa8] sm:$0xff] %v889
  %954 = vst [vmem:[%s3 + $0xb0] sm:$0xff] %v890
  %955 = vst [vmem:[%s3 + $0xb8] sm:$0xff] %v891
  %956 = vst [vmem:[%s3 + $0xc0] sm:$0xff] %v892
  %957 = vst [vmem:[%s3 + $0xc8] sm:$0xff] %v893
  %958 = vst [vmem:[%s3 + $0xd0] sm:$0xff] %v894
  %959 = vst [vmem:[%s3 + $0xd8] sm:$0xff] %v895
  %960 = vst [vmem:[%s3 + $0xe0] sm:$0xff] %v896
  %961 = vst [vmem:[%s3 + $0xe8] sm:$0xff] %v897
  %962 = vst [vmem:[%s3 + $0xf0] sm:$0xff] %v898
  %963 = vst [vmem:[%s3 + $0xf8] sm:$0xff] %v899
  %964 = vst [vmem:[%s3 + $0x100] sm:$0xff] %v900
  %965 = vst [vmem:[%s3 + $0x108] sm:$0xff] %v901
  %966 = vst [vmem:[%s3 + $0x110] sm:$0xff] %v902
  %967 = vst [vmem:[%s3 + $0x118] sm:$0xff] %v903
  %968 = vst [vmem:[%s3 + $0x120] sm:$0xff] %v904
  %969 = vst [vmem:[%s3 + $0x128] sm:$0xff] %v905
  %970 = vst [vmem:[%s3 + $0x130] sm:$0xff] %v906
  %971 = vst [vmem:[%s3 + $0x138] sm:$0xff] %v907
  %972 = vst [vmem:[%s3 + $0x140] sm:$0xff] %v908
  %973 = vst [vmem:[%s3 + $0x148] sm:$0xff] %v909
  %974 = vst [vmem:[%s3 + $0x150] sm:$0xff] %v910
  %975 = vst [vmem:[%s3 + $0x158] sm:$0xff] %v911
  %976 = vst [vmem:[%s3 + $0x160] sm:$0xff] %v912
  %977 = vst [vmem:[%s3 + $0x168] sm:$0xff] %v913
  %978 = vst [vmem:[%s3 + $0x170] sm:$0xff] %v914
  %979 = vst [vmem:[%s3 + $0x178] sm:$0xff] %v915
  %980 = vst [vmem:[%s3 + $0x180] sm:$0xff] %v916
  %981 = vst [vmem:[%s3 + $0x188] sm:$0xff] %v917
  %982 = vst [vmem:[%s3 + $0x190] sm:$0xff] %v918
  %983 = vst [vmem:[%s3 + $0x198] sm:$0xff] %v919
  %984 = vst [vmem:[%s3 + $0x1a0] sm:$0xff] %v920
  %985 = vst [vmem:[%s3 + $0x1a8] sm:$0xff] %v921
  %986 = vst [vmem:[%s3 + $0x1b0] sm:$0xff] %v922
  %987 = vst [vmem:[%s3 + $0x1b8] sm:$0xff] %v923
  %988 = vst [vmem:[%s3 + $0x1c0] sm:$0xff] %v924
  %989 = vst [vmem:[%s3 + $0x1c8] sm:$0xff] %v925
  %990 = vst [vmem:[%s3 + $0x1d0] sm:$0xff] %v926
  %991 = vst [vmem:[%s3 + $0x1d8] sm:$0xff] %v927
  %992 = vst [vmem:[%s3 + $0x1e0] sm:$0xff] %v928
  %993 = vst [vmem:[%s3 + $0x1e8] sm:$0xff] %v929
  %994 = vst [vmem:[%s3 + $0x1f0] sm:$0xff] %v930
  %995 = vst [vmem:[%s3 + $0x1f8] sm:$0xff] %v931
  // Predicated region
  $region14: #{autoencoder_forward.29} parent=0 // pred_check
    _
  $region15: #{autoencoder_forward.29} parent=0 // pred_check_branch
    %997 = sbr.rel (0) target = $region17
  $region16: #{autoencoder_forward.29} parent=0 // pred_region
    _
  $region17: #{autoencoder_forward.29} parent=0 // pred_fallthru
    _
  // Predicated region
  $region18: #{autoencoder_forward.29} parent=0 // pred_check
    _
  $region19: #{autoencoder_forward.29} parent=0 // pred_check_branch
    %999 = sbr.rel (0) target = $region21
  $region20: #{autoencoder_forward.29} parent=0 // pred_region
    _
  $region21: #{autoencoder_forward.29} parent=0 // pred_fallthru
    _

</llo_original>
